<compile_context>
chip_gen: v5e
topology: v5e:2x2
jax: 0.10.0
libtpu: 0.0.40
codegen_flags: <defaults>
</compile_context>

<pallas_src>
import math

import jax
import jax.numpy as jnp
from jax.experimental import pallas as pl
from jax.experimental.pallas import tpu as pltpu

# ----------------------------- model config (consistent with the module) ------
IN_CH = 1
OUT_CH = 2
DIM = 8                      # "dim"
KERNEL_LIST = [8, 8]         # two FactorFNO2dBlocks
HIDDEN_LIST = [16]
MODE_LIST = [(6, 6), (6, 6)]
COND_CH = 4 * DIM            # condition_dim when freqlinear=True
LN_EPS = 1e-5

_SQRT1_2 = 1.0 / math.sqrt(2.0)


# ----------------------------- small helpers ----------------------------------
def _pick_row_tile(n):
    # Row-tiling hook: at production sizes this keeps each block well under the
    # scoped-VMEM limit (hits v7x's 64 MiB first) and re-enables pipelining; at
    # the toy size here it degenerates to a single full block.
    for t in (2048, 1024, 512):
        if n > t and n % t == 0:
            return t
    return n


def _erf_poly(x):
    # Abramowitz & Stegun 7.1.26 rational approximation, |err| < 1.5e-7.
    # Used instead of lax.erf so the kernel only relies on ops with guaranteed
    # Mosaic lowerings (abs, mul, add, div, exp, select).
    p = 0.3275911
    a1, a2, a3, a4, a5 = (0.254829592, -0.284496736, 1.421413741,
                          -1.453152027, 1.061405429)
    ax = jnp.abs(x)
    t = 1.0 / (1.0 + p * ax)
    poly = ((((a5 * t + a4) * t + a3) * t + a2) * t + a1) * t
    y = 1.0 - poly * jnp.exp(-ax * ax)
    return jnp.where(x < 0.0, -y, y)


def _gelu_exact(x):
    # torch nn.GELU() default = exact (erf-based) GELU.
    return 0.5 * x * (1.0 + _erf_poly(x * _SQRT1_2))


# ----------------------------- Pallas kernels ---------------------------------
def _matmul_bias_kernel(x_ref, w_ref, b_ref, o_ref):
    o_ref[...] = (
        jnp.dot(x_ref[...], w_ref[...], preferred_element_type=jnp.float32)
        + b_ref[...]
    ).astype(o_ref.dtype)


def matmul_bias(x, w, b):
    """y = x @ w + b, row-tiled; used for the fused FreqLinear projections."""
    x = x.astype(jnp.float32)
    w = w.astype(jnp.float32)
    N, K = x.shape
    C = w.shape[1]
    tn = _pick_row_tile(N)
    row = lambda i: (i, 0)
    rep = lambda i: (0, 0)
    return pl.pallas_call(
        _matmul_bias_kernel,
        out_shape=jax.ShapeDtypeStruct((N, C), jnp.float32),
        grid=(N // tn,),
        in_specs=[pl.BlockSpec((tn, K), row),
                  pl.BlockSpec((K, C), rep),
                  pl.BlockSpec((1, C), rep)],
        out_specs=pl.BlockSpec((tn, C), row),
        compiler_params=pltpu.CompilerParams(dimension_semantics=("parallel",)),
    )(x, w, b.reshape(1, C).astype(jnp.float32))


def _stem_kernel(x_ref, w_ref, b_ref, o_ref):
    # IN_CH == 1: the 1x1 stem conv is a broadcast multiply-add (no matmul).
    o_ref[...] = (x_ref[...] * w_ref[...] + b_ref[...]).astype(o_ref.dtype)


def stem_pallas(x, w, b):
    N, K = x.shape
    C = w.shape[1]
    if K != 1:
        return matmul_bias(x, w, b)
    tn = _pick_row_tile(N)
    row = lambda i: (i, 0)
    rep = lambda i: (0, 0)
    return pl.pallas_call(
        _stem_kernel,
        out_shape=jax.ShapeDtypeStruct((N, C), jnp.float32),
        grid=(N // tn,),
        in_specs=[pl.BlockSpec((tn, 1), row),
                  pl.BlockSpec((1, C), rep),
                  pl.BlockSpec((1, C), rep)],
        out_specs=pl.BlockSpec((tn, C), row),
        compiler_params=pltpu.CompilerParams(dimension_semantics=("parallel",)),
    )(x.astype(jnp.float32), w.astype(jnp.float32),
      b.reshape(1, C).astype(jnp.float32))


def _cond_mlp_kernel(x_ref, w1_ref, b1_ref, w2_ref, b2_ref, o_ref):
    # cond_embed: Linear -> GELU (exact, matches torch nn.GELU()) -> Linear
    h = (jnp.dot(x_ref[...], w1_ref[...], preferred_element_type=jnp.float32)
         + b1_ref[...])
    h = _gelu_exact(h)
    o_ref[...] = (
        jnp.dot(h, w2_ref[...], preferred_element_type=jnp.float32) + b2_ref[...]
    ).astype(o_ref.dtype)


def cond_mlp_pallas(x, w1, b1, w2, b2):
    B, D = x.shape
    Cc = w1.shape[1]
    full = lambda i: (0, 0)
    return pl.pallas_call(
        _cond_mlp_kernel,
        out_shape=jax.ShapeDtypeStruct((B, Cc), jnp.float32),
        grid=(1,),
        in_specs=[pl.BlockSpec((B, D), full),
                  pl.BlockSpec((D, Cc), full),
                  pl.BlockSpec((1, Cc), full),
                  pl.BlockSpec((Cc, Cc), full),
                  pl.BlockSpec((1, Cc), full)],
        out_specs=pl.BlockSpec((B, Cc), full),
    )(x.astype(jnp.float32), w1.astype(jnp.float32),
      b1.reshape(1, Cc).astype(jnp.float32),
      w2.astype(jnp.float32), b2.reshape(1, Cc).astype(jnp.float32))


def _spectral_mix_kernel(z_ref, w_ref, o_ref):
    # All retained Fourier modes in ONE batched matmul (batch dim = mode).
    # z = [Re | Im] (M, N, 2Ci), w = [[wr, wi], [-wi, wr]] (M, 2Ci, 2Co)
    # -> o = [Re(z@w) | Im(z@w)] (M, N, 2Co)
    o_ref[...] = jax.lax.dot_general(
        z_ref[...], w_ref[...],
        dimension_numbers=(((2,), (1,)), ((0,), (0,))),
        preferred_element_type=jnp.float32).astype(o_ref.dtype)


def spectral_mix_pallas(z, w):
    M, N, K2 = z.shape
    Co2 = w.shape[2]
    full3 = lambda i: (0, 0, 0)
    return pl.pallas_call(
        _spectral_mix_kernel,
        out_shape=jax.ShapeDtypeStruct((M, N, Co2), jnp.float32),
        grid=(1,),
        in_specs=[pl.BlockSpec((M, N, K2), full3),
                  pl.BlockSpec((M, K2, Co2), full3)],
        out_specs=pl.BlockSpec((M, N, Co2), full3),
    )(z.astype(jnp.float32), w.astype(jnp.float32))


def _block_tail_kernel(xx_ref, xy_ref, y_ref, w1_ref, b1_ref, g_ref, beta_ref,
                       w2_ref, b2_ref, o_ref):
    # xc = xx + xy ; ff = Linear -> ReLU -> LayerNorm -> Linear ; out = ff + y
    xc = xx_ref[...] + xy_ref[...]
    h = (jnp.dot(xc, w1_ref[...], preferred_element_type=jnp.float32)
         + b1_ref[...])
    h = jnp.maximum(h, 0.0)
    mu = jnp.mean(h, axis=-1, keepdims=True)
    var = jnp.mean((h - mu) * (h - mu), axis=-1, keepdims=True)
    hn = (h - mu) * jax.lax.rsqrt(var + LN_EPS)
    hn = hn * g_ref[...] + beta_ref[...]
    out = (jnp.dot(hn, w2_ref[...], preferred_element_type=jnp.float32)
           + b2_ref[...])
    o_ref[...] = (out + y_ref[...]).astype(o_ref.dtype)


def block_tail_pallas(xx, xy, y, w1, b1, gamma, beta, w2, b2):
    N, C = xx.shape
    E = w1.shape[1]
    tn = _pick_row_tile(N)
    row = lambda i: (i, 0)
    rep = lambda i: (0, 0)
    return pl.pallas_call(
        _block_tail_kernel,
        out_shape=jax.ShapeDtypeStruct((N, C), jnp.float32),
        grid=(N // tn,),
        in_specs=[pl.BlockSpec((tn, C), row),
                  pl.BlockSpec((tn, C), row),
                  pl.BlockSpec((tn, C), row),
                  pl.BlockSpec((C, E), rep),
                  pl.BlockSpec((1, E), rep),
                  pl.BlockSpec((1, E), rep),
                  pl.BlockSpec((1, E), rep),
                  pl.BlockSpec((E, C), rep),
                  pl.BlockSpec((1, C), rep)],
        out_specs=pl.BlockSpec((tn, C), row),
        compiler_params=pltpu.CompilerParams(dimension_semantics=("parallel",)),
    )(xx.astype(jnp.float32), xy.astype(jnp.float32), y.astype(jnp.float32),
      w1.astype(jnp.float32), b1.reshape(1, E).astype(jnp.float32),
      gamma.reshape(1, E).astype(jnp.float32),
      beta.reshape(1, E).astype(jnp.float32),
      w2.astype(jnp.float32), b2.reshape(1, C).astype(jnp.float32))


def _head_kernel(x_ref, w1_ref, b1_ref, w2_ref, b2_ref, o_ref):
    # Two 1x1 convs back-to-back (no activation; Dropout2d(0.0) omitted).
    h = (jnp.dot(x_ref[...], w1_ref[...], preferred_element_type=jnp.float32)
         + b1_ref[...])
    o_ref[...] = (
        jnp.dot(h, w2_ref[...], preferred_element_type=jnp.float32) + b2_ref[...]
    ).astype(o_ref.dtype)


def head_pallas(x, w1, b1, w2, b2):
    N, C = x.shape
    Hd = w1.shape[1]
    Co = w2.shape[1]
    tn = _pick_row_tile(N)
    row = lambda i: (i, 0)
    rep = lambda i: (0, 0)
    return pl.pallas_call(
        _head_kernel,
        out_shape=jax.ShapeDtypeStruct((N, Co), jnp.float32),
        grid=(N // tn,),
        in_specs=[pl.BlockSpec((tn, C), row),
                  pl.BlockSpec((C, Hd), rep),
                  pl.BlockSpec((1, Hd), rep),
                  pl.BlockSpec((Hd, Co), rep),
                  pl.BlockSpec((1, Co), rep)],
        out_specs=pl.BlockSpec((tn, Co), row),
        compiler_params=pltpu.CompilerParams(dimension_semantics=("parallel",)),
    )(x.astype(jnp.float32), w1.astype(jnp.float32),
      b1.reshape(1, Hd).astype(jnp.float32),
      w2.astype(jnp.float32), b2.reshape(1, Co).astype(jnp.float32))


# ----------------------------- plain-JAX glue ----------------------------------
def fourier_embedding(t, dim, max_period=10000):
    half = dim // 2
    freqs = jnp.exp(
        -math.log(max_period) * jnp.arange(half, dtype=jnp.float32) / half)
    args = t[:, None].astype(jnp.float32) * freqs[None]
    emb = jnp.concatenate([jnp.cos(args), jnp.sin(args)], axis=-1)
    if dim % 2:
        emb = jnp.concatenate([emb, jnp.zeros_like(emb[:, :1])], axis=-1)
    return emb


def _spectral_branch(x_nhwc, e_c, w_big, axis):
    """One branch of CondFactorFNOConv2d._factorfno_forward, channels-last.

    axis=2 -> transform along W (torch dim=-1); axis=1 -> along H (torch dim=-2).
    e_c: complex (B, M); w_big: real (M, 2Ci, 2Co) packed complex weight.
    """
    B, H, W, Ci = x_nhwc.shape
    M = w_big.shape[0]
    Co = w_big.shape[2] // 2
    # TODO(synk): rfft/irfft stay on XLA's FFT (no Pallas equivalent).
    x_ft = jnp.fft.rfft(x_nhwc.astype(jnp.float32), axis=axis, norm="ortho")
    F = x_ft.shape[axis]
    if axis == 2:
        rep = H
        z = x_ft[:, :, :M, :] * e_c[:, None, :, None]            # (B,H,M,Ci) cplx
        z = jnp.transpose(z, (2, 0, 1, 3)).reshape(M, B * rep, Ci)
    else:
        rep = W
        z = x_ft[:, :M, :, :] * e_c[:, :, None, None]            # (B,M,W,Ci) cplx
        z = jnp.transpose(z, (1, 0, 2, 3)).reshape(M, B * rep, Ci)
    zri = jnp.concatenate([jnp.real(z), jnp.imag(z)], axis=-1)    # (M, N, 2Ci)
    mix = spectral_mix_pallas(zri, w_big)                         # (M, N, 2Co)
    out_c = jax.lax.complex(mix[..., :Co], mix[..., Co:])         # (M, N, Co)
    if axis == 2:
        out_c = jnp.transpose(out_c.reshape(M, B, rep, Co), (1, 2, 0, 3))
        out_ft = jnp.pad(out_c, ((0, 0), (0, 0), (0, F - M), (0, 0)))
        return jnp.fft.irfft(out_ft, n=W, axis=2, norm="ortho")   # (B,H,W,Co)
    else:
        out_c = jnp.transpose(out_c.reshape(M, B, rep, Co), (1, 0, 2, 3))
        out_ft = jnp.pad(out_c, ((0, 0), (0, F - M), (0, 0), (0, 0)))
        return jnp.fft.irfft(out_ft, n=H, axis=1, norm="ortho")   # (B,H,W,Co)


def fno_block(x_nhwc, emb, p):
    """FactorFNO2dBlock forward (freqlinear=True, wp_mult=False), channels-last."""
    B, H, W, C = x_nhwc.shape
    M1 = p["w1_big"].shape[0]
    M2 = p["w2_big"].shape[0]
    Co = p["w1_big"].shape[2] // 2

    # Both FreqLinear projections in a single fused matmul.
    e_all = matmul_bias(emb, p["fl_w"], p["fl_b"])                # (B, 2M1+2M2)
    e1 = e_all[:, : 2 * M1].reshape(B, M1, 2)
    e1 = jax.lax.complex(e1[..., 0], e1[..., 1])                  # (B, M1)
    e2 = e_all[:, 2 * M1:].reshape(B, M2, 2)
    e2 = jax.lax.complex(e2[..., 0], e2[..., 1])                  # (B, M2)

    # torch quirk preserved: xx uses cond_emb1 with weight_2 (dim=-1),
    #                        xy uses cond_emb2 with weight_1 (dim=-2).
    xx = _spectral_branch(x_nhwc, e1, p["w2_big"], axis=2)
    xy = _spectral_branch(x_nhwc, e2, p["w1_big"], axis=1)

    N = B * H * W
    out = block_tail_pallas(
        xx.reshape(N, Co), xy.reshape(N, Co), x_nhwc.reshape(N, C),
        p["ff_w1"], p["ff_b1"], p["ln_g"], p["ln_b"], p["ff_w2"], p["ff_b2"])
    return out.reshape(B, H, W, Co)


def factor_fno2d_forward(params, x, wavelength, dl):
    del dl  # unused when wave_prior=False
    B, Cin, H, W = x.shape
    # NCHW -> channels-last once; stay channels-last until the head output.
    xf = jnp.transpose(x, (0, 2, 3, 1)).reshape(B * H * W, Cin)
    xf = stem_pallas(xf, params["stem_w"], params["stem_b"])      # (N, DIM)
    x_nhwc = xf.reshape(B, H, W, DIM)

    # conditioning (freqlinear=True): fourier features -> fused MLP (GELU in-kernel)
    wvl = (wavelength - 0.4) / (0.7 - 0.4)                        # (B, 1)
    emb0 = fourier_embedding(wvl[:, 0], DIM)                      # (B, DIM)
    emb = cond_mlp_pallas(emb0, params["ce_w1"], params["ce_b1"],
                          params["ce_w2"], params["ce_b2"])       # (B, COND_CH)

    for blk in params["blocks"]:
        x_nhwc = fno_block(x_nhwc, emb, blk)

    # head: two 1x1 convs fused into one kernel
    N = B * H * W
    yf = head_pallas(x_nhwc.reshape(N, x_nhwc.shape[-1]),
                     params["head_w1"], params["head_b1"],
                     params["head_w2"], params["head_b2"])        # (N, OUT_CH)
    return jnp.transpose(yf.reshape(B, H, W, OUT_CH), (0, 3, 1, 2))


# ----------------------------- deterministic parameter init --------------------
def _uniform(key, shape, fan_in):
    bound = 1.0 / math.sqrt(fan_in)
    return jax.random.uniform(key, shape, jnp.float32, -bound, bound)


def pack_spectral_weight(w_r, w_i):
    """(Ci, Co, M) real/imag -> (M, 2Ci, 2Co) real matrix such that
    [Re(z) | Im(z)] @ W == [Re(z@w) | Im(z@w)]."""
    wr = jnp.transpose(w_r, (2, 0, 1))               # (M, Ci, Co)
    wi = jnp.transpose(w_i, (2, 0, 1))
    top = jnp.concatenate([wr, wi], axis=-1)         # (M, Ci, 2Co)
    bot = jnp.concatenate([-wi, wr], axis=-1)        # (M, Ci, 2Co)
    return jnp.concatenate([top, bot], axis=1)       # (M, 2Ci, 2Co)


def init_params(key):
    keys = iter(jax.random.split(key, 128))
    p = {}
    p["stem_w"] = _uniform(next(keys), (IN_CH, DIM), IN_CH)
    p["stem_b"] = _uniform(next(keys), (DIM,), IN_CH)
    p["ce_w1"] = _uniform(next(keys), (DIM, COND_CH), DIM)
    p["ce_b1"] = _uniform(next(keys), (COND_CH,), DIM)
    p["ce_w2"] = _uniform(next(keys), (COND_CH, COND_CH), COND_CH)
    p["ce_b2"] = _uniform(next(keys), (COND_CH,), COND_CH)

    blocks = []
    kl = [DIM] + KERNEL_LIST
    for inc, outc, (m1, m2) in zip(kl[:-1], kl[1:], MODE_LIST):
        blk = {}
        # FreqLinear weights: scale * randn, zero bias; fl1 and fl2 concatenated.
        s1 = 1.0 / (COND_CH + 4 * m1)
        fl1_w = s1 * jax.random.normal(next(keys), (COND_CH, 2 * m1), jnp.float32)
        s2 = 1.0 / (COND_CH + 4 * m2)
        fl2_w = s2 * jax.random.normal(next(keys), (COND_CH, 2 * m2), jnp.float32)
        blk["fl_w"] = jnp.concatenate([fl1_w, fl2_w], axis=1)
        blk["fl_b"] = jnp.zeros((2 * m1 + 2 * m2,), jnp.float32)
        # spectral weights: kaiming-normal real part, zero imaginary part,
        # stored pre-packed in the fused complex-as-real layout.
        std1 = math.sqrt(2.0 / (outc * m1))
        w1_r = std1 * jax.random.normal(next(keys), (inc, outc, m1), jnp.float32)
        w1_i = jnp.zeros((inc, outc, m1), jnp.float32)
        std2 = math.sqrt(2.0 / (outc * m2))
        w2_r = std2 * jax.random.normal(next(keys), (inc, outc, m2), jnp.float32)
        w2_i = jnp.zeros((inc, outc, m2), jnp.float32)
        blk["w1_big"] = pack_spectral_weight(w1_r, w1_i)     # (m1, 2*inc, 2*outc)
        blk["w2_big"] = pack_spectral_weight(w2_r, w2_i)     # (m2, 2*inc, 2*outc)
        # ff MLP (expansion = 2)
        E = outc * 2
        blk["ff_w1"] = _uniform(next(keys), (outc, E), outc)
        blk["ff_b1"] = _uniform(next(keys), (E,), outc)
        blk["ln_g"] = jnp.ones((E,), jnp.float32)
        blk["ln_b"] = jnp.zeros((E,), jnp.float32)
        blk["ff_w2"] = _uniform(next(keys), (E, outc), E)
        blk["ff_b2"] = _uniform(next(keys), (outc,), E)
        blocks.append(blk)
    p["blocks"] = blocks

    # head (hidden_list=[16]): exactly two 1x1 convs -> one fused kernel.
    hl = [KERNEL_LIST[-1]] + HIDDEN_LIST
    p["head_w1"] = _uniform(next(keys), (hl[0], hl[1]), hl[0])
    p["head_b1"] = _uniform(next(keys), (hl[1],), hl[0])
    p["head_w2"] = _uniform(next(keys), (hl[1], OUT_CH), hl[1])
    p["head_b2"] = _uniform(next(keys), (OUT_CH,), hl[1])
    return p


# ----------------------------- main --------------------------------------------
if __name__ == "__main__":
    B, H, W = 2, 16, 16
    key = jax.random.PRNGKey(0)
    kx, kw, kp = jax.random.split(key, 3)
    x = jax.random.normal(kx, (B, IN_CH, H, W), jnp.float32)
    wavelength = jax.random.uniform(kw, (B, 1), jnp.float32, 0.4, 0.7)
    dl = jnp.full((B, 1), 0.05, jnp.float32)

    params = init_params(kp)
    fwd = jax.jit(factor_fno2d_forward)
    out = fwd(params, x, wavelength, dl)
    jax.block_until_ready(out)
    assert out.shape == (B, OUT_CH, H, W), out.shape
    assert bool(jnp.all(jnp.isfinite(out)))
    print("KERNEL_OK")
</pallas_src>

<mosaic_0001>
module attributes {stable_mosaic.version = 11 : i64} {
  func.func @_stem_kernel(%arg0: i32, %arg1: memref<512x1xf32, #tpu.memory_space<vmem>>, %arg2: memref<1x8xf32, #tpu.memory_space<vmem>>, %arg3: memref<1x8xf32, #tpu.memory_space<vmem>>, %arg4: memref<512x8xf32, #tpu.memory_space<vmem>>) attributes {dimension_semantics = [#tpu.dimension_semantics<parallel>], iteration_bounds = array<i64: 1>, scalar_prefetch = 0 : i64, scratch_operands = 0 : i64, tpu.core_type = #tpu.core_type<tc>, window_params = [{transform_indices = @transform_0, window_bounds = array<i64: 512, 1>}, {pipeline_mode = #tpu.pipeline_mode<synchronous>, transform_indices = @transform_1, window_bounds = array<i64: 1, 8>}, {pipeline_mode = #tpu.pipeline_mode<synchronous>, transform_indices = @transform_2, window_bounds = array<i64: 1, 8>}, {transform_indices = @transform_3, window_bounds = array<i64: 512, 8>}]} {
    %c0 = arith.constant 0 : index
    %c0_0 = arith.constant 0 : index
    %0 = vector.load %arg1[%c0, %c0_0] : memref<512x1xf32, #tpu.memory_space<vmem>>, vector<512x1xf32>
    %c0_1 = arith.constant 0 : index
    %c0_2 = arith.constant 0 : index
    %1 = vector.load %arg2[%c0_1, %c0_2] : memref<1x8xf32, #tpu.memory_space<vmem>>, vector<1x8xf32>
    %2 = vector.broadcast %0 : vector<512x1xf32> to vector<512x8xf32>
    %3 = vector.broadcast %1 : vector<1x8xf32> to vector<512x8xf32>
    %4 = arith.mulf %2, %3 : vector<512x8xf32>
    %c0_3 = arith.constant 0 : index
    %c0_4 = arith.constant 0 : index
    %5 = vector.load %arg3[%c0_3, %c0_4] : memref<1x8xf32, #tpu.memory_space<vmem>>, vector<1x8xf32>
    %6 = vector.broadcast %5 : vector<1x8xf32> to vector<512x8xf32>
    %7 = arith.addf %4, %6 : vector<512x8xf32>
    %c0_5 = arith.constant 0 : index
    %c0_6 = arith.constant 0 : index
    %8 = vector.load %arg4[%c0_5, %c0_6] : memref<512x8xf32, #tpu.memory_space<vmem>>, vector<512x8xf32>
    tpu.vector_store %arg4[%c0_5, %c0_6], %7 {strides = array<i32>} : memref<512x8xf32, #tpu.memory_space<vmem>>, vector<512x8xf32>,
    return
  }
  func.func @transform_0(%arg0: i32) -> (i32, i32) {
    %c0_i32 = arith.constant 0 : i32
    %c0_i32_0 = arith.constant 0 : i32
    return %arg0, %c0_i32 : i32, i32
  }
  func.func @transform_1(%arg0: i32) -> (i32, i32) {
    %c0_i32 = arith.constant 0 : i32
    %c0_i32_0 = arith.constant 0 : i32
    %c0_i32_1 = arith.constant 0 : i32
    return %c0_i32, %c0_i32_0 : i32, i32
  }
  func.func @transform_2(%arg0: i32) -> (i32, i32) {
    %c0_i32 = arith.constant 0 : i32
    %c0_i32_0 = arith.constant 0 : i32
    %c0_i32_1 = arith.constant 0 : i32
    return %c0_i32, %c0_i32_0 : i32, i32
  }
  func.func @transform_3(%arg0: i32) -> (i32, i32) {
    %c0_i32 = arith.constant 0 : i32
    %c0_i32_0 = arith.constant 0 : i32
    return %arg0, %c0_i32 : i32, i32
  }
}

module attributes {stable_mosaic.version = 11 : i64} {
  func.func @_cond_mlp_kernel(%arg0: i32, %arg1: memref<2x8xf32, #tpu.memory_space<vmem>>, %arg2: memref<8x32xf32, #tpu.memory_space<vmem>>, %arg3: memref<1x32xf32, #tpu.memory_space<vmem>>, %arg4: memref<32x32xf32, #tpu.memory_space<vmem>>, %arg5: memref<1x32xf32, #tpu.memory_space<vmem>>, %arg6: memref<2x32xf32, #tpu.memory_space<vmem>>) attributes {dimension_semantics = [#tpu.dimension_semantics<arbitrary>], iteration_bounds = array<i64: 1>, scalar_prefetch = 0 : i64, scratch_operands = 0 : i64, tpu.core_type = #tpu.core_type<tc>, window_params = [{pipeline_mode = #tpu.pipeline_mode<synchronous>, transform_indices = @transform_0, window_bounds = array<i64: 2, 8>}, {pipeline_mode = #tpu.pipeline_mode<synchronous>, transform_indices = @transform_1, window_bounds = array<i64: 8, 32>}, {pipeline_mode = #tpu.pipeline_mode<synchronous>, transform_indices = @transform_2, window_bounds = array<i64: 1, 32>}, {pipeline_mode = #tpu.pipeline_mode<synchronous>, transform_indices = @transform_3, window_bounds = array<i64: 32, 32>}, {pipeline_mode = #tpu.pipeline_mode<synchronous>, transform_indices = @transform_4, window_bounds = array<i64: 1, 32>}, {pipeline_mode = #tpu.pipeline_mode<synchronous>, transform_indices = @transform_5, window_bounds = array<i64: 2, 32>}]} {
    %c0 = arith.constant 0 : index
    %c0_0 = arith.constant 0 : index
    %0 = vector.load %arg1[%c0, %c0_0] : memref<2x8xf32, #tpu.memory_space<vmem>>, vector<2x8xf32>
    %c0_1 = arith.constant 0 : index
    %c0_2 = arith.constant 0 : index
    %1 = vector.load %arg2[%c0_1, %c0_2] : memref<8x32xf32, #tpu.memory_space<vmem>>, vector<8x32xf32>
    %cst = arith.constant dense<0.000000e+00> : vector<2x32xf32>
    %2 = tpu.matmul %0, %1, %cst {dimension_numbers = #tpu.dot_dimension_numbers<[1], [0], [0], [1], [0, 0, 1, 1], [], []>} : vector<2x8xf32>, vector<8x32xf32>, vector<2x32xf32> -> vector<2x32xf32>
    %c0_3 = arith.constant 0 : index
    %c0_4 = arith.constant 0 : index
    %3 = vector.load %arg3[%c0_3, %c0_4] : memref<1x32xf32, #tpu.memory_space<vmem>>, vector<1x32xf32>
    %4 = vector.broadcast %3 : vector<1x32xf32> to vector<2x32xf32>
    %5 = arith.addf %2, %4 : vector<2x32xf32>
    %cst_5 = arith.constant 5.000000e-01 : f32
    %6 = vector.broadcast %cst_5 : f32 to vector<2x32xf32>
    %7 = arith.mulf %6, %5 : vector<2x32xf32>
    %cst_6 = arith.constant 0.707106769 : f32
    %8 = vector.broadcast %cst_6 : f32 to vector<2x32xf32>
    %9 = arith.mulf %5, %8 : vector<2x32xf32>
    %10 = math.absf %9 : vector<2x32xf32>
    %cst_7 = arith.constant 0.327591091 : f32
    %11 = vector.broadcast %cst_7 : f32 to vector<2x32xf32>
    %12 = arith.mulf %11, %10 : vector<2x32xf32>
    %cst_8 = arith.constant 1.000000e+00 : f32
    %13 = vector.broadcast %cst_8 : f32 to vector<2x32xf32>
    %14 = arith.addf %13, %12 : vector<2x32xf32>
    %cst_9 = arith.constant 1.000000e+00 : f32
    %15 = vector.broadcast %cst_9 : f32 to vector<2x32xf32>
    %16 = arith.divf %15, %14 : vector<2x32xf32>
    %cst_10 = arith.constant 1.06140542 : f32
    %17 = vector.broadcast %cst_10 : f32 to vector<2x32xf32>
    %18 = arith.mulf %17, %16 : vector<2x32xf32>
    %cst_11 = arith.constant -1.45315206 : f32
    %19 = vector.broadcast %cst_11 : f32 to vector<2x32xf32>
    %20 = arith.addf %18, %19 : vector<2x32xf32>
    %21 = arith.mulf %20, %16 : vector<2x32xf32>
    %cst_12 = arith.constant 1.42141378 : f32
    %22 = vector.broadcast %cst_12 : f32 to vector<2x32xf32>
    %23 = arith.addf %21, %22 : vector<2x32xf32>
    %24 = arith.mulf %23, %16 : vector<2x32xf32>
    %cst_13 = arith.constant -0.284496725 : f32
    %25 = vector.broadcast %cst_13 : f32 to vector<2x32xf32>
    %26 = arith.addf %24, %25 : vector<2x32xf32>
    %27 = arith.mulf %26, %16 : vector<2x32xf32>
    %cst_14 = arith.constant 0.254829586 : f32
    %28 = vector.broadcast %cst_14 : f32 to vector<2x32xf32>
    %29 = arith.addf %27, %28 : vector<2x32xf32>
    %30 = arith.mulf %29, %16 : vector<2x32xf32>
    %cst_15 = arith.constant 0.000000e+00 : f32
    %31 = vector.broadcast %cst_15 : f32 to vector<2x32xf32>
    %32 = arith.subf %31, %10 : vector<2x32xf32>
    %33 = arith.mulf %32, %10 : vector<2x32xf32>
    %34 = math.exp %33 : vector<2x32xf32>
    %35 = arith.mulf %30, %34 : vector<2x32xf32>
    %cst_16 = arith.constant 1.000000e+00 : f32
    %36 = vector.broadcast %cst_16 : f32 to vector<2x32xf32>
    %37 = arith.subf %36, %35 : vector<2x32xf32>
    %cst_17 = arith.constant 0.000000e+00 : f32
    %38 = vector.broadcast %cst_17 : f32 to vector<2x32xf32>
    %39 = arith.cmpf olt, %9, %38 : vector<2x32xf32>
    %cst_18 = arith.constant 0.000000e+00 : f32
    %40 = vector.broadcast %cst_18 : f32 to vector<2x32xf32>
    %41 = arith.subf %40, %37 : vector<2x32xf32>
    %42 = arith.select %39, %41, %37 : vector<2x32xi1>, vector<2x32xf32>
    %cst_19 = arith.constant 1.000000e+00 : f32
    %43 = vector.broadcast %cst_19 : f32 to vector<2x32xf32>
    %44 = arith.addf %43, %42 : vector<2x32xf32>
    %45 = arith.mulf %7, %44 : vector<2x32xf32>
    %c0_20 = arith.constant 0 : index
    %c0_21 = arith.constant 0 : index
    %46 = vector.load %arg4[%c0_20, %c0_21] : memref<32x32xf32, #tpu.memory_space<vmem>>, vector<32x32xf32>
    %cst_22 = arith.constant dense<0.000000e+00> : vector<2x32xf32>
    %47 = tpu.matmul %45, %46, %cst_22 {dimension_numbers = #tpu.dot_dimension_numbers<[1], [0], [0], [1], [0, 0, 1, 1], [], []>} : vector<2x32xf32>, vector<32x32xf32>, vector<2x32xf32> -> vector<2x32xf32>
    %c0_23 = arith.constant 0 : index
    %c0_24 = arith.constant 0 : index
    %48 = vector.load %arg5[%c0_23, %c0_24] : memref<1x32xf32, #tpu.memory_space<vmem>>, vector<1x32xf32>
    %49 = vector.broadcast %48 : vector<1x32xf32> to vector<2x32xf32>
    %50 = arith.addf %47, %49 : vector<2x32xf32>
    %c0_25 = arith.constant 0 : index
    %c0_26 = arith.constant 0 : index
    %51 = vector.load %arg6[%c0_25, %c0_26] : memref<2x32xf32, #tpu.memory_space<vmem>>, vector<2x32xf32>
    tpu.vector_store %arg6[%c0_25, %c0_26], %50 {strides = array<i32>} : memref<2x32xf32, #tpu.memory_space<vmem>>, vector<2x32xf32>,
    return
  }
  func.func @transform_0(%arg0: i32) -> (i32, i32) {
    %c0_i32 = arith.constant 0 : i32
    %c0_i32_0 = arith.constant 0 : i32
    %c0_i32_1 = arith.constant 0 : i32
    return %c0_i32, %c0_i32_0 : i32, i32
  }
  func.func @transform_1(%arg0: i32) -> (i32, i32) {
    %c0_i32 = arith.constant 0 : i32
    %c0_i32_0 = arith.constant 0 : i32
    %c0_i32_1 = arith.constant 0 : i32
    return %c0_i32, %c0_i32_0 : i32, i32
  }
  func.func @transform_2(%arg0: i32) -> (i32, i32) {
    %c0_i32 = arith.constant 0 : i32
    %c0_i32_0 = arith.constant 0 : i32
    %c0_i32_1 = arith.constant 0 : i32
    return %c0_i32, %c0_i32_0 : i32, i32
  }
  func.func @transform_3(%arg0: i32) -> (i32, i32) {
    %c0_i32 = arith.constant 0 : i32
    %c0_i32_0 = arith.constant 0 : i32
    %c0_i32_1 = arith.constant 0 : i32
    return %c0_i32, %c0_i32_0 : i32, i32
  }
  func.func @transform_4(%arg0: i32) -> (i32, i32) {
    %c0_i32 = arith.constant 0 : i32
    %c0_i32_0 = arith.constant 0 : i32
    %c0_i32_1 = arith.constant 0 : i32
    return %c0_i32, %c0_i32_0 : i32, i32
  }
  func.func @transform_5(%arg0: i32) -> (i32, i32) {
    %c0_i32 = arith.constant 0 : i32
    %c0_i32_0 = arith.constant 0 : i32
    %c0_i32_1 = arith.constant 0 : i32
    return %c0_i32, %c0_i32_0 : i32, i32
  }
}

module attributes {stable_mosaic.version = 11 : i64} {
  func.func @_matmul_bias_kernel(%arg0: i32, %arg1: memref<2x32xf32, #tpu.memory_space<vmem>>, %arg2: memref<32x24xf32, #tpu.memory_space<vmem>>, %arg3: memref<1x24xf32, #tpu.memory_space<vmem>>, %arg4: memref<2x24xf32, #tpu.memory_space<vmem>>) attributes {dimension_semantics = [#tpu.dimension_semantics<parallel>], iteration_bounds = array<i64: 1>, scalar_prefetch = 0 : i64, scratch_operands = 0 : i64, tpu.core_type = #tpu.core_type<tc>, window_params = [{transform_indices = @transform_0, window_bounds = array<i64: 2, 32>}, {pipeline_mode = #tpu.pipeline_mode<synchronous>, transform_indices = @transform_1, window_bounds = array<i64: 32, 24>}, {pipeline_mode = #tpu.pipeline_mode<synchronous>, transform_indices = @transform_2, window_bounds = array<i64: 1, 24>}, {transform_indices = @transform_3, window_bounds = array<i64: 2, 24>}]} {
    %c0 = arith.constant 0 : index
    %c0_0 = arith.constant 0 : index
    %0 = vector.load %arg1[%c0, %c0_0] : memref<2x32xf32, #tpu.memory_space<vmem>>, vector<2x32xf32>
    %c0_1 = arith.constant 0 : index
    %c0_2 = arith.constant 0 : index
    %1 = vector.load %arg2[%c0_1, %c0_2] : memref<32x24xf32, #tpu.memory_space<vmem>>, vector<32x24xf32>
    %cst = arith.constant dense<0.000000e+00> : vector<2x24xf32>
    %2 = tpu.matmul %0, %1, %cst {dimension_numbers = #tpu.dot_dimension_numbers<[1], [0], [0], [1], [0, 0, 1, 1], [], []>} : vector<2x32xf32>, vector<32x24xf32>, vector<2x24xf32> -> vector<2x24xf32>
    %c0_3 = arith.constant 0 : index
    %c0_4 = arith.constant 0 : index
    %3 = vector.load %arg3[%c0_3, %c0_4] : memref<1x24xf32, #tpu.memory_space<vmem>>, vector<1x24xf32>
    %4 = vector.broadcast %3 : vector<1x24xf32> to vector<2x24xf32>
    %5 = arith.addf %2, %4 : vector<2x24xf32>
    %c0_5 = arith.constant 0 : index
    %c0_6 = arith.constant 0 : index
    %6 = vector.load %arg4[%c0_5, %c0_6] : memref<2x24xf32, #tpu.memory_space<vmem>>, vector<2x24xf32>
    tpu.vector_store %arg4[%c0_5, %c0_6], %5 {strides = array<i32>} : memref<2x24xf32, #tpu.memory_space<vmem>>, vector<2x24xf32>,
    return
  }
  func.func @transform_0(%arg0: i32) -> (i32, i32) {
    %c0_i32 = arith.constant 0 : i32
    %c0_i32_0 = arith.constant 0 : i32
    return %arg0, %c0_i32 : i32, i32
  }
  func.func @transform_1(%arg0: i32) -> (i32, i32) {
    %c0_i32 = arith.constant 0 : i32
    %c0_i32_0 = arith.constant 0 : i32
    %c0_i32_1 = arith.constant 0 : i32
    return %c0_i32, %c0_i32_0 : i32, i32
  }
  func.func @transform_2(%arg0: i32) -> (i32, i32) {
    %c0_i32 = arith.constant 0 : i32
    %c0_i32_0 = arith.constant 0 : i32
    %c0_i32_1 = arith.constant 0 : i32
    return %c0_i32, %c0_i32_0 : i32, i32
  }
  func.func @transform_3(%arg0: i32) -> (i32, i32) {
    %c0_i32 = arith.constant 0 : i32
    %c0_i32_0 = arith.constant 0 : i32
    return %arg0, %c0_i32 : i32, i32
  }
}

module attributes {stable_mosaic.version = 11 : i64} {
  func.func @_spectral_mix_kernel(%arg0: i32, %arg1: memref<6x32x16xf32, #tpu.memory_space<vmem>>, %arg2: memref<6x16x16xf32, #tpu.memory_space<vmem>>, %arg3: memref<6x32x16xf32, #tpu.memory_space<vmem>>) attributes {dimension_semantics = [#tpu.dimension_semantics<arbitrary>], iteration_bounds = array<i64: 1>, scalar_prefetch = 0 : i64, scratch_operands = 0 : i64, tpu.core_type = #tpu.core_type<tc>, window_params = [{pipeline_mode = #tpu.pipeline_mode<synchronous>, transform_indices = @transform_0, window_bounds = array<i64: 6, 32, 16>}, {pipeline_mode = #tpu.pipeline_mode<synchronous>, transform_indices = @transform_1, window_bounds = array<i64: 6, 16, 16>}, {pipeline_mode = #tpu.pipeline_mode<synchronous>, transform_indices = @transform_2, window_bounds = array<i64: 6, 32, 16>}]} {
    %c0 = arith.constant 0 : index
    %c0_0 = arith.constant 0 : index
    %c0_1 = arith.constant 0 : index
    %0 = vector.load %arg1[%c0, %c0_0, %c0_1] : memref<6x32x16xf32, #tpu.memory_space<vmem>>, vector<6x32x16xf32>
    %c0_2 = arith.constant 0 : index
    %c0_3 = arith.constant 0 : index
    %c0_4 = arith.constant 0 : index
    %1 = vector.load %arg2[%c0_2, %c0_3, %c0_4] : memref<6x16x16xf32, #tpu.memory_space<vmem>>, vector<6x16x16xf32>
    %cst = arith.constant dense<0.000000e+00> : vector<6x32x16xf32>
    %2 = tpu.matmul %0, %1, %cst {dimension_numbers = #tpu.dot_dimension_numbers<[2], [1], [1], [2], [0, 0, 0, 1, 1, 2], [0], [0]>} : vector<6x32x16xf32>, vector<6x16x16xf32>, vector<6x32x16xf32> -> vector<6x32x16xf32>
    %c0_5 = arith.constant 0 : index
    %c0_6 = arith.constant 0 : index
    %c0_7 = arith.constant 0 : index
    %3 = vector.load %arg3[%c0_5, %c0_6, %c0_7] : memref<6x32x16xf32, #tpu.memory_space<vmem>>, vector<6x32x16xf32>
    tpu.vector_store %arg3[%c0_5, %c0_6, %c0_7], %2 {strides = array<i32>} : memref<6x32x16xf32, #tpu.memory_space<vmem>>, vector<6x32x16xf32>,
    return
  }
  func.func @transform_0(%arg0: i32) -> (i32, i32, i32) {
    %c0_i32 = arith.constant 0 : i32
    %c0_i32_0 = arith.constant 0 : i32
    %c0_i32_1 = arith.constant 0 : i32
    %c0_i32_2 = arith.constant 0 : i32
    return %c0_i32, %c0_i32_0, %c0_i32_1 : i32, i32, i32
  }
  func.func @transform_1(%arg0: i32) -> (i32, i32, i32) {
    %c0_i32 = arith.constant 0 : i32
    %c0_i32_0 = arith.constant 0 : i32
    %c0_i32_1 = arith.constant 0 : i32
    %c0_i32_2 = arith.constant 0 : i32
    return %c0_i32, %c0_i32_0, %c0_i32_1 : i32, i32, i32
  }
  func.func @transform_2(%arg0: i32) -> (i32, i32, i32) {
    %c0_i32 = arith.constant 0 : i32
    %c0_i32_0 = arith.constant 0 : i32
    %c0_i32_1 = arith.constant 0 : i32
    %c0_i32_2 = arith.constant 0 : i32
    return %c0_i32, %c0_i32_0, %c0_i32_1 : i32, i32, i32
  }
}

module attributes {stable_mosaic.version = 11 : i64} {
  func.func @_head_kernel(%arg0: i32, %arg1: memref<512x8xf32, #tpu.memory_space<vmem>>, %arg2: memref<8x16xf32, #tpu.memory_space<vmem>>, %arg3: memref<1x16xf32, #tpu.memory_space<vmem>>, %arg4: memref<16x2xf32, #tpu.memory_space<vmem>>, %arg5: memref<1x2xf32, #tpu.memory_space<vmem>>, %arg6: memref<512x2xf32, #tpu.memory_space<vmem>>) attributes {dimension_semantics = [#tpu.dimension_semantics<parallel>], iteration_bounds = array<i64: 1>, scalar_prefetch = 0 : i64, scratch_operands = 0 : i64, tpu.core_type = #tpu.core_type<tc>, window_params = [{transform_indices = @transform_0, window_bounds = array<i64: 512, 8>}, {pipeline_mode = #tpu.pipeline_mode<synchronous>, transform_indices = @transform_1, window_bounds = array<i64: 8, 16>}, {pipeline_mode = #tpu.pipeline_mode<synchronous>, transform_indices = @transform_2, window_bounds = array<i64: 1, 16>}, {pipeline_mode = #tpu.pipeline_mode<synchronous>, transform_indices = @transform_3, window_bounds = array<i64: 16, 2>}, {pipeline_mode = #tpu.pipeline_mode<synchronous>, transform_indices = @transform_4, window_bounds = array<i64: 1, 2>}, {transform_indices = @transform_5, window_bounds = array<i64: 512, 2>}]} {
    %c0 = arith.constant 0 : index
    %c0_0 = arith.constant 0 : index
    %0 = vector.load %arg1[%c0, %c0_0] : memref<512x8xf32, #tpu.memory_space<vmem>>, vector<512x8xf32>
    %c0_1 = arith.constant 0 : index
    %c0_2 = arith.constant 0 : index
    %1 = vector.load %arg2[%c0_1, %c0_2] : memref<8x16xf32, #tpu.memory_space<vmem>>, vector<8x16xf32>
    %cst = arith.constant dense<0.000000e+00> : vector<512x16xf32>
    %2 = tpu.matmul %0, %1, %cst {dimension_numbers = #tpu.dot_dimension_numbers<[1], [0], [0], [1], [0, 0, 1, 1], [], []>} : vector<512x8xf32>, vector<8x16xf32>, vector<512x16xf32> -> vector<512x16xf32>
    %c0_3 = arith.constant 0 : index
    %c0_4 = arith.constant 0 : index
    %3 = vector.load %arg3[%c0_3, %c0_4] : memref<1x16xf32, #tpu.memory_space<vmem>>, vector<1x16xf32>
    %4 = vector.broadcast %3 : vector<1x16xf32> to vector<512x16xf32>
    %5 = arith.addf %2, %4 : vector<512x16xf32>
    %c0_5 = arith.constant 0 : index
    %c0_6 = arith.constant 0 : index
    %6 = vector.load %arg4[%c0_5, %c0_6] : memref<16x2xf32, #tpu.memory_space<vmem>>, vector<16x2xf32>
    %cst_7 = arith.constant dense<0.000000e+00> : vector<512x2xf32>
    %7 = tpu.matmul %5, %6, %cst_7 {dimension_numbers = #tpu.dot_dimension_numbers<[1], [0], [0], [1], [0, 0, 1, 1], [], []>} : vector<512x16xf32>, vector<16x2xf32>, vector<512x2xf32> -> vector<512x2xf32>
    %c0_8 = arith.constant 0 : index
    %c0_9 = arith.constant 0 : index
    %8 = vector.load %arg5[%c0_8, %c0_9] : memref<1x2xf32, #tpu.memory_space<vmem>>, vector<1x2xf32>
    %9 = vector.broadcast %8 : vector<1x2xf32> to vector<512x2xf32>
    %10 = arith.addf %7, %9 : vector<512x2xf32>
    %c0_10 = arith.constant 0 : index
    %c0_11 = arith.constant 0 : index
    %11 = vector.load %arg6[%c0_10, %c0_11] : memref<512x2xf32, #tpu.memory_space<vmem>>, vector<512x2xf32>
    tpu.vector_store %arg6[%c0_10, %c0_11], %10 {strides = array<i32>} : memref<512x2xf32, #tpu.memory_space<vmem>>, vector<512x2xf32>,
    return
  }
  func.func @transform_0(%arg0: i32) -> (i32, i32) {
    %c0_i32 = arith.constant 0 : i32
    %c0_i32_0 = arith.constant 0 : i32
    return %arg0, %c0_i32 : i32, i32
  }
  func.func @transform_1(%arg0: i32) -> (i32, i32) {
    %c0_i32 = arith.constant 0 : i32
    %c0_i32_0 = arith.constant 0 : i32
    %c0_i32_1 = arith.constant 0 : i32
    return %c0_i32, %c0_i32_0 : i32, i32
  }
  func.func @transform_2(%arg0: i32) -> (i32, i32) {
    %c0_i32 = arith.constant 0 : i32
    %c0_i32_0 = arith.constant 0 : i32
    %c0_i32_1 = arith.constant 0 : i32
    return %c0_i32, %c0_i32_0 : i32, i32
  }
  func.func @transform_3(%arg0: i32) -> (i32, i32) {
    %c0_i32 = arith.constant 0 : i32
    %c0_i32_0 = arith.constant 0 : i32
    %c0_i32_1 = arith.constant 0 : i32
    return %c0_i32, %c0_i32_0 : i32, i32
  }
  func.func @transform_4(%arg0: i32) -> (i32, i32) {
    %c0_i32 = arith.constant 0 : i32
    %c0_i32_0 = arith.constant 0 : i32
    %c0_i32_1 = arith.constant 0 : i32
    return %c0_i32, %c0_i32_0 : i32, i32
  }
  func.func @transform_5(%arg0: i32) -> (i32, i32) {
    %c0_i32 = arith.constant 0 : i32
    %c0_i32_0 = arith.constant 0 : i32
    return %arg0, %c0_i32 : i32, i32
  }
}

module attributes {stable_mosaic.version = 11 : i64} {
  func.func @_block_tail_kernel(%arg0: i32, %arg1: memref<512x8xf32, #tpu.memory_space<vmem>>, %arg2: memref<512x8xf32, #tpu.memory_space<vmem>>, %arg3: memref<512x8xf32, #tpu.memory_space<vmem>>, %arg4: memref<8x16xf32, #tpu.memory_space<vmem>>, %arg5: memref<1x16xf32, #tpu.memory_space<vmem>>, %arg6: memref<1x16xf32, #tpu.memory_space<vmem>>, %arg7: memref<1x16xf32, #tpu.memory_space<vmem>>, %arg8: memref<16x8xf32, #tpu.memory_space<vmem>>, %arg9: memref<1x8xf32, #tpu.memory_space<vmem>>, %arg10: memref<512x8xf32, #tpu.memory_space<vmem>>) attributes {dimension_semantics = [#tpu.dimension_semantics<parallel>], iteration_bounds = array<i64: 1>, scalar_prefetch = 0 : i64, scratch_operands = 0 : i64, tpu.core_type = #tpu.core_type<tc>, window_params = [{transform_indices = @transform_0, window_bounds = array<i64: 512, 8>}, {transform_indices = @transform_1, window_bounds = array<i64: 512, 8>}, {transform_indices = @transform_2, window_bounds = array<i64: 512, 8>}, {pipeline_mode = #tpu.pipeline_mode<synchronous>, transform_indices = @transform_3, window_bounds = array<i64: 8, 16>}, {pipeline_mode = #tpu.pipeline_mode<synchronous>, transform_indices = @transform_4, window_bounds = array<i64: 1, 16>}, {pipeline_mode = #tpu.pipeline_mode<synchronous>, transform_indices = @transform_5, window_bounds = array<i64: 1, 16>}, {pipeline_mode = #tpu.pipeline_mode<synchronous>, transform_indices = @transform_6, window_bounds = array<i64: 1, 16>}, {pipeline_mode = #tpu.pipeline_mode<synchronous>, transform_indices = @transform_7, window_bounds = array<i64: 16, 8>}, {pipeline_mode = #tpu.pipeline_mode<synchronous>, transform_indices = @transform_8, window_bounds = array<i64: 1, 8>}, {transform_indices = @transform_9, window_bounds = array<i64: 512, 8>}]} {
    %c0 = arith.constant 0 : index
    %c0_0 = arith.constant 0 : index
    %0 = vector.load %arg1[%c0, %c0_0] : memref<512x8xf32, #tpu.memory_space<vmem>>, vector<512x8xf32>
    %c0_1 = arith.constant 0 : index
    %c0_2 = arith.constant 0 : index
    %1 = vector.load %arg2[%c0_1, %c0_2] : memref<512x8xf32, #tpu.memory_space<vmem>>, vector<512x8xf32>
    %2 = arith.addf %0, %1 : vector<512x8xf32>
    %c0_3 = arith.constant 0 : index
    %c0_4 = arith.constant 0 : index
    %3 = vector.load %arg4[%c0_3, %c0_4] : memref<8x16xf32, #tpu.memory_space<vmem>>, vector<8x16xf32>
    %cst = arith.constant dense<0.000000e+00> : vector<512x16xf32>
    %4 = tpu.matmul %2, %3, %cst {dimension_numbers = #tpu.dot_dimension_numbers<[1], [0], [0], [1], [0, 0, 1, 1], [], []>} : vector<512x8xf32>, vector<8x16xf32>, vector<512x16xf32> -> vector<512x16xf32>
    %c0_5 = arith.constant 0 : index
    %c0_6 = arith.constant 0 : index
    %5 = vector.load %arg5[%c0_5, %c0_6] : memref<1x16xf32, #tpu.memory_space<vmem>>, vector<1x16xf32>
    %6 = vector.broadcast %5 : vector<1x16xf32> to vector<512x16xf32>
    %7 = arith.addf %4, %6 : vector<512x16xf32>
    %cst_7 = arith.constant 0.000000e+00 : f32
    %8 = vector.broadcast %cst_7 : f32 to vector<512x16xf32>
    %9 = arith.maximumf %7, %8 : vector<512x16xf32>
    %cst_8 = arith.constant dense<0.000000e+00> : vector<512xf32>
    %10 = vector.multi_reduction <add>, %9, %cst_8 [1] : vector<512x16xf32> to vector<512xf32>
    %11 = vector.shape_cast %10 : vector<512xf32> to vector<512x1xf32>
    %cst_9 = arith.constant 1.600000e+01 : f32
    %12 = vector.broadcast %cst_9 : f32 to vector<512x1xf32>
    %13 = arith.divf %11, %12 : vector<512x1xf32>
    %14 = vector.broadcast %13 : vector<512x1xf32> to vector<512x16xf32>
    %15 = arith.subf %9, %14 : vector<512x16xf32>
    %16 = vector.broadcast %13 : vector<512x1xf32> to vector<512x16xf32>
    %17 = arith.subf %9, %16 : vector<512x16xf32>
    %18 = arith.mulf %15, %17 : vector<512x16xf32>
    %cst_10 = arith.constant dense<0.000000e+00> : vector<512xf32>
    %19 = vector.multi_reduction <add>, %18, %cst_10 [1] : vector<512x16xf32> to vector<512xf32>
    %20 = vector.shape_cast %19 : vector<512xf32> to vector<512x1xf32>
    %cst_11 = arith.constant 1.600000e+01 : f32
    %21 = vector.broadcast %cst_11 : f32 to vector<512x1xf32>
    %22 = arith.divf %20, %21 : vector<512x1xf32>
    %23 = vector.broadcast %13 : vector<512x1xf32> to vector<512x16xf32>
    %24 = arith.subf %9, %23 : vector<512x16xf32>
    %cst_12 = arith.constant 9.99999974E-6 : f32
    %25 = vector.broadcast %cst_12 : f32 to vector<512x1xf32>
    %26 = arith.addf %22, %25 : vector<512x1xf32>
    %27 = math.rsqrt %26 : vector<512x1xf32>
    %28 = vector.broadcast %27 : vector<512x1xf32> to vector<512x16xf32>
    %29 = arith.mulf %24, %28 : vector<512x16xf32>
    %c0_13 = arith.constant 0 : index
    %c0_14 = arith.constant 0 : index
    %30 = vector.load %arg6[%c0_13, %c0_14] : memref<1x16xf32, #tpu.memory_space<vmem>>, vector<1x16xf32>
    %31 = vector.broadcast %30 : vector<1x16xf32> to vector<512x16xf32>
    %32 = arith.mulf %29, %31 : vector<512x16xf32>
    %c0_15 = arith.constant 0 : index
    %c0_16 = arith.constant 0 : index
    %33 = vector.load %arg7[%c0_15, %c0_16] : memref<1x16xf32, #tpu.memory_space<vmem>>, vector<1x16xf32>
    %34 = vector.broadcast %33 : vector<1x16xf32> to vector<512x16xf32>
    %35 = arith.addf %32, %34 : vector<512x16xf32>
    %c0_17 = arith.constant 0 : index
    %c0_18 = arith.constant 0 : index
    %36 = vector.load %arg8[%c0_17, %c0_18] : memref<16x8xf32, #tpu.memory_space<vmem>>, vector<16x8xf32>
    %cst_19 = arith.constant dense<0.000000e+00> : vector<512x8xf32>
    %37 = tpu.matmul %35, %36, %cst_19 {dimension_numbers = #tpu.dot_dimension_numbers<[1], [0], [0], [1], [0, 0, 1, 1], [], []>} : vector<512x16xf32>, vector<16x8xf32>, vector<512x8xf32> -> vector<512x8xf32>
    %c0_20 = arith.constant 0 : index
    %c0_21 = arith.constant 0 : index
    %38 = vector.load %arg9[%c0_20, %c0_21] : memref<1x8xf32, #tpu.memory_space<vmem>>, vector<1x8xf32>
    %39 = vector.broadcast %38 : vector<1x8xf32> to vector<512x8xf32>
    %40 = arith.addf %37, %39 : vector<512x8xf32>
    %c0_22 = arith.constant 0 : index
    %c0_23 = arith.constant 0 : index
    %41 = vector.load %arg3[%c0_22, %c0_23] : memref<512x8xf32, #tpu.memory_space<vmem>>, vector<512x8xf32>
    %42 = arith.addf %40, %41 : vector<512x8xf32>
    %c0_24 = arith.constant 0 : index
    %c0_25 = arith.constant 0 : index
    %43 = vector.load %arg10[%c0_24, %c0_25] : memref<512x8xf32, #tpu.memory_space<vmem>>, vector<512x8xf32>
    tpu.vector_store %arg10[%c0_24, %c0_25], %42 {strides = array<i32>} : memref<512x8xf32, #tpu.memory_space<vmem>>, vector<512x8xf32>,
    return
  }
  func.func @transform_0(%arg0: i32) -> (i32, i32) {
    %c0_i32 = arith.constant 0 : i32
    %c0_i32_0 = arith.constant 0 : i32
    return %arg0, %c0_i32 : i32, i32
  }
  func.func @transform_1(%arg0: i32) -> (i32, i32) {
    %c0_i32 = arith.constant 0 : i32
    %c0_i32_0 = arith.constant 0 : i32
    return %arg0, %c0_i32 : i32, i32
  }
  func.func @transform_2(%arg0: i32) -> (i32, i32) {
    %c0_i32 = arith.constant 0 : i32
    %c0_i32_0 = arith.constant 0 : i32
    return %arg0, %c0_i32 : i32, i32
  }
  func.func @transform_3(%arg0: i32) -> (i32, i32) {
    %c0_i32 = arith.constant 0 : i32
    %c0_i32_0 = arith.constant 0 : i32
    %c0_i32_1 = arith.constant 0 : i32
    return %c0_i32, %c0_i32_0 : i32, i32
  }
  func.func @transform_4(%arg0: i32) -> (i32, i32) {
    %c0_i32 = arith.constant 0 : i32
    %c0_i32_0 = arith.constant 0 : i32
    %c0_i32_1 = arith.constant 0 : i32
    return %c0_i32, %c0_i32_0 : i32, i32
  }
  func.func @transform_5(%arg0: i32) -> (i32, i32) {
    %c0_i32 = arith.constant 0 : i32
    %c0_i32_0 = arith.constant 0 : i32
    %c0_i32_1 = arith.constant 0 : i32
    return %c0_i32, %c0_i32_0 : i32, i32
  }
  func.func @transform_6(%arg0: i32) -> (i32, i32) {
    %c0_i32 = arith.constant 0 : i32
    %c0_i32_0 = arith.constant 0 : i32
    %c0_i32_1 = arith.constant 0 : i32
    return %c0_i32, %c0_i32_0 : i32, i32
  }
  func.func @transform_7(%arg0: i32) -> (i32, i32) {
    %c0_i32 = arith.constant 0 : i32
    %c0_i32_0 = arith.constant 0 : i32
    %c0_i32_1 = arith.constant 0 : i32
    return %c0_i32, %c0_i32_0 : i32, i32
  }
  func.func @transform_8(%arg0: i32) -> (i32, i32) {
    %c0_i32 = arith.constant 0 : i32
    %c0_i32_0 = arith.constant 0 : i32
    %c0_i32_1 = arith.constant 0 : i32
    return %c0_i32, %c0_i32_0 : i32, i32
  }
  func.func @transform_9(%arg0: i32) -> (i32, i32) {
    %c0_i32 = arith.constant 0 : i32
    %c0_i32_0 = arith.constant 0 : i32
    return %arg0, %c0_i32 : i32, i32
  }
}

</mosaic_0001>

<llo_original>
// kernel: factor_fno2d_forward.11
$region0: #{factor_fno2d_forward.11}
  #allocation0 [shape = 'u32[]', space=smem, size = 0x4, offset = 0x4, fixed_abs, tag = 'smem constant byte address 0x4 - core index']
  #allocation1 [shape = 'u32[72,128]{1,0:T(1,128)}', space=vmem, size = 0x9000, scoped, tag = 'internal scratch']
  %s0 = inlined_call_operand.vmem [shape: f32[512,1], index: 0, kind: input, shape index: {}]
  %s1 = inlined_call_operand.vmem [shape: f32[1,8], index: 1, kind: input, shape index: {}]
  %s2 = inlined_call_operand.vmem [shape: f32[1,8], index: 2, kind: input, shape index: {}]
  %s3 = inlined_call_operand.vmem [shape: f32[512,8], index: 3, kind: output, shape index: {}]
  %s4 = sld [smem:[#allocation0]]
  $region22: #{factor_fno2d_forward.11} parent=0
    _
  %s6 = ssub.s32 1, %s4
  %s7 = scalar_select 0, %s6, %s4
  // Predicated region
  $region2: #{factor_fno2d_forward.11} parent=0 // pred_check
    _
  $region3: #{factor_fno2d_forward.11} parent=0 // pred_check_branch
    %9 = sbr.rel (0) target = $region5
  $region4: #{factor_fno2d_forward.11} parent=0 // pred_region
    _
  $region5: #{factor_fno2d_forward.11} parent=0 // pred_fallthru
    _
  // Predicated region
  $region6: #{factor_fno2d_forward.11} parent=0 // pred_check
    _
  $region7: #{factor_fno2d_forward.11} parent=0 // pred_check_branch
    %11 = sbr.rel (0) target = $region9
  $region8: #{factor_fno2d_forward.11} parent=0 // pred_region
    _
  $region9: #{factor_fno2d_forward.11} parent=0 // pred_fallthru
    _
  // Predicated region
  $region10: #{factor_fno2d_forward.11} parent=0 // pred_check
    _
  $region11: #{factor_fno2d_forward.11} parent=0 // pred_check_branch
    %13 = sbr.rel (0) target = $region13
  $region12: #{factor_fno2d_forward.11} parent=0 // pred_region
    _
  $region13: #{factor_fno2d_forward.11} parent=0 // pred_fallthru
    _
  %v14 = vld [vmem:[%s0] sm:$0xff]
  %v15 = vld [vmem:[%s0 + $0x8] sm:$0xff]
  %v16 = vld [vmem:[%s0 + $0x10] sm:$0xff]
  %v17 = vld [vmem:[%s0 + $0x18] sm:$0xff]
  %v18 = vld [vmem:[%s0 + $0x20] sm:$0xff]
  %v19 = vld [vmem:[%s0 + $0x28] sm:$0xff]
  %v20 = vld [vmem:[%s0 + $0x30] sm:$0xff]
  %v21 = vld [vmem:[%s0 + $0x38] sm:$0xff]
  %v22 = vld [vmem:[%s0 + $0x40] sm:$0xff]
  %v23 = vld [vmem:[%s0 + $0x48] sm:$0xff]
  %v24 = vld [vmem:[%s0 + $0x50] sm:$0xff]
  %v25 = vld [vmem:[%s0 + $0x58] sm:$0xff]
  %v26 = vld [vmem:[%s0 + $0x60] sm:$0xff]
  %v27 = vld [vmem:[%s0 + $0x68] sm:$0xff]
  %v28 = vld [vmem:[%s0 + $0x70] sm:$0xff]
  %v29 = vld [vmem:[%s0 + $0x78] sm:$0xff]
  %v30 = vld [vmem:[%s0 + $0x80] sm:$0xff]
  %v31 = vld [vmem:[%s0 + $0x88] sm:$0xff]
  %v32 = vld [vmem:[%s0 + $0x90] sm:$0xff]
  %v33 = vld [vmem:[%s0 + $0x98] sm:$0xff]
  %v34 = vld [vmem:[%s0 + $0xa0] sm:$0xff]
  %v35 = vld [vmem:[%s0 + $0xa8] sm:$0xff]
  %v36 = vld [vmem:[%s0 + $0xb0] sm:$0xff]
  %v37 = vld [vmem:[%s0 + $0xb8] sm:$0xff]
  %v38 = vld [vmem:[%s0 + $0xc0] sm:$0xff]
  %v39 = vld [vmem:[%s0 + $0xc8] sm:$0xff]
  %v40 = vld [vmem:[%s0 + $0xd0] sm:$0xff]
  %v41 = vld [vmem:[%s0 + $0xd8] sm:$0xff]
  %v42 = vld [vmem:[%s0 + $0xe0] sm:$0xff]
  %v43 = vld [vmem:[%s0 + $0xe8] sm:$0xff]
  %v44 = vld [vmem:[%s0 + $0xf0] sm:$0xff]
  %v45 = vld [vmem:[%s0 + $0xf8] sm:$0xff]
  %v46 = vld [vmem:[%s0 + $0x100] sm:$0xff]
  %v47 = vld [vmem:[%s0 + $0x108] sm:$0xff]
  %v48 = vld [vmem:[%s0 + $0x110] sm:$0xff]
  %v49 = vld [vmem:[%s0 + $0x118] sm:$0xff]
  %v50 = vld [vmem:[%s0 + $0x120] sm:$0xff]
  %v51 = vld [vmem:[%s0 + $0x128] sm:$0xff]
  %v52 = vld [vmem:[%s0 + $0x130] sm:$0xff]
  %v53 = vld [vmem:[%s0 + $0x138] sm:$0xff]
  %v54 = vld [vmem:[%s0 + $0x140] sm:$0xff]
  %v55 = vld [vmem:[%s0 + $0x148] sm:$0xff]
  %v56 = vld [vmem:[%s0 + $0x150] sm:$0xff]
  %v57 = vld [vmem:[%s0 + $0x158] sm:$0xff]
  %v58 = vld [vmem:[%s0 + $0x160] sm:$0xff]
  %v59 = vld [vmem:[%s0 + $0x168] sm:$0xff]
  %v60 = vld [vmem:[%s0 + $0x170] sm:$0xff]
  %v61 = vld [vmem:[%s0 + $0x178] sm:$0xff]
  %v62 = vld [vmem:[%s0 + $0x180] sm:$0xff]
  %v63 = vld [vmem:[%s0 + $0x188] sm:$0xff]
  %v64 = vld [vmem:[%s0 + $0x190] sm:$0xff]
  %v65 = vld [vmem:[%s0 + $0x198] sm:$0xff]
  %v66 = vld [vmem:[%s0 + $0x1a0] sm:$0xff]
  %v67 = vld [vmem:[%s0 + $0x1a8] sm:$0xff]
  %v68 = vld [vmem:[%s0 + $0x1b0] sm:$0xff]
  %v69 = vld [vmem:[%s0 + $0x1b8] sm:$0xff]
  %v70 = vld [vmem:[%s0 + $0x1c0] sm:$0xff]
  %v71 = vld [vmem:[%s0 + $0x1c8] sm:$0xff]
  %v72 = vld [vmem:[%s0 + $0x1d0] sm:$0xff]
  %v73 = vld [vmem:[%s0 + $0x1d8] sm:$0xff]
  %v74 = vld [vmem:[%s0 + $0x1e0] sm:$0xff]
  %v75 = vld [vmem:[%s0 + $0x1e8] sm:$0xff]
  %v76 = vld [vmem:[%s0 + $0x1f0] sm:$0xff]
  %v77 = vld [vmem:[%s0 + $0x1f8] sm:$0xff]
  %v78 = vld [vmem:[%s1] sm:$0x1]
  %80 = vset.pattern.permute.xlu0 0
  %81 = vperm.xlu0 %80, %v14
  %v82 = vpop.permute.xlu0 %81
  %85 = vset.pattern.permute.xlu0 0
  %86 = vperm.xlu0 %85, %v15
  %v87 = vpop.permute.xlu0 %86
  %90 = vset.pattern.permute.xlu0 0
  %91 = vperm.xlu0 %90, %v16
  %v92 = vpop.permute.xlu0 %91
  %95 = vset.pattern.permute.xlu0 0
  %96 = vperm.xlu0 %95, %v17
  %v97 = vpop.permute.xlu0 %96
  %100 = vset.pattern.permute.xlu0 0
  %101 = vperm.xlu0 %100, %v18
  %v102 = vpop.permute.xlu0 %101
  %105 = vset.pattern.permute.xlu0 0
  %106 = vperm.xlu0 %105, %v19
  %v107 = vpop.permute.xlu0 %106
  %110 = vset.pattern.permute.xlu0 0
  %111 = vperm.xlu0 %110, %v20
  %v112 = vpop.permute.xlu0 %111
  %115 = vset.pattern.permute.xlu0 0
  %116 = vperm.xlu0 %115, %v21
  %v117 = vpop.permute.xlu0 %116
  %120 = vset.pattern.permute.xlu0 0
  %121 = vperm.xlu0 %120, %v22
  %v122 = vpop.permute.xlu0 %121
  %125 = vset.pattern.permute.xlu0 0
  %126 = vperm.xlu0 %125, %v23
  %v127 = vpop.permute.xlu0 %126
  %130 = vset.pattern.permute.xlu0 0
  %131 = vperm.xlu0 %130, %v24
  %v132 = vpop.permute.xlu0 %131
  %135 = vset.pattern.permute.xlu0 0
  %136 = vperm.xlu0 %135, %v25
  %v137 = vpop.permute.xlu0 %136
  %140 = vset.pattern.permute.xlu0 0
  %141 = vperm.xlu0 %140, %v26
  %v142 = vpop.permute.xlu0 %141
  %145 = vset.pattern.permute.xlu0 0
  %146 = vperm.xlu0 %145, %v27
  %v147 = vpop.permute.xlu0 %146
  %150 = vset.pattern.permute.xlu0 0
  %151 = vperm.xlu0 %150, %v28
  %v152 = vpop.permute.xlu0 %151
  %155 = vset.pattern.permute.xlu0 0
  %156 = vperm.xlu0 %155, %v29
  %v157 = vpop.permute.xlu0 %156
  %160 = vset.pattern.permute.xlu0 0
  %161 = vperm.xlu0 %160, %v30
  %v162 = vpop.permute.xlu0 %161
  %165 = vset.pattern.permute.xlu0 0
  %166 = vperm.xlu0 %165, %v31
  %v167 = vpop.permute.xlu0 %166
  %170 = vset.pattern.permute.xlu0 0
  %171 = vperm.xlu0 %170, %v32
  %v172 = vpop.permute.xlu0 %171
  %175 = vset.pattern.permute.xlu0 0
  %176 = vperm.xlu0 %175, %v33
  %v177 = vpop.permute.xlu0 %176
  %180 = vset.pattern.permute.xlu0 0
  %181 = vperm.xlu0 %180, %v34
  %v182 = vpop.permute.xlu0 %181
  %185 = vset.pattern.permute.xlu0 0
  %186 = vperm.xlu0 %185, %v35
  %v187 = vpop.permute.xlu0 %186
  %190 = vset.pattern.permute.xlu0 0
  %191 = vperm.xlu0 %190, %v36
  %v192 = vpop.permute.xlu0 %191
  %195 = vset.pattern.permute.xlu0 0
  %196 = vperm.xlu0 %195, %v37
  %v197 = vpop.permute.xlu0 %196
  %200 = vset.pattern.permute.xlu0 0
  %201 = vperm.xlu0 %200, %v38
  %v202 = vpop.permute.xlu0 %201
  %205 = vset.pattern.permute.xlu0 0
  %206 = vperm.xlu0 %205, %v39
  %v207 = vpop.permute.xlu0 %206
  %210 = vset.pattern.permute.xlu0 0
  %211 = vperm.xlu0 %210, %v40
  %v212 = vpop.permute.xlu0 %211
  %215 = vset.pattern.permute.xlu0 0
  %216 = vperm.xlu0 %215, %v41
  %v217 = vpop.permute.xlu0 %216
  %220 = vset.pattern.permute.xlu0 0
  %221 = vperm.xlu0 %220, %v42
  %v222 = vpop.permute.xlu0 %221
  %225 = vset.pattern.permute.xlu0 0
  %226 = vperm.xlu0 %225, %v43
  %v227 = vpop.permute.xlu0 %226
  %230 = vset.pattern.permute.xlu0 0
  %231 = vperm.xlu0 %230, %v44
  %v232 = vpop.permute.xlu0 %231
  %235 = vset.pattern.permute.xlu0 0
  %236 = vperm.xlu0 %235, %v45
  %v237 = vpop.permute.xlu0 %236
  %240 = vset.pattern.permute.xlu0 0
  %241 = vperm.xlu0 %240, %v46
  %v242 = vpop.permute.xlu0 %241
  %245 = vset.pattern.permute.xlu0 0
  %246 = vperm.xlu0 %245, %v47
  %v247 = vpop.permute.xlu0 %246
  %250 = vset.pattern.permute.xlu0 0
  %251 = vperm.xlu0 %250, %v48
  %v252 = vpop.permute.xlu0 %251
  %255 = vset.pattern.permute.xlu0 0
  %256 = vperm.xlu0 %255, %v49
  %v257 = vpop.permute.xlu0 %256
  %260 = vset.pattern.permute.xlu0 0
  %261 = vperm.xlu0 %260, %v50
  %v262 = vpop.permute.xlu0 %261
  %265 = vset.pattern.permute.xlu0 0
  %266 = vperm.xlu0 %265, %v51
  %v267 = vpop.permute.xlu0 %266
  %270 = vset.pattern.permute.xlu0 0
  %271 = vperm.xlu0 %270, %v52
  %v272 = vpop.permute.xlu0 %271
  %275 = vset.pattern.permute.xlu0 0
  %276 = vperm.xlu0 %275, %v53
  %v277 = vpop.permute.xlu0 %276
  %280 = vset.pattern.permute.xlu0 0
  %281 = vperm.xlu0 %280, %v54
  %v282 = vpop.permute.xlu0 %281
  %285 = vset.pattern.permute.xlu0 0
  %286 = vperm.xlu0 %285, %v55
  %v287 = vpop.permute.xlu0 %286
  %290 = vset.pattern.permute.xlu0 0
  %291 = vperm.xlu0 %290, %v56
  %v292 = vpop.permute.xlu0 %291
  %295 = vset.pattern.permute.xlu0 0
  %296 = vperm.xlu0 %295, %v57
  %v297 = vpop.permute.xlu0 %296
  %300 = vset.pattern.permute.xlu0 0
  %301 = vperm.xlu0 %300, %v58
  %v302 = vpop.permute.xlu0 %301
  %305 = vset.pattern.permute.xlu0 0
  %306 = vperm.xlu0 %305, %v59
  %v307 = vpop.permute.xlu0 %306
  %310 = vset.pattern.permute.xlu0 0
  %311 = vperm.xlu0 %310, %v60
  %v312 = vpop.permute.xlu0 %311
  %315 = vset.pattern.permute.xlu0 0
  %316 = vperm.xlu0 %315, %v61
  %v317 = vpop.permute.xlu0 %316
  %320 = vset.pattern.permute.xlu0 0
  %321 = vperm.xlu0 %320, %v62
  %v322 = vpop.permute.xlu0 %321
  %325 = vset.pattern.permute.xlu0 0
  %326 = vperm.xlu0 %325, %v63
  %v327 = vpop.permute.xlu0 %326
  %330 = vset.pattern.permute.xlu0 0
  %331 = vperm.xlu0 %330, %v64
  %v332 = vpop.permute.xlu0 %331
  %335 = vset.pattern.permute.xlu0 0
  %336 = vperm.xlu0 %335, %v65
  %v337 = vpop.permute.xlu0 %336
  %340 = vset.pattern.permute.xlu0 0
  %341 = vperm.xlu0 %340, %v66
  %v342 = vpop.permute.xlu0 %341
  %345 = vset.pattern.permute.xlu0 0
  %346 = vperm.xlu0 %345, %v67
  %v347 = vpop.permute.xlu0 %346
  %350 = vset.pattern.permute.xlu0 0
  %351 = vperm.xlu0 %350, %v68
  %v352 = vpop.permute.xlu0 %351
  %355 = vset.pattern.permute.xlu0 0
  %356 = vperm.xlu0 %355, %v69
  %v357 = vpop.permute.xlu0 %356
  %360 = vset.pattern.permute.xlu0 0
  %361 = vperm.xlu0 %360, %v70
  %v362 = vpop.permute.xlu0 %361
  %365 = vset.pattern.permute.xlu0 0
  %366 = vperm.xlu0 %365, %v71
  %v367 = vpop.permute.xlu0 %366
  %370 = vset.pattern.permute.xlu0 0
  %371 = vperm.xlu0 %370, %v72
  %v372 = vpop.permute.xlu0 %371
  %375 = vset.pattern.permute.xlu0 0
  %376 = vperm.xlu0 %375, %v73
  %v377 = vpop.permute.xlu0 %376
  %380 = vset.pattern.permute.xlu0 0
  %381 = vperm.xlu0 %380, %v74
  %v382 = vpop.permute.xlu0 %381
  %385 = vset.pattern.permute.xlu0 0
  %386 = vperm.xlu0 %385, %v75
  %v387 = vpop.permute.xlu0 %386
  %390 = vset.pattern.permute.xlu0 0
  %391 = vperm.xlu0 %390, %v76
  %v392 = vpop.permute.xlu0 %391
  %395 = vset.pattern.permute.xlu0 0
  %396 = vperm.xlu0 %395, %v77
  %v397 = vpop.permute.xlu0 %396
  %v400 = vperm.slane %v78, 0
  %v402 = vmul.f32 %v82, %v400
  %v403 = vmul.f32 %v87, %v400
  %v404 = vmul.f32 %v92, %v400
  %v405 = vmul.f32 %v97, %v400
  %v406 = vmul.f32 %v102, %v400
  %v407 = vmul.f32 %v107, %v400
  %v408 = vmul.f32 %v112, %v400
  %v409 = vmul.f32 %v117, %v400
  %v410 = vmul.f32 %v122, %v400
  %v411 = vmul.f32 %v127, %v400
  %v412 = vmul.f32 %v132, %v400
  %v413 = vmul.f32 %v137, %v400
  %v414 = vmul.f32 %v142, %v400
  %v415 = vmul.f32 %v147, %v400
  %v416 = vmul.f32 %v152, %v400
  %v417 = vmul.f32 %v157, %v400
  %v418 = vmul.f32 %v162, %v400
  %v419 = vmul.f32 %v167, %v400
  %v420 = vmul.f32 %v172, %v400
  %v421 = vmul.f32 %v177, %v400
  %v422 = vmul.f32 %v182, %v400
  %v423 = vmul.f32 %v187, %v400
  %v424 = vmul.f32 %v192, %v400
  %v425 = vmul.f32 %v197, %v400
  %v426 = vmul.f32 %v202, %v400
  %v427 = vmul.f32 %v207, %v400
  %v428 = vmul.f32 %v212, %v400
  %v429 = vmul.f32 %v217, %v400
  %v430 = vmul.f32 %v222, %v400
  %v431 = vmul.f32 %v227, %v400
  %v432 = vmul.f32 %v232, %v400
  %v433 = vmul.f32 %v237, %v400
  %v434 = vmul.f32 %v242, %v400
  %v435 = vmul.f32 %v247, %v400
  %v436 = vmul.f32 %v252, %v400
  %v437 = vmul.f32 %v257, %v400
  %v438 = vmul.f32 %v262, %v400
  %v439 = vmul.f32 %v267, %v400
  %v440 = vmul.f32 %v272, %v400
  %v441 = vmul.f32 %v277, %v400
  %v442 = vmul.f32 %v282, %v400
  %v443 = vmul.f32 %v287, %v400
  %v444 = vmul.f32 %v292, %v400
  %v445 = vmul.f32 %v297, %v400
  %v446 = vmul.f32 %v302, %v400
  %v447 = vmul.f32 %v307, %v400
  %v448 = vmul.f32 %v312, %v400
  %v449 = vmul.f32 %v317, %v400
  %v450 = vmul.f32 %v322, %v400
  %v451 = vmul.f32 %v327, %v400
  %v452 = vmul.f32 %v332, %v400
  %v453 = vmul.f32 %v337, %v400
  %v454 = vmul.f32 %v342, %v400
  %v455 = vmul.f32 %v347, %v400
  %v456 = vmul.f32 %v352, %v400
  %v457 = vmul.f32 %v357, %v400
  %v458 = vmul.f32 %v362, %v400
  %v459 = vmul.f32 %v367, %v400
  %v460 = vmul.f32 %v372, %v400
  %v461 = vmul.f32 %v377, %v400
  %v462 = vmul.f32 %v382, %v400
  %v463 = vmul.f32 %v387, %v400
  %v464 = vmul.f32 %v392, %v400
  %v465 = vmul.f32 %v397, %v400
  %v466 = vld [vmem:[%s2] sm:$0x1]
  %v468 = vperm.slane %v466, 0
  %v470 = vadd.f32 %v402, %v468
  %v471 = vadd.f32 %v403, %v468
  %v472 = vadd.f32 %v404, %v468
  %v473 = vadd.f32 %v405, %v468
  %v474 = vadd.f32 %v406, %v468
  %v475 = vadd.f32 %v407, %v468
  %v476 = vadd.f32 %v408, %v468
  %v477 = vadd.f32 %v409, %v468
  %v478 = vadd.f32 %v410, %v468
  %v479 = vadd.f32 %v411, %v468
  %v480 = vadd.f32 %v412, %v468
  %v481 = vadd.f32 %v413, %v468
  %v482 = vadd.f32 %v414, %v468
  %v483 = vadd.f32 %v415, %v468
  %v484 = vadd.f32 %v416, %v468
  %v485 = vadd.f32 %v417, %v468
  %v486 = vadd.f32 %v418, %v468
  %v487 = vadd.f32 %v419, %v468
  %v488 = vadd.f32 %v420, %v468
  %v489 = vadd.f32 %v421, %v468
  %v490 = vadd.f32 %v422, %v468
  %v491 = vadd.f32 %v423, %v468
  %v492 = vadd.f32 %v424, %v468
  %v493 = vadd.f32 %v425, %v468
  %v494 = vadd.f32 %v426, %v468
  %v495 = vadd.f32 %v427, %v468
  %v496 = vadd.f32 %v428, %v468
  %v497 = vadd.f32 %v429, %v468
  %v498 = vadd.f32 %v430, %v468
  %v499 = vadd.f32 %v431, %v468
  %v500 = vadd.f32 %v432, %v468
  %v501 = vadd.f32 %v433, %v468
  %v502 = vadd.f32 %v434, %v468
  %v503 = vadd.f32 %v435, %v468
  %v504 = vadd.f32 %v436, %v468
  %v505 = vadd.f32 %v437, %v468
  %v506 = vadd.f32 %v438, %v468
  %v507 = vadd.f32 %v439, %v468
  %v508 = vadd.f32 %v440, %v468
  %v509 = vadd.f32 %v441, %v468
  %v510 = vadd.f32 %v442, %v468
  %v511 = vadd.f32 %v443, %v468
  %v512 = vadd.f32 %v444, %v468
  %v513 = vadd.f32 %v445, %v468
  %v514 = vadd.f32 %v446, %v468
  %v515 = vadd.f32 %v447, %v468
  %v516 = vadd.f32 %v448, %v468
  %v517 = vadd.f32 %v449, %v468
  %v518 = vadd.f32 %v450, %v468
  %v519 = vadd.f32 %v451, %v468
  %v520 = vadd.f32 %v452, %v468
  %v521 = vadd.f32 %v453, %v468
  %v522 = vadd.f32 %v454, %v468
  %v523 = vadd.f32 %v455, %v468
  %v524 = vadd.f32 %v456, %v468
  %v525 = vadd.f32 %v457, %v468
  %v526 = vadd.f32 %v458, %v468
  %v527 = vadd.f32 %v459, %v468
  %v528 = vadd.f32 %v460, %v468
  %v529 = vadd.f32 %v461, %v468
  %v530 = vadd.f32 %v462, %v468
  %v531 = vadd.f32 %v463, %v468
  %v532 = vadd.f32 %v464, %v468
  %v533 = vadd.f32 %v465, %v468
  %vm534 = vcmask 64512
  %535 = vst.msk [vmem:[%s3] sm:$0xff] %vm534, %v470
  %536 = vst.msk [vmem:[%s3 + $0x8] sm:$0xff] %vm534, %v471
  %537 = vst.msk [vmem:[%s3 + $0x10] sm:$0xff] %vm534, %v472
  %538 = vst.msk [vmem:[%s3 + $0x18] sm:$0xff] %vm534, %v473
  %539 = vst.msk [vmem:[%s3 + $0x20] sm:$0xff] %vm534, %v474
  %540 = vst.msk [vmem:[%s3 + $0x28] sm:$0xff] %vm534, %v475
  %541 = vst.msk [vmem:[%s3 + $0x30] sm:$0xff] %vm534, %v476
  %542 = vst.msk [vmem:[%s3 + $0x38] sm:$0xff] %vm534, %v477
  %543 = vst.msk [vmem:[%s3 + $0x40] sm:$0xff] %vm534, %v478
  %544 = vst.msk [vmem:[%s3 + $0x48] sm:$0xff] %vm534, %v479
  %545 = vst.msk [vmem:[%s3 + $0x50] sm:$0xff] %vm534, %v480
  %546 = vst.msk [vmem:[%s3 + $0x58] sm:$0xff] %vm534, %v481
  %547 = vst.msk [vmem:[%s3 + $0x60] sm:$0xff] %vm534, %v482
  %548 = vst.msk [vmem:[%s3 + $0x68] sm:$0xff] %vm534, %v483
  %549 = vst.msk [vmem:[%s3 + $0x70] sm:$0xff] %vm534, %v484
  %550 = vst.msk [vmem:[%s3 + $0x78] sm:$0xff] %vm534, %v485
  %551 = vst.msk [vmem:[%s3 + $0x80] sm:$0xff] %vm534, %v486
  %552 = vst.msk [vmem:[%s3 + $0x88] sm:$0xff] %vm534, %v487
  %553 = vst.msk [vmem:[%s3 + $0x90] sm:$0xff] %vm534, %v488
  %554 = vst.msk [vmem:[%s3 + $0x98] sm:$0xff] %vm534, %v489
  %555 = vst.msk [vmem:[%s3 + $0xa0] sm:$0xff] %vm534, %v490
  %556 = vst.msk [vmem:[%s3 + $0xa8] sm:$0xff] %vm534, %v491
  %557 = vst.msk [vmem:[%s3 + $0xb0] sm:$0xff] %vm534, %v492
  %558 = vst.msk [vmem:[%s3 + $0xb8] sm:$0xff] %vm534, %v493
  %559 = vst.msk [vmem:[%s3 + $0xc0] sm:$0xff] %vm534, %v494
  %560 = vst.msk [vmem:[%s3 + $0xc8] sm:$0xff] %vm534, %v495
  %561 = vst.msk [vmem:[%s3 + $0xd0] sm:$0xff] %vm534, %v496
  %562 = vst.msk [vmem:[%s3 + $0xd8] sm:$0xff] %vm534, %v497
  %563 = vst.msk [vmem:[%s3 + $0xe0] sm:$0xff] %vm534, %v498
  %564 = vst.msk [vmem:[%s3 + $0xe8] sm:$0xff] %vm534, %v499
  %565 = vst.msk [vmem:[%s3 + $0xf0] sm:$0xff] %vm534, %v500
  %566 = vst.msk [vmem:[%s3 + $0xf8] sm:$0xff] %vm534, %v501
  %567 = vst.msk [vmem:[%s3 + $0x100] sm:$0xff] %vm534, %v502
  %568 = vst.msk [vmem:[%s3 + $0x108] sm:$0xff] %vm534, %v503
  %569 = vst.msk [vmem:[%s3 + $0x110] sm:$0xff] %vm534, %v504
  %570 = vst.msk [vmem:[%s3 + $0x118] sm:$0xff] %vm534, %v505
  %571 = vst.msk [vmem:[%s3 + $0x120] sm:$0xff] %vm534, %v506
  %572 = vst.msk [vmem:[%s3 + $0x128] sm:$0xff] %vm534, %v507
  %573 = vst.msk [vmem:[%s3 + $0x130] sm:$0xff] %vm534, %v508
  %574 = vst.msk [vmem:[%s3 + $0x138] sm:$0xff] %vm534, %v509
  %575 = vst.msk [vmem:[%s3 + $0x140] sm:$0xff] %vm534, %v510
  %576 = vst.msk [vmem:[%s3 + $0x148] sm:$0xff] %vm534, %v511
  %577 = vst.msk [vmem:[%s3 + $0x150] sm:$0xff] %vm534, %v512
  %578 = vst.msk [vmem:[%s3 + $0x158] sm:$0xff] %vm534, %v513
  %579 = vst.msk [vmem:[%s3 + $0x160] sm:$0xff] %vm534, %v514
  %580 = vst.msk [vmem:[%s3 + $0x168] sm:$0xff] %vm534, %v515
  %581 = vst.msk [vmem:[%s3 + $0x170] sm:$0xff] %vm534, %v516
  %582 = vst.msk [vmem:[%s3 + $0x178] sm:$0xff] %vm534, %v517
  %583 = vst.msk [vmem:[%s3 + $0x180] sm:$0xff] %vm534, %v518
  %584 = vst.msk [vmem:[%s3 + $0x188] sm:$0xff] %vm534, %v519
  %585 = vst.msk [vmem:[%s3 + $0x190] sm:$0xff] %vm534, %v520
  %586 = vst.msk [vmem:[%s3 + $0x198] sm:$0xff] %vm534, %v521
  %587 = vst.msk [vmem:[%s3 + $0x1a0] sm:$0xff] %vm534, %v522
  %588 = vst.msk [vmem:[%s3 + $0x1a8] sm:$0xff] %vm534, %v523
  %589 = vst.msk [vmem:[%s3 + $0x1b0] sm:$0xff] %vm534, %v524
  %590 = vst.msk [vmem:[%s3 + $0x1b8] sm:$0xff] %vm534, %v525
  %591 = vst.msk [vmem:[%s3 + $0x1c0] sm:$0xff] %vm534, %v526
  %592 = vst.msk [vmem:[%s3 + $0x1c8] sm:$0xff] %vm534, %v527
  %593 = vst.msk [vmem:[%s3 + $0x1d0] sm:$0xff] %vm534, %v528
  %594 = vst.msk [vmem:[%s3 + $0x1d8] sm:$0xff] %vm534, %v529
  %595 = vst.msk [vmem:[%s3 + $0x1e0] sm:$0xff] %vm534, %v530
  %596 = vst.msk [vmem:[%s3 + $0x1e8] sm:$0xff] %vm534, %v531
  %597 = vst.msk [vmem:[%s3 + $0x1f0] sm:$0xff] %vm534, %v532
  %598 = vst.msk [vmem:[%s3 + $0x1f8] sm:$0xff] %vm534, %v533
  // Predicated region
  $region14: #{factor_fno2d_forward.11} parent=0 // pred_check
    _
  $region15: #{factor_fno2d_forward.11} parent=0 // pred_check_branch
    %600 = sbr.rel (0) target = $region17
  $region16: #{factor_fno2d_forward.11} parent=0 // pred_region
    _
  $region17: #{factor_fno2d_forward.11} parent=0 // pred_fallthru
    _
  // Predicated region
  $region18: #{factor_fno2d_forward.11} parent=0 // pred_check
    _
  $region19: #{factor_fno2d_forward.11} parent=0 // pred_check_branch
    %602 = sbr.rel (0) target = $region21
  $region20: #{factor_fno2d_forward.11} parent=0 // pred_region
    _
  $region21: #{factor_fno2d_forward.11} parent=0 // pred_fallthru
    _

// kernel: factor_fno2d_forward.13
$region0: #{factor_fno2d_forward.13}
  #allocation0 [shape = 'u32[]', space=smem, size = 0x4, offset = 0x4, fixed_abs, tag = 'smem constant byte address 0x4 - core index']
  #allocation1 [shape = 'u32[72,128]{1,0:T(1,128)}', space=vmem, size = 0x9000, scoped, tag = 'internal scratch']
  %s0 = inlined_call_operand.vmem [shape: f32[2,32], index: 0, kind: input, shape index: {}]
  %s1 = inlined_call_operand.vmem [shape: f32[32,24], index: 1, kind: input, shape index: {}]
  %s2 = inlined_call_operand.vmem [shape: f32[1,24], index: 2, kind: input, shape index: {}]
  %s3 = inlined_call_operand.vmem [shape: f32[2,24], index: 3, kind: output, shape index: {}]
  %s4 = sld [smem:[#allocation0]]
  $region22: #{factor_fno2d_forward.13} parent=0
    _
  %s6 = ssub.s32 1, %s4
  %s7 = scalar_select 0, %s6, %s4
  // Predicated region
  $region2: #{factor_fno2d_forward.13} parent=0 // pred_check
    _
  $region3: #{factor_fno2d_forward.13} parent=0 // pred_check_branch
    %9 = sbr.rel (0) target = $region5
  $region4: #{factor_fno2d_forward.13} parent=0 // pred_region
    _
  $region5: #{factor_fno2d_forward.13} parent=0 // pred_fallthru
    _
  // Predicated region
  $region6: #{factor_fno2d_forward.13} parent=0 // pred_check
    _
  $region7: #{factor_fno2d_forward.13} parent=0 // pred_check_branch
    %11 = sbr.rel (0) target = $region9
  $region8: #{factor_fno2d_forward.13} parent=0 // pred_region
    _
  $region9: #{factor_fno2d_forward.13} parent=0 // pred_fallthru
    _
  // Predicated region
  $region10: #{factor_fno2d_forward.13} parent=0 // pred_check
    _
  $region11: #{factor_fno2d_forward.13} parent=0 // pred_check_branch
    %13 = sbr.rel (0) target = $region13
  $region12: #{factor_fno2d_forward.13} parent=0 // pred_region
    _
  $region13: #{factor_fno2d_forward.13} parent=0 // pred_fallthru
    _
  %v14 = vld [vmem:[%s0] sm:$0x3]
  %v15 = vld [vmem:[%s1] sm:$0xff]
  %v16 = vld [vmem:[%s1 + $0x8] sm:$0xff]
  %v17 = vld [vmem:[%s1 + $0x10] sm:$0xff]
  %v18 = vld [vmem:[%s1 + $0x18] sm:$0xff]
  %v19 = vld [vmem:[%s2] sm:$0x1]
  %v21 = vperm.slane %v19, 0
  %vm23 = vcmask 261120
  %v25 = vsel %vm23, %v14, 0
  %27 = vmatpush.msra.mxu0 0.0
  %28 = vmatpush.msra.mxu0 0.0
  %29 = vmatpush.msra.mxu0 0.0
  %30 = vmatpush.msra.mxu0 0.0
  %31 = vmatpush.msra.mxu0 0.0
  %32 = vmatpush.msra.mxu0 0.0
  %33 = vmatpush.msra.mxu0 0.0
  %34 = vmatpush.msra.mxu0 0.0
  %35 = vmatpush.msra.mxu0 0.0
  %36 = vmatpush.msra.mxu0 0.0
  %37 = vmatpush.msra.mxu0 0.0
  %38 = vmatpush.msra.mxu0 0.0
  %39 = vmatpush.msra.mxu0 %v18
  %40 = vmatpush.msra.mxu0 %v17
  %41 = vmatpush.msra.mxu0 %v16
  %42 = vmatpush.msra.mxu0 %v15
  %43 = vmatmul.f32.gmra.mxu0 %v25
  %v44 = vpop.f32.mrf.mxu0
  %v45 = vadd.f32 %v21, %v44
  %46 = vdwg.mxu0
  %vm47 = vcmask 189440
  %48 = vst.msk [vmem:[%s3] sm:$0x3] %vm47, %v45
  // Predicated region
  $region14: #{factor_fno2d_forward.13} parent=0 // pred_check
    _
  $region15: #{factor_fno2d_forward.13} parent=0 // pred_check_branch
    %50 = sbr.rel (0) target = $region17
  $region16: #{factor_fno2d_forward.13} parent=0 // pred_region
    _
  $region17: #{factor_fno2d_forward.13} parent=0 // pred_fallthru
    _
  // Predicated region
  $region18: #{factor_fno2d_forward.13} parent=0 // pred_check
    _
  $region19: #{factor_fno2d_forward.13} parent=0 // pred_check_branch
    %52 = sbr.rel (0) target = $region21
  $region20: #{factor_fno2d_forward.13} parent=0 // pred_region
    _
  $region21: #{factor_fno2d_forward.13} parent=0 // pred_fallthru
    _

// kernel: factor_fno2d_forward.12
$region0: #{factor_fno2d_forward.12}
  #allocation0 [shape = 'u32[]', space=smem, size = 0x4, offset = 0x4, fixed_abs, tag = 'smem constant byte address 0x4 - core index']
  #allocation1 [shape = 'u32[72,128]{1,0:T(1,128)}', space=vmem, size = 0x9000, scoped, tag = 'internal scratch']
  %s0 = inlined_call_operand.vmem [shape: f32[2,8], index: 0, kind: input, shape index: {}]
  %s1 = inlined_call_operand.vmem [shape: f32[8,32], index: 1, kind: input, shape index: {}]
  %s2 = inlined_call_operand.vmem [shape: f32[1,32], index: 2, kind: input, shape index: {}]
  %s3 = inlined_call_operand.vmem [shape: f32[32,32], index: 3, kind: input, shape index: {}]
  %s4 = inlined_call_operand.vmem [shape: f32[1,32], index: 4, kind: input, shape index: {}]
  %s5 = inlined_call_operand.vmem [shape: f32[2,32], index: 5, kind: output, shape index: {}]
  %s6 = sld [smem:[#allocation0]]
  $region30: #{factor_fno2d_forward.12} parent=0
    _
  %s8 = ssub.s32 1, %s6
  %s9 = scalar_select 0, %s8, %s6
  // Predicated region
  $region2: #{factor_fno2d_forward.12} parent=0 // pred_check
    _
  $region3: #{factor_fno2d_forward.12} parent=0 // pred_check_branch
    %11 = sbr.rel (0) target = $region5
  $region4: #{factor_fno2d_forward.12} parent=0 // pred_region
    _
  $region5: #{factor_fno2d_forward.12} parent=0 // pred_fallthru
    _
  // Predicated region
  $region6: #{factor_fno2d_forward.12} parent=0 // pred_check
    _
  $region7: #{factor_fno2d_forward.12} parent=0 // pred_check_branch
    %13 = sbr.rel (0) target = $region9
  $region8: #{factor_fno2d_forward.12} parent=0 // pred_region
    _
  $region9: #{factor_fno2d_forward.12} parent=0 // pred_fallthru
    _
  // Predicated region
  $region10: #{factor_fno2d_forward.12} parent=0 // pred_check
    _
  $region11: #{factor_fno2d_forward.12} parent=0 // pred_check_branch
    %15 = sbr.rel (0) target = $region13
  $region12: #{factor_fno2d_forward.12} parent=0 // pred_region
    _
  $region13: #{factor_fno2d_forward.12} parent=0 // pred_fallthru
    _
  // Predicated region
  $region14: #{factor_fno2d_forward.12} parent=0 // pred_check
    _
  $region15: #{factor_fno2d_forward.12} parent=0 // pred_check_branch
    %17 = sbr.rel (0) target = $region17
  $region16: #{factor_fno2d_forward.12} parent=0 // pred_region
    _
  $region17: #{factor_fno2d_forward.12} parent=0 // pred_fallthru
    _
  // Predicated region
  $region18: #{factor_fno2d_forward.12} parent=0 // pred_check
    _
  $region19: #{factor_fno2d_forward.12} parent=0 // pred_check_branch
    %19 = sbr.rel (0) target = $region21
  $region20: #{factor_fno2d_forward.12} parent=0 // pred_region
    _
  $region21: #{factor_fno2d_forward.12} parent=0 // pred_fallthru
    _
  %v20 = vld [vmem:[%s0] sm:$0x3]
  %v21 = vld [vmem:[%s1] sm:$0xff]
  %v22 = vld [vmem:[%s2] sm:$0x1]
  %v24 = vperm.slane %v22, 0
  %vm26 = vcmask 64512
  %v28 = vsel %vm26, %v20, 0
  %30 = vmatpush.msra.mxu0 0.0
  %31 = vmatpush.msra.mxu0 0.0
  %32 = vmatpush.msra.mxu0 0.0
  %33 = vmatpush.msra.mxu0 0.0
  %34 = vmatpush.msra.mxu0 0.0
  %35 = vmatpush.msra.mxu0 0.0
  %36 = vmatpush.msra.mxu0 0.0
  %37 = vmatpush.msra.mxu0 0.0
  %38 = vmatpush.msra.mxu0 0.0
  %39 = vmatpush.msra.mxu0 0.0
  %40 = vmatpush.msra.mxu0 0.0
  %41 = vmatpush.msra.mxu0 0.0
  %42 = vmatpush.msra.mxu0 0.0
  %43 = vmatpush.msra.mxu0 0.0
  %44 = vmatpush.msra.mxu0 0.0
  %45 = vmatpush.msra.mxu0 %v21
  %46 = vmatmul.f32.gmra.mxu0 %v28
  %v47 = vpop.f32.mrf.mxu0
  %v48 = vadd.f32 %v24, %v47
  %49 = vdwg.mxu0
  %v50 = vmul.f32 %v48, 0.5
  %v51 = vmul.f32 %v48, 0.70710677
  %v52 = vand.u32 2147483647, %v51
  %v53 = vmul.f32 %v52, 0.3275911
  %v54 = vadd.f32 %v53, 1.0
  %v55 = vrcp.pop %v54
  %v56 = vmul.f32 %v54, %v55
  %v57 = vsub.f32 1.0, %v56
  %v58 = vmul.f32 %v55, %v57
  %v59 = vadd.f32 %v55, %v58
  %vm60 = vweird.f32 %v54
  %vm61 = vweird.f32 %v55
  %vm62 = vmor %vm60, %vm61
  %v63 = vsel %vm62, %v55, %v59
  %v64 = vand.u32 2147483647, %v54
  %vm65 = vcmp.eq.f32.partialorder %v64, 8.507059e+37
  %v66 = vand.u32 %v54, 2147483648
  %v67 = vor.u32 1.1754944e-38, %v66
  %v68 = vsel %vm65, %v67, %v63
  %v69 = vmul.f32 1.0, %v68
  %v70 = vmul.f32 %v69, 1.0614054
  %v71 = vadd.f32 %v70, -1.4531521
  %v72 = vmul.f32 %v71, %v69
  %v73 = vadd.f32 %v72, 1.4214138
  %v74 = vmul.f32 %v73, %v69
  %v75 = vadd.f32 %v74, -0.28449672
  %v76 = vmul.f32 %v75, %v69
  %v77 = vadd.f32 %v76, 0.2548296
  %v78 = vmul.f32 %v77, %v69
  %v79 = vsub.f32 0.0, %v52
  %v80 = vmul.f32 %v79, %v52
  %v81 = vmul.f32 %v80, 1.442695
  %v82 = vpow.pop %v81
  %v83 = vmul.f32 %v78, %v82
  %v84 = vsub.f32 1.0, %v83
  %vm85 = vcmp.lt.f32.partialorder %v51, 0.0
  %v86 = vsub.f32 0.0, %v84
  %v87 = vsel %vm85, %v86, %v84
  %v88 = vadd.f32 %v87, 1.0
  %v89 = vmul.f32 %v50, %v88
  %v90 = vld [vmem:[%s3] sm:$0xff]
  %v91 = vld [vmem:[%s3 + $0x8] sm:$0xff]
  %v92 = vld [vmem:[%s3 + $0x10] sm:$0xff]
  %v93 = vld [vmem:[%s3 + $0x18] sm:$0xff]
  %v94 = vld [vmem:[%s4] sm:$0x1]
  %v96 = vperm.slane %v94, 0
  %vm98 = vcmask 261120
  %v100 = vsel %vm98, %v89, 0
  %102 = vmatpush.msra.mxu0 0.0
  %103 = vmatpush.msra.mxu0 0.0
  %104 = vmatpush.msra.mxu0 0.0
  %105 = vmatpush.msra.mxu0 0.0
  %106 = vmatpush.msra.mxu0 0.0
  %107 = vmatpush.msra.mxu0 0.0
  %108 = vmatpush.msra.mxu0 0.0
  %109 = vmatpush.msra.mxu0 0.0
  %110 = vmatpush.msra.mxu0 0.0
  %111 = vmatpush.msra.mxu0 0.0
  %112 = vmatpush.msra.mxu0 0.0
  %113 = vmatpush.msra.mxu0 0.0
  %114 = vmatpush.msra.mxu0 %v93
  %115 = vmatpush.msra.mxu0 %v92
  %116 = vmatpush.msra.mxu0 %v91
  %117 = vmatpush.msra.mxu0 %v90
  %118 = vmatmul.f32.gmra.mxu0 %v100
  %v119 = vpop.f32.mrf.mxu0
  %v120 = vadd.f32 %v96, %v119
  %121 = vdwg.mxu0
  %vm122 = vcmask 254976
  %123 = vst.msk [vmem:[%s5] sm:$0x3] %vm122, %v120
  // Predicated region
  $region22: #{factor_fno2d_forward.12} parent=0 // pred_check
    _
  $region23: #{factor_fno2d_forward.12} parent=0 // pred_check_branch
    %125 = sbr.rel (0) target = $region25
  $region24: #{factor_fno2d_forward.12} parent=0 // pred_region
    _
  $region25: #{factor_fno2d_forward.12} parent=0 // pred_fallthru
    _
  // Predicated region
  $region26: #{factor_fno2d_forward.12} parent=0 // pred_check
    _
  $region27: #{factor_fno2d_forward.12} parent=0 // pred_check_branch
    %127 = sbr.rel (0) target = $region29
  $region28: #{factor_fno2d_forward.12} parent=0 // pred_region
    _
  $region29: #{factor_fno2d_forward.12} parent=0 // pred_fallthru
    _

// kernel: reverse.11
$region0: #{reverse.11}
  %s0 = inlined_call_operand.vmem [shape: f32[2,16,8,7], index: 0, kind: input, shape index: {}]
  %s1 = inlined_call_operand.vmem [shape: f32[2,16,8,7], index: 1, kind: output, shape index: {}]
  %v2 = vlaneseq
  %v3 = vsub.s32 6, %v2
  %4 = vset.pattern.permute.xlu0 %v3
  $region1: #{reverse.11} parent=0
    #allocation0 [shape = 'u8[131072]{0}', space=vmem, size = 0x20000, scoped, tag = 'operand span for operand 0']
    #allocation1 [shape = 'u8[131072]{0}', space=vmem, size = 0x20000, scoped, tag = 'operand span for operand 1']
    // Predicated region
    $region2: #{reverse.11} parent=1 // pred_check
      _
    $region3: #{reverse.11} parent=1 // pred_check_branch
      %6 = sbr.rel (0) target = $region5
    $region4: #{reverse.11} parent=1 // pred_region
      // Predicated region
      $region6: #{reverse.11} parent=4 // pred_check
        _
      $region7: #{reverse.11} parent=4 // pred_check_branch
        %8 = sbr.rel (0) target = $region9
      $region8: #{reverse.11} parent=4 // pred_region
        // Predicated region
        $region21: #{reverse.11} parent=8 // pred_check
          _
        $region22: #{reverse.11} parent=8 // pred_check_branch
          %86 = sbr.rel (0) target = $region24
        $region23: #{reverse.11} parent=8 // pred_region
          loop: start=0, step=1, limit=1
          $region25: #{reverse.11} parent=23 // loop_pre_header
            _
          $region26: #{reverse.11} parent=23 // loop_header
            %s88 = sphi 0, %s92
            %p89 = scmp.ge.s32.totalorder %s88, 1
            %s93 = sphi %s0, %s0
            %s94 = sphi [#allocation0], [#allocation0]
          $region27: #{reverse.11} parent=23 // loop_header_branch
            %91 = sbr.rel (%p89) target = $region31
          $region28: #{reverse.11} parent=23 // loop_body
            %v95 = vld [vmem:[%s93] sm:$0xff]
            %96 = vst [vmem:[%s94] sm:$0xff] %v95
            %v97 = vld [vmem:[%s93 + $0x8] sm:$0xff]
            %98 = vst [vmem:[%s94 + $0x8] sm:$0xff] %v97
            %v99 = vld [vmem:[%s93 + $0x10] sm:$0xff]
            %100 = vst [vmem:[%s94 + $0x10] sm:$0xff] %v99
            %v101 = vld [vmem:[%s93 + $0x18] sm:$0xff]
            %102 = vst [vmem:[%s94 + $0x18] sm:$0xff] %v101
            %v103 = vld [vmem:[%s93 + $0x20] sm:$0xff]
            %104 = vst [vmem:[%s94 + $0x20] sm:$0xff] %v103
            %v105 = vld [vmem:[%s93 + $0x28] sm:$0xff]
            %106 = vst [vmem:[%s94 + $0x28] sm:$0xff] %v105
            %v107 = vld [vmem:[%s93 + $0x30] sm:$0xff]
            %108 = vst [vmem:[%s94 + $0x30] sm:$0xff] %v107
            %v109 = vld [vmem:[%s93 + $0x38] sm:$0xff]
            %110 = vst [vmem:[%s94 + $0x38] sm:$0xff] %v109
            %v111 = vld [vmem:[%s93 + $0x40] sm:$0xff]
            %112 = vst [vmem:[%s94 + $0x40] sm:$0xff] %v111
            %v113 = vld [vmem:[%s93 + $0x48] sm:$0xff]
            %114 = vst [vmem:[%s94 + $0x48] sm:$0xff] %v113
            %v115 = vld [vmem:[%s93 + $0x50] sm:$0xff]
            %116 = vst [vmem:[%s94 + $0x50] sm:$0xff] %v115
            %v117 = vld [vmem:[%s93 + $0x58] sm:$0xff]
            %118 = vst [vmem:[%s94 + $0x58] sm:$0xff] %v117
            %v119 = vld [vmem:[%s93 + $0x60] sm:$0xff]
            %120 = vst [vmem:[%s94 + $0x60] sm:$0xff] %v119
            %v121 = vld [vmem:[%s93 + $0x68] sm:$0xff]
            %122 = vst [vmem:[%s94 + $0x68] sm:$0xff] %v121
            %v123 = vld [vmem:[%s93 + $0x70] sm:$0xff]
            %124 = vst [vmem:[%s94 + $0x70] sm:$0xff] %v123
            %v125 = vld [vmem:[%s93 + $0x78] sm:$0xff]
            %126 = vst [vmem:[%s94 + $0x78] sm:$0xff] %v125
            %v127 = vld [vmem:[%s93 + $0x80] sm:$0xff]
            %128 = vst [vmem:[%s94 + $0x80] sm:$0xff] %v127
            %v129 = vld [vmem:[%s93 + $0x88] sm:$0xff]
            %130 = vst [vmem:[%s94 + $0x88] sm:$0xff] %v129
            %v131 = vld [vmem:[%s93 + $0x90] sm:$0xff]
            %132 = vst [vmem:[%s94 + $0x90] sm:$0xff] %v131
            %v133 = vld [vmem:[%s93 + $0x98] sm:$0xff]
            %134 = vst [vmem:[%s94 + $0x98] sm:$0xff] %v133
            %v135 = vld [vmem:[%s93 + $0xa0] sm:$0xff]
            %136 = vst [vmem:[%s94 + $0xa0] sm:$0xff] %v135
            %v137 = vld [vmem:[%s93 + $0xa8] sm:$0xff]
            %138 = vst [vmem:[%s94 + $0xa8] sm:$0xff] %v137
            %v139 = vld [vmem:[%s93 + $0xb0] sm:$0xff]
            %140 = vst [vmem:[%s94 + $0xb0] sm:$0xff] %v139
            %v141 = vld [vmem:[%s93 + $0xb8] sm:$0xff]
            %142 = vst [vmem:[%s94 + $0xb8] sm:$0xff] %v141
            %v143 = vld [vmem:[%s93 + $0xc0] sm:$0xff]
            %144 = vst [vmem:[%s94 + $0xc0] sm:$0xff] %v143
            %v145 = vld [vmem:[%s93 + $0xc8] sm:$0xff]
            %146 = vst [vmem:[%s94 + $0xc8] sm:$0xff] %v145
            %v147 = vld [vmem:[%s93 + $0xd0] sm:$0xff]
            %148 = vst [vmem:[%s94 + $0xd0] sm:$0xff] %v147
            %v149 = vld [vmem:[%s93 + $0xd8] sm:$0xff]
            %150 = vst [vmem:[%s94 + $0xd8] sm:$0xff] %v149
            %v151 = vld [vmem:[%s93 + $0xe0] sm:$0xff]
            %152 = vst [vmem:[%s94 + $0xe0] sm:$0xff] %v151
            %v153 = vld [vmem:[%s93 + $0xe8] sm:$0xff]
            %154 = vst [vmem:[%s94 + $0xe8] sm:$0xff] %v153
            %v155 = vld [vmem:[%s93 + $0xf0] sm:$0xff]
            %156 = vst [vmem:[%s94 + $0xf0] sm:$0xff] %v155
            %v157 = vld [vmem:[%s93 + $0xf8] sm:$0xff]
            %158 = vst [vmem:[%s94 + $0xf8] sm:$0xff] %v157
          $region29: #{reverse.11} parent=23 // loop_footer
            %s92 = sadd.s32 1, %s88
          $region30: #{reverse.11} parent=23 // loop_footer_branch
            %87 = sbr.rel target = $region26
          $region31: #{reverse.11} parent=23 // loop_exit
            _
        $region24: #{reverse.11} parent=8 // pred_fallthru
          _
        // Predicated region
        $region32: #{reverse.11} parent=8 // pred_check
          _
        $region33: #{reverse.11} parent=8 // pred_check_branch
          %160 = sbr.rel target = $region35
        $region34: #{reverse.11} parent=8 // pred_region
          _
        $region35: #{reverse.11} parent=8 // pred_fallthru
          _
      $region9: #{reverse.11} parent=4 // pred_fallthru
        _
      // Predicated region
      $region10: #{reverse.11} parent=4 // pred_check
        _
      $region11: #{reverse.11} parent=4 // pred_check_branch
        %10 = sbr.rel target = $region13
      $region12: #{reverse.11} parent=4 // pred_region
        %s12 = ssub.s32 256, 1
        loop: start=0, step=1, limit=1
        $region14: #{reverse.11} parent=12 // loop_pre_header
          _
        $region15: #{reverse.11} parent=12 // loop_header
          %s14 = sphi 0, %s18
          %p15 = scmp.ge.s32.totalorder %s14, 1
          %s19 = sphi %s0, %s0
          %s20 = sphi [#allocation0], [#allocation0]
        $region16: #{reverse.11} parent=12 // loop_header_branch
          %17 = sbr.rel (%p15) target = $region20
        $region17: #{reverse.11} parent=12 // loop_body
          %v21 = vld [vmem:[%s19] sm:%s12]
          %22 = vst [vmem:[%s20] sm:%s12] %v21
          %v23 = vld [vmem:[%s19 + $0x8] sm:%s12]
          %24 = vst [vmem:[%s20 + $0x8] sm:%s12] %v23
          %v25 = vld [vmem:[%s19 + $0x10] sm:%s12]
          %26 = vst [vmem:[%s20 + $0x10] sm:%s12] %v25
          %v27 = vld [vmem:[%s19 + $0x18] sm:%s12]
          %28 = vst [vmem:[%s20 + $0x18] sm:%s12] %v27
          %v29 = vld [vmem:[%s19 + $0x20] sm:%s12]
          %30 = vst [vmem:[%s20 + $0x20] sm:%s12] %v29
          %v31 = vld [vmem:[%s19 + $0x28] sm:%s12]
          %32 = vst [vmem:[%s20 + $0x28] sm:%s12] %v31
          %v33 = vld [vmem:[%s19 + $0x30] sm:%s12]
          %34 = vst [vmem:[%s20 + $0x30] sm:%s12] %v33
          %v35 = vld [vmem:[%s19 + $0x38] sm:%s12]
          %36 = vst [vmem:[%s20 + $0x38] sm:%s12] %v35
          %v37 = vld [vmem:[%s19 + $0x40] sm:%s12]
          %38 = vst [vmem:[%s20 + $0x40] sm:%s12] %v37
          %v39 = vld [vmem:[%s19 + $0x48] sm:%s12]
          %40 = vst [vmem:[%s20 + $0x48] sm:%s12] %v39
          %v41 = vld [vmem:[%s19 + $0x50] sm:%s12]
          %42 = vst [vmem:[%s20 + $0x50] sm:%s12] %v41
          %v43 = vld [vmem:[%s19 + $0x58] sm:%s12]
          %44 = vst [vmem:[%s20 + $0x58] sm:%s12] %v43
          %v45 = vld [vmem:[%s19 + $0x60] sm:%s12]
          %46 = vst [vmem:[%s20 + $0x60] sm:%s12] %v45
          %v47 = vld [vmem:[%s19 + $0x68] sm:%s12]
          %48 = vst [vmem:[%s20 + $0x68] sm:%s12] %v47
          %v49 = vld [vmem:[%s19 + $0x70] sm:%s12]
          %50 = vst [vmem:[%s20 + $0x70] sm:%s12] %v49
          %v51 = vld [vmem:[%s19 + $0x78] sm:%s12]
          %52 = vst [vmem:[%s20 + $0x78] sm:%s12] %v51
          %v53 = vld [vmem:[%s19 + $0x80] sm:%s12]
          %54 = vst [vmem:[%s20 + $0x80] sm:%s12] %v53
          %v55 = vld [vmem:[%s19 + $0x88] sm:%s12]
          %56 = vst [vmem:[%s20 + $0x88] sm:%s12] %v55
          %v57 = vld [vmem:[%s19 + $0x90] sm:%s12]
          %58 = vst [vmem:[%s20 + $0x90] sm:%s12] %v57
          %v59 = vld [vmem:[%s19 + $0x98] sm:%s12]
          %60 = vst [vmem:[%s20 + $0x98] sm:%s12] %v59
          %v61 = vld [vmem:[%s19 + $0xa0] sm:%s12]
          %62 = vst [vmem:[%s20 + $0xa0] sm:%s12] %v61
          %v63 = vld [vmem:[%s19 + $0xa8] sm:%s12]
          %64 = vst [vmem:[%s20 + $0xa8] sm:%s12] %v63
          %v65 = vld [vmem:[%s19 + $0xb0] sm:%s12]
          %66 = vst [vmem:[%s20 + $0xb0] sm:%s12] %v65
          %v67 = vld [vmem:[%s19 + $0xb8] sm:%s12]
          %68 = vst [vmem:[%s20 + $0xb8] sm:%s12] %v67
          %v69 = vld [vmem:[%s19 + $0xc0] sm:%s12]
          %70 = vst [vmem:[%s20 + $0xc0] sm:%s12] %v69
          %v71 = vld [vmem:[%s19 + $0xc8] sm:%s12]
          %72 = vst [vmem:[%s20 + $0xc8] sm:%s12] %v71
          %v73 = vld [vmem:[%s19 + $0xd0] sm:%s12]
          %74 = vst [vmem:[%s20 + $0xd0] sm:%s12] %v73
          %v75 = vld [vmem:[%s19 + $0xd8] sm:%s12]
          %76 = vst [vmem:[%s20 + $0xd8] sm:%s12] %v75
          %v77 = vld [vmem:[%s19 + $0xe0] sm:%s12]
          %78 = vst [vmem:[%s20 + $0xe0] sm:%s12] %v77
          %v79 = vld [vmem:[%s19 + $0xe8] sm:%s12]
          %80 = vst [vmem:[%s20 + $0xe8] sm:%s12] %v79
          %v81 = vld [vmem:[%s19 + $0xf0] sm:%s12]
          %82 = vst [vmem:[%s20 + $0xf0] sm:%s12] %v81
          %v83 = vld [vmem:[%s19 + $0xf8] sm:%s12]
          %84 = vst [vmem:[%s20 + $0xf8] sm:%s12] %v83
        $region18: #{reverse.11} parent=12 // loop_footer
          %s18 = sadd.s32 1, %s14
        $region19: #{reverse.11} parent=12 // loop_footer_branch
          %13 = sbr.rel target = $region15
        $region20: #{reverse.11} parent=12 // loop_exit
          _
      $region13: #{reverse.11} parent=4 // pred_fallthru
        _
    $region5: #{reverse.11} parent=1 // pred_fallthru
      _
    %161 = vnop
    %v162 = vld [vmem:[#allocation0] sm:$0xff]
    %163 = vperm.xlu0 %4, %v162
    %v164 = vpop.permute.xlu0 %163
    %165 = vst [vmem:[#allocation1] sm:$0xff] %v164
    %s166 = scalar_lea.vmem [#allocation1], 8
    %s167 = scalar_lea.vmem [#allocation0], 8
    %v168 = vld [vmem:[%s167] sm:$0xff]
    %169 = vperm.xlu0 %4, %v168
    %v170 = vpop.permute.xlu0 %169
    %171 = vst [vmem:[%s166] sm:$0xff] %v170
    %s172 = scalar_lea.vmem [#allocation1], 16
    %s173 = scalar_lea.vmem [#allocation0], 16
    %v174 = vld [vmem:[%s173] sm:$0xff]
    %175 = vperm.xlu0 %4, %v174
    %v176 = vpop.permute.xlu0 %175
    %177 = vst [vmem:[%s172] sm:$0xff] %v176
    %s178 = scalar_lea.vmem %s172, 8 [#allocation1]
    %s179 = scalar_lea.vmem %s173, 8 [#allocation0]
    %v180 = vld [vmem:[%s179] sm:$0xff]
    %181 = vperm.xlu0 %4, %v180
    %v182 = vpop.permute.xlu0 %181
    %183 = vst [vmem:[%s178] sm:$0xff] %v182
    %s184 = scalar_lea.vmem [#allocation1], 32
    %s185 = scalar_lea.vmem [#allocation0], 32
    %v186 = vld [vmem:[%s185] sm:$0xff]
    %187 = vperm.xlu0 %4, %v186
    %v188 = vpop.permute.xlu0 %187
    %189 = vst [vmem:[%s184] sm:$0xff] %v188
    %s190 = scalar_lea.vmem %s184, 8 [#allocation1]
    %s191 = scalar_lea.vmem %s185, 8 [#allocation0]
    %v192 = vld [vmem:[%s191] sm:$0xff]
    %193 = vperm.xlu0 %4, %v192
    %v194 = vpop.permute.xlu0 %193
    %195 = vst [vmem:[%s190] sm:$0xff] %v194
    %s196 = scalar_lea.vmem [#allocation1], 48
    %s197 = scalar_lea.vmem [#allocation0], 48
    %v198 = vld [vmem:[%s197] sm:$0xff]
    %199 = vperm.xlu0 %4, %v198
    %v200 = vpop.permute.xlu0 %199
    %201 = vst [vmem:[%s196] sm:$0xff] %v200
    %s202 = scalar_lea.vmem %s196, 8 [#allocation1]
    %s203 = scalar_lea.vmem %s197, 8 [#allocation0]
    %v204 = vld [vmem:[%s203] sm:$0xff]
    %205 = vperm.xlu0 %4, %v204
    %v206 = vpop.permute.xlu0 %205
    %207 = vst [vmem:[%s202] sm:$0xff] %v206
    %s208 = scalar_lea.vmem [#allocation1], 64
    %s209 = scalar_lea.vmem [#allocation0], 64
    %v210 = vld [vmem:[%s209] sm:$0xff]
    %211 = vperm.xlu0 %4, %v210
    %v212 = vpop.permute.xlu0 %211
    %213 = vst [vmem:[%s208] sm:$0xff] %v212
    %s214 = scalar_lea.vmem %s208, 8 [#allocation1]
    %s215 = scalar_lea.vmem %s209, 8 [#allocation0]
    %v216 = vld [vmem:[%s215] sm:$0xff]
    %217 = vperm.xlu0 %4, %v216
    %v218 = vpop.permute.xlu0 %217
    %219 = vst [vmem:[%s214] sm:$0xff] %v218
    %s220 = scalar_lea.vmem [#allocation1], 80
    %s221 = scalar_lea.vmem [#allocation0], 80
    %v222 = vld [vmem:[%s221] sm:$0xff]
    %223 = vperm.xlu0 %4, %v222
    %v224 = vpop.permute.xlu0 %223
    %225 = vst [vmem:[%s220] sm:$0xff] %v224
    %s226 = scalar_lea.vmem %s220, 8 [#allocation1]
    %s227 = scalar_lea.vmem %s221, 8 [#allocation0]
    %v228 = vld [vmem:[%s227] sm:$0xff]
    %229 = vperm.xlu0 %4, %v228
    %v230 = vpop.permute.xlu0 %229
    %231 = vst [vmem:[%s226] sm:$0xff] %v230
    %s232 = scalar_lea.vmem [#allocation1], 96
    %s233 = scalar_lea.vmem [#allocation0], 96
    %v234 = vld [vmem:[%s233] sm:$0xff]
    %235 = vperm.xlu0 %4, %v234
    %v236 = vpop.permute.xlu0 %235
    %237 = vst [vmem:[%s232] sm:$0xff] %v236
    %s238 = scalar_lea.vmem %s232, 8 [#allocation1]
    %s239 = scalar_lea.vmem %s233, 8 [#allocation0]
    %v240 = vld [vmem:[%s239] sm:$0xff]
    %241 = vperm.xlu0 %4, %v240
    %v242 = vpop.permute.xlu0 %241
    %243 = vst [vmem:[%s238] sm:$0xff] %v242
    %s244 = scalar_lea.vmem [#allocation1], 112
    %s245 = scalar_lea.vmem [#allocation0], 112
    %v246 = vld [vmem:[%s245] sm:$0xff]
    %247 = vperm.xlu0 %4, %v246
    %v248 = vpop.permute.xlu0 %247
    %249 = vst [vmem:[%s244] sm:$0xff] %v248
    %s250 = scalar_lea.vmem %s244, 8 [#allocation1]
    %s251 = scalar_lea.vmem %s245, 8 [#allocation0]
    %v252 = vld [vmem:[%s251] sm:$0xff]
    %253 = vperm.xlu0 %4, %v252
    %v254 = vpop.permute.xlu0 %253
    %255 = vst [vmem:[%s250] sm:$0xff] %v254
    %s256 = scalar_lea.vmem [#allocation1], 128
    %s257 = scalar_lea.vmem [#allocation0], 128
    %v258 = vld [vmem:[%s257] sm:$0xff]
    %259 = vperm.xlu0 %4, %v258
    %v260 = vpop.permute.xlu0 %259
    %261 = vst [vmem:[%s256] sm:$0xff] %v260
    %s262 = scalar_lea.vmem %s256, 8 [#allocation1]
    %s263 = scalar_lea.vmem %s257, 8 [#allocation0]
    %v264 = vld [vmem:[%s263] sm:$0xff]
    %265 = vperm.xlu0 %4, %v264
    %v266 = vpop.permute.xlu0 %265
    %267 = vst [vmem:[%s262] sm:$0xff] %v266
    %s268 = scalar_lea.vmem [#allocation1], 144
    %s269 = scalar_lea.vmem [#allocation0], 144
    %v270 = vld [vmem:[%s269] sm:$0xff]
    %271 = vperm.xlu0 %4, %v270
    %v272 = vpop.permute.xlu0 %271
    %273 = vst [vmem:[%s268] sm:$0xff] %v272
    %s274 = scalar_lea.vmem %s268, 8 [#allocation1]
    %s275 = scalar_lea.vmem %s269, 8 [#allocation0]
    %v276 = vld [vmem:[%s275] sm:$0xff]
    %277 = vperm.xlu0 %4, %v276
    %v278 = vpop.permute.xlu0 %277
    %279 = vst [vmem:[%s274] sm:$0xff] %v278
    %s280 = scalar_lea.vmem [#allocation1], 160
    %s281 = scalar_lea.vmem [#allocation0], 160
    %v282 = vld [vmem:[%s281] sm:$0xff]
    %283 = vperm.xlu0 %4, %v282
    %v284 = vpop.permute.xlu0 %283
    %285 = vst [vmem:[%s280] sm:$0xff] %v284
    %s286 = scalar_lea.vmem %s280, 8 [#allocation1]
    %s287 = scalar_lea.vmem %s281, 8 [#allocation0]
    %v288 = vld [vmem:[%s287] sm:$0xff]
    %289 = vperm.xlu0 %4, %v288
    %v290 = vpop.permute.xlu0 %289
    %291 = vst [vmem:[%s286] sm:$0xff] %v290
    %s292 = scalar_lea.vmem [#allocation1], 176
    %s293 = scalar_lea.vmem [#allocation0], 176
    %v294 = vld [vmem:[%s293] sm:$0xff]
    %295 = vperm.xlu0 %4, %v294
    %v296 = vpop.permute.xlu0 %295
    %297 = vst [vmem:[%s292] sm:$0xff] %v296
    %s298 = scalar_lea.vmem %s292, 8 [#allocation1]
    %s299 = scalar_lea.vmem %s293, 8 [#allocation0]
    %v300 = vld [vmem:[%s299] sm:$0xff]
    %301 = vperm.xlu0 %4, %v300
    %v302 = vpop.permute.xlu0 %301
    %303 = vst [vmem:[%s298] sm:$0xff] %v302
    %s304 = scalar_lea.vmem [#allocation1], 192
    %s305 = scalar_lea.vmem [#allocation0], 192
    %v306 = vld [vmem:[%s305] sm:$0xff]
    %307 = vperm.xlu0 %4, %v306
    %v308 = vpop.permute.xlu0 %307
    %309 = vst [vmem:[%s304] sm:$0xff] %v308
    %s310 = scalar_lea.vmem %s304, 8 [#allocation1]
    %s311 = scalar_lea.vmem %s305, 8 [#allocation0]
    %v312 = vld [vmem:[%s311] sm:$0xff]
    %313 = vperm.xlu0 %4, %v312
    %v314 = vpop.permute.xlu0 %313
    %315 = vst [vmem:[%s310] sm:$0xff] %v314
    %s316 = scalar_lea.vmem [#allocation1], 208
    %s317 = scalar_lea.vmem [#allocation0], 208
    %v318 = vld [vmem:[%s317] sm:$0xff]
    %319 = vperm.xlu0 %4, %v318
    %v320 = vpop.permute.xlu0 %319
    %321 = vst [vmem:[%s316] sm:$0xff] %v320
    %s322 = scalar_lea.vmem %s316, 8 [#allocation1]
    %s323 = scalar_lea.vmem %s317, 8 [#allocation0]
    %v324 = vld [vmem:[%s323] sm:$0xff]
    %325 = vperm.xlu0 %4, %v324
    %v326 = vpop.permute.xlu0 %325
    %327 = vst [vmem:[%s322] sm:$0xff] %v326
    %s328 = scalar_lea.vmem [#allocation1], 224
    %s329 = scalar_lea.vmem [#allocation0], 224
    %v330 = vld [vmem:[%s329] sm:$0xff]
    %331 = vperm.xlu0 %4, %v330
    %v332 = vpop.permute.xlu0 %331
    %333 = vst [vmem:[%s328] sm:$0xff] %v332
    %s334 = scalar_lea.vmem %s328, 8 [#allocation1]
    %s335 = scalar_lea.vmem %s329, 8 [#allocation0]
    %v336 = vld [vmem:[%s335] sm:$0xff]
    %337 = vperm.xlu0 %4, %v336
    %v338 = vpop.permute.xlu0 %337
    %339 = vst [vmem:[%s334] sm:$0xff] %v338
    %s340 = scalar_lea.vmem [#allocation1], 240
    %s341 = scalar_lea.vmem [#allocation0], 240
    %v342 = vld [vmem:[%s341] sm:$0xff]
    %343 = vperm.xlu0 %4, %v342
    %v344 = vpop.permute.xlu0 %343
    %345 = vst [vmem:[%s340] sm:$0xff] %v344
    %s346 = scalar_lea.vmem %s340, 8 [#allocation1]
    %s347 = scalar_lea.vmem %s341, 8 [#allocation0]
    %v348 = vld [vmem:[%s347] sm:$0xff]
    %349 = vperm.xlu0 %4, %v348
    %v350 = vpop.permute.xlu0 %349
    %351 = vst [vmem:[%s346] sm:$0xff] %v350
    // Predicated region
    $region36: #{reverse.11} parent=1 // pred_check
      _
    $region37: #{reverse.11} parent=1 // pred_check_branch
      %353 = sbr.rel (0) target = $region39
    $region38: #{reverse.11} parent=1 // pred_region
      // Predicated region
      $region40: #{reverse.11} parent=38 // pred_check
        _
      $region41: #{reverse.11} parent=38 // pred_check_branch
        %355 = sbr.rel (0) target = $region43
      $region42: #{reverse.11} parent=38 // pred_region
        // Predicated region
        $region55: #{reverse.11} parent=42 // pred_check
          _
        $region56: #{reverse.11} parent=42 // pred_check_branch
          %433 = sbr.rel (0) target = $region58
        $region57: #{reverse.11} parent=42 // pred_region
          loop: start=0, step=1, limit=1
          $region59: #{reverse.11} parent=57 // loop_pre_header
            _
          $region60: #{reverse.11} parent=57 // loop_header
            %s435 = sphi 0, %s439
            %p436 = scmp.ge.s32.totalorder %s435, 1
            %s440 = sphi [#allocation1], [#allocation1]
            %s441 = sphi %s1, %s1
          $region61: #{reverse.11} parent=57 // loop_header_branch
            %438 = sbr.rel (%p436) target = $region65
          $region62: #{reverse.11} parent=57 // loop_body
            %v442 = vld [vmem:[%s440] sm:$0xff]
            %443 = vst [vmem:[%s441] sm:$0xff] %v442
            %v444 = vld [vmem:[%s440 + $0x8] sm:$0xff]
            %445 = vst [vmem:[%s441 + $0x8] sm:$0xff] %v444
            %v446 = vld [vmem:[%s440 + $0x10] sm:$0xff]
            %447 = vst [vmem:[%s441 + $0x10] sm:$0xff] %v446
            %v448 = vld [vmem:[%s440 + $0x18] sm:$0xff]
            %449 = vst [vmem:[%s441 + $0x18] sm:$0xff] %v448
            %v450 = vld [vmem:[%s440 + $0x20] sm:$0xff]
            %451 = vst [vmem:[%s441 + $0x20] sm:$0xff] %v450
            %v452 = vld [vmem:[%s440 + $0x28] sm:$0xff]
            %453 = vst [vmem:[%s441 + $0x28] sm:$0xff] %v452
            %v454 = vld [vmem:[%s440 + $0x30] sm:$0xff]
            %455 = vst [vmem:[%s441 + $0x30] sm:$0xff] %v454
            %v456 = vld [vmem:[%s440 + $0x38] sm:$0xff]
            %457 = vst [vmem:[%s441 + $0x38] sm:$0xff] %v456
            %v458 = vld [vmem:[%s440 + $0x40] sm:$0xff]
            %459 = vst [vmem:[%s441 + $0x40] sm:$0xff] %v458
            %v460 = vld [vmem:[%s440 + $0x48] sm:$0xff]
            %461 = vst [vmem:[%s441 + $0x48] sm:$0xff] %v460
            %v462 = vld [vmem:[%s440 + $0x50] sm:$0xff]
            %463 = vst [vmem:[%s441 + $0x50] sm:$0xff] %v462
            %v464 = vld [vmem:[%s440 + $0x58] sm:$0xff]
            %465 = vst [vmem:[%s441 + $0x58] sm:$0xff] %v464
            %v466 = vld [vmem:[%s440 + $0x60] sm:$0xff]
            %467 = vst [vmem:[%s441 + $0x60] sm:$0xff] %v466
            %v468 = vld [vmem:[%s440 + $0x68] sm:$0xff]
            %469 = vst [vmem:[%s441 + $0x68] sm:$0xff] %v468
            %v470 = vld [vmem:[%s440 + $0x70] sm:$0xff]
            %471 = vst [vmem:[%s441 + $0x70] sm:$0xff] %v470
            %v472 = vld [vmem:[%s440 + $0x78] sm:$0xff]
            %473 = vst [vmem:[%s441 + $0x78] sm:$0xff] %v472
            %v474 = vld [vmem:[%s440 + $0x80] sm:$0xff]
            %475 = vst [vmem:[%s441 + $0x80] sm:$0xff] %v474
            %v476 = vld [vmem:[%s440 + $0x88] sm:$0xff]
            %477 = vst [vmem:[%s441 + $0x88] sm:$0xff] %v476
            %v478 = vld [vmem:[%s440 + $0x90] sm:$0xff]
            %479 = vst [vmem:[%s441 + $0x90] sm:$0xff] %v478
            %v480 = vld [vmem:[%s440 + $0x98] sm:$0xff]
            %481 = vst [vmem:[%s441 + $0x98] sm:$0xff] %v480
            %v482 = vld [vmem:[%s440 + $0xa0] sm:$0xff]
            %483 = vst [vmem:[%s441 + $0xa0] sm:$0xff] %v482
            %v484 = vld [vmem:[%s440 + $0xa8] sm:$0xff]
            %485 = vst [vmem:[%s441 + $0xa8] sm:$0xff] %v484
            %v486 = vld [vmem:[%s440 + $0xb0] sm:$0xff]
            %487 = vst [vmem:[%s441 + $0xb0] sm:$0xff] %v486
            %v488 = vld [vmem:[%s440 + $0xb8] sm:$0xff]
            %489 = vst [vmem:[%s441 + $0xb8] sm:$0xff] %v488
            %v490 = vld [vmem:[%s440 + $0xc0] sm:$0xff]
            %491 = vst [vmem:[%s441 + $0xc0] sm:$0xff] %v490
            %v492 = vld [vmem:[%s440 + $0xc8] sm:$0xff]
            %493 = vst [vmem:[%s441 + $0xc8] sm:$0xff] %v492
            %v494 = vld [vmem:[%s440 + $0xd0] sm:$0xff]
            %495 = vst [vmem:[%s441 + $0xd0] sm:$0xff] %v494
            %v496 = vld [vmem:[%s440 + $0xd8] sm:$0xff]
            %497 = vst [vmem:[%s441 + $0xd8] sm:$0xff] %v496
            %v498 = vld [vmem:[%s440 + $0xe0] sm:$0xff]
            %499 = vst [vmem:[%s441 + $0xe0] sm:$0xff] %v498
            %v500 = vld [vmem:[%s440 + $0xe8] sm:$0xff]
            %501 = vst [vmem:[%s441 + $0xe8] sm:$0xff] %v500
            %v502 = vld [vmem:[%s440 + $0xf0] sm:$0xff]
            %503 = vst [vmem:[%s441 + $0xf0] sm:$0xff] %v502
            %v504 = vld [vmem:[%s440 + $0xf8] sm:$0xff]
            %505 = vst [vmem:[%s441 + $0xf8] sm:$0xff] %v504
          $region63: #{reverse.11} parent=57 // loop_footer
            %s439 = sadd.s32 1, %s435
          $region64: #{reverse.11} parent=57 // loop_footer_branch
            %434 = sbr.rel target = $region60
          $region65: #{reverse.11} parent=57 // loop_exit
            _
        $region58: #{reverse.11} parent=42 // pred_fallthru
          _
        // Predicated region
        $region66: #{reverse.11} parent=42 // pred_check
          _
        $region67: #{reverse.11} parent=42 // pred_check_branch
          %507 = sbr.rel target = $region69
        $region68: #{reverse.11} parent=42 // pred_region
          _
        $region69: #{reverse.11} parent=42 // pred_fallthru
          _
      $region43: #{reverse.11} parent=38 // pred_fallthru
        _
      // Predicated region
      $region44: #{reverse.11} parent=38 // pred_check
        _
      $region45: #{reverse.11} parent=38 // pred_check_branch
        %357 = sbr.rel target = $region47
      $region46: #{reverse.11} parent=38 // pred_region
        %s359 = ssub.s32 256, 1
        loop: start=0, step=1, limit=1
        $region48: #{reverse.11} parent=46 // loop_pre_header
          _
        $region49: #{reverse.11} parent=46 // loop_header
          %s361 = sphi 0, %s365
          %p362 = scmp.ge.s32.totalorder %s361, 1
          %s366 = sphi [#allocation1], [#allocation1]
          %s367 = sphi %s1, %s1
        $region50: #{reverse.11} parent=46 // loop_header_branch
          %364 = sbr.rel (%p362) target = $region54
        $region51: #{reverse.11} parent=46 // loop_body
          %v368 = vld [vmem:[%s366] sm:%s359]
          %369 = vst [vmem:[%s367] sm:%s359] %v368
          %v370 = vld [vmem:[%s366 + $0x8] sm:%s359]
          %371 = vst [vmem:[%s367 + $0x8] sm:%s359] %v370
          %v372 = vld [vmem:[%s366 + $0x10] sm:%s359]
          %373 = vst [vmem:[%s367 + $0x10] sm:%s359] %v372
          %v374 = vld [vmem:[%s366 + $0x18] sm:%s359]
          %375 = vst [vmem:[%s367 + $0x18] sm:%s359] %v374
          %v376 = vld [vmem:[%s366 + $0x20] sm:%s359]
          %377 = vst [vmem:[%s367 + $0x20] sm:%s359] %v376
          %v378 = vld [vmem:[%s366 + $0x28] sm:%s359]
          %379 = vst [vmem:[%s367 + $0x28] sm:%s359] %v378
          %v380 = vld [vmem:[%s366 + $0x30] sm:%s359]
          %381 = vst [vmem:[%s367 + $0x30] sm:%s359] %v380
          %v382 = vld [vmem:[%s366 + $0x38] sm:%s359]
          %383 = vst [vmem:[%s367 + $0x38] sm:%s359] %v382
          %v384 = vld [vmem:[%s366 + $0x40] sm:%s359]
          %385 = vst [vmem:[%s367 + $0x40] sm:%s359] %v384
          %v386 = vld [vmem:[%s366 + $0x48] sm:%s359]
          %387 = vst [vmem:[%s367 + $0x48] sm:%s359] %v386
          %v388 = vld [vmem:[%s366 + $0x50] sm:%s359]
          %389 = vst [vmem:[%s367 + $0x50] sm:%s359] %v388
          %v390 = vld [vmem:[%s366 + $0x58] sm:%s359]
          %391 = vst [vmem:[%s367 + $0x58] sm:%s359] %v390
          %v392 = vld [vmem:[%s366 + $0x60] sm:%s359]
          %393 = vst [vmem:[%s367 + $0x60] sm:%s359] %v392
          %v394 = vld [vmem:[%s366 + $0x68] sm:%s359]
          %395 = vst [vmem:[%s367 + $0x68] sm:%s359] %v394
          %v396 = vld [vmem:[%s366 + $0x70] sm:%s359]
          %397 = vst [vmem:[%s367 + $0x70] sm:%s359] %v396
          %v398 = vld [vmem:[%s366 + $0x78] sm:%s359]
          %399 = vst [vmem:[%s367 + $0x78] sm:%s359] %v398
          %v400 = vld [vmem:[%s366 + $0x80] sm:%s359]
          %401 = vst [vmem:[%s367 + $0x80] sm:%s359] %v400
          %v402 = vld [vmem:[%s366 + $0x88] sm:%s359]
          %403 = vst [vmem:[%s367 + $0x88] sm:%s359] %v402
          %v404 = vld [vmem:[%s366 + $0x90] sm:%s359]
          %405 = vst [vmem:[%s367 + $0x90] sm:%s359] %v404
          %v406 = vld [vmem:[%s366 + $0x98] sm:%s359]
          %407 = vst [vmem:[%s367 + $0x98] sm:%s359] %v406
          %v408 = vld [vmem:[%s366 + $0xa0] sm:%s359]
          %409 = vst [vmem:[%s367 + $0xa0] sm:%s359] %v408
          %v410 = vld [vmem:[%s366 + $0xa8] sm:%s359]
          %411 = vst [vmem:[%s367 + $0xa8] sm:%s359] %v410
          %v412 = vld [vmem:[%s366 + $0xb0] sm:%s359]
          %413 = vst [vmem:[%s367 + $0xb0] sm:%s359] %v412
          %v414 = vld [vmem:[%s366 + $0xb8] sm:%s359]
          %415 = vst [vmem:[%s367 + $0xb8] sm:%s359] %v414
          %v416 = vld [vmem:[%s366 + $0xc0] sm:%s359]
          %417 = vst [vmem:[%s367 + $0xc0] sm:%s359] %v416
          %v418 = vld [vmem:[%s366 + $0xc8] sm:%s359]
          %419 = vst [vmem:[%s367 + $0xc8] sm:%s359] %v418
          %v420 = vld [vmem:[%s366 + $0xd0] sm:%s359]
          %421 = vst [vmem:[%s367 + $0xd0] sm:%s359] %v420
          %v422 = vld [vmem:[%s366 + $0xd8] sm:%s359]
          %423 = vst [vmem:[%s367 + $0xd8] sm:%s359] %v422
          %v424 = vld [vmem:[%s366 + $0xe0] sm:%s359]
          %425 = vst [vmem:[%s367 + $0xe0] sm:%s359] %v424
          %v426 = vld [vmem:[%s366 + $0xe8] sm:%s359]
          %427 = vst [vmem:[%s367 + $0xe8] sm:%s359] %v426
          %v428 = vld [vmem:[%s366 + $0xf0] sm:%s359]
          %429 = vst [vmem:[%s367 + $0xf0] sm:%s359] %v428
          %v430 = vld [vmem:[%s366 + $0xf8] sm:%s359]
          %431 = vst [vmem:[%s367 + $0xf8] sm:%s359] %v430
        $region52: #{reverse.11} parent=46 // loop_footer
          %s365 = sadd.s32 1, %s361
        $region53: #{reverse.11} parent=46 // loop_footer_branch
          %360 = sbr.rel target = $region49
        $region54: #{reverse.11} parent=46 // loop_exit
          _
      $region47: #{reverse.11} parent=38 // pred_fallthru
        _
    $region39: #{reverse.11} parent=1 // pred_fallthru
      _
    %508 = vnop

// kernel: factor_fno2d_forward.15
$region0: #{factor_fno2d_forward.15}
  #allocation0 [shape = 'u32[]', space=smem, size = 0x4, offset = 0x4, fixed_abs, tag = 'smem constant byte address 0x4 - core index']
  #allocation1 [shape = 'u32[72,128]{1,0:T(1,128)}', space=vmem, size = 0x9000, scoped, tag = 'internal scratch']
  %s0 = inlined_call_operand.vmem [shape: f32[6,32,16], index: 0, kind: input, shape index: {}]
  %s1 = inlined_call_operand.vmem [shape: f32[6,16,16], index: 1, kind: input, shape index: {}]
  %s2 = inlined_call_operand.vmem [shape: f32[6,32,16], index: 2, kind: output, shape index: {}]
  %s3 = sld [smem:[#allocation0]]
  $region18: #{factor_fno2d_forward.15} parent=0
    _
  %s5 = ssub.s32 1, %s3
  %s6 = scalar_select 0, %s5, %s3
  // Predicated region
  $region2: #{factor_fno2d_forward.15} parent=0 // pred_check
    _
  $region3: #{factor_fno2d_forward.15} parent=0 // pred_check_branch
    %8 = sbr.rel (0) target = $region5
  $region4: #{factor_fno2d_forward.15} parent=0 // pred_region
    _
  $region5: #{factor_fno2d_forward.15} parent=0 // pred_fallthru
    _
  // Predicated region
  $region6: #{factor_fno2d_forward.15} parent=0 // pred_check
    _
  $region7: #{factor_fno2d_forward.15} parent=0 // pred_check_branch
    %10 = sbr.rel (0) target = $region9
  $region8: #{factor_fno2d_forward.15} parent=0 // pred_region
    _
  $region9: #{factor_fno2d_forward.15} parent=0 // pred_fallthru
    _
  %v11 = vld [vmem:[%s0] sm:$0xff]
  %v12 = vld [vmem:[%s0 + $0x8] sm:$0xff]
  %v13 = vld [vmem:[%s0 + $0x10] sm:$0xff]
  %v14 = vld [vmem:[%s0 + $0x18] sm:$0xff]
  %v15 = vld [vmem:[%s0 + $0x20] sm:$0xff]
  %v16 = vld [vmem:[%s0 + $0x28] sm:$0xff]
  %v17 = vld [vmem:[%s0 + $0x30] sm:$0xff]
  %v18 = vld [vmem:[%s0 + $0x38] sm:$0xff]
  %v19 = vld [vmem:[%s0 + $0x40] sm:$0xff]
  %v20 = vld [vmem:[%s0 + $0x48] sm:$0xff]
  %v21 = vld [vmem:[%s0 + $0x50] sm:$0xff]
  %v22 = vld [vmem:[%s0 + $0x58] sm:$0xff]
  %v23 = vld [vmem:[%s0 + $0x60] sm:$0xff]
  %v24 = vld [vmem:[%s0 + $0x68] sm:$0xff]
  %v25 = vld [vmem:[%s0 + $0x70] sm:$0xff]
  %v26 = vld [vmem:[%s0 + $0x78] sm:$0xff]
  %v27 = vld [vmem:[%s0 + $0x80] sm:$0xff]
  %v28 = vld [vmem:[%s0 + $0x88] sm:$0xff]
  %v29 = vld [vmem:[%s0 + $0x90] sm:$0xff]
  %v30 = vld [vmem:[%s0 + $0x98] sm:$0xff]
  %v31 = vld [vmem:[%s0 + $0xa0] sm:$0xff]
  %v32 = vld [vmem:[%s0 + $0xa8] sm:$0xff]
  %v33 = vld [vmem:[%s0 + $0xb0] sm:$0xff]
  %v34 = vld [vmem:[%s0 + $0xb8] sm:$0xff]
  %v35 = vld [vmem:[%s1] sm:$0xff]
  %v36 = vld [vmem:[%s1 + $0x8] sm:$0xff]
  %v37 = vld [vmem:[%s1 + $0x10] sm:$0xff]
  %v38 = vld [vmem:[%s1 + $0x18] sm:$0xff]
  %v39 = vld [vmem:[%s1 + $0x20] sm:$0xff]
  %v40 = vld [vmem:[%s1 + $0x28] sm:$0xff]
  %v41 = vld [vmem:[%s1 + $0x30] sm:$0xff]
  %v42 = vld [vmem:[%s1 + $0x38] sm:$0xff]
  %v43 = vld [vmem:[%s1 + $0x40] sm:$0xff]
  %v44 = vld [vmem:[%s1 + $0x48] sm:$0xff]
  %v45 = vld [vmem:[%s1 + $0x50] sm:$0xff]
  %v46 = vld [vmem:[%s1 + $0x58] sm:$0xff]
  %vm47 = vcmask 130048
  %v49 = vsel %vm47, %v11, 0
  %v52 = vsel %vm47, %v12, 0
  %v55 = vsel %vm47, %v13, 0
  %v58 = vsel %vm47, %v14, 0
  %60 = vmatpush.msra.mxu0 0.0
  %61 = vmatpush.msra.mxu0 0.0
  %62 = vmatpush.msra.mxu0 0.0
  %63 = vmatpush.msra.mxu0 0.0
  %64 = vmatpush.msra.mxu0 0.0
  %65 = vmatpush.msra.mxu0 0.0
  %66 = vmatpush.msra.mxu0 0.0
  %67 = vmatpush.msra.mxu0 0.0
  %68 = vmatpush.msra.mxu0 0.0
  %69 = vmatpush.msra.mxu0 0.0
  %70 = vmatpush.msra.mxu0 0.0
  %71 = vmatpush.msra.mxu0 0.0
  %72 = vmatpush.msra.mxu0 0.0
  %73 = vmatpush.msra.mxu0 0.0
  %74 = vmatpush.msra.mxu0 %v36
  %75 = vmatpush.msra.mxu0 %v35
  %76 = vmatmul.f32.gmra.mxu0 %v49
  %v77 = vpop.f32.mrf.mxu0
  %v78 = vadd.f32 0.0, %v77
  %79 = vmatmul.f32.gmra.mxu0 %v52
  %v80 = vpop.f32.mrf.mxu0
  %v81 = vadd.f32 0.0, %v80
  %82 = vmatmul.f32.gmra.mxu0 %v55
  %v83 = vpop.f32.mrf.mxu0
  %v84 = vadd.f32 0.0, %v83
  %85 = vmatmul.f32.gmra.mxu0 %v58
  %v86 = vpop.f32.mrf.mxu0
  %v87 = vadd.f32 0.0, %v86
  %88 = vdwg.mxu0
  %v90 = vsel %vm47, %v15, 0
  %v93 = vsel %vm47, %v16, 0
  %v96 = vsel %vm47, %v17, 0
  %v99 = vsel %vm47, %v18, 0
  %101 = vmatpush.msra.mxu0 0.0
  %102 = vmatpush.msra.mxu0 0.0
  %103 = vmatpush.msra.mxu0 0.0
  %104 = vmatpush.msra.mxu0 0.0
  %105 = vmatpush.msra.mxu0 0.0
  %106 = vmatpush.msra.mxu0 0.0
  %107 = vmatpush.msra.mxu0 0.0
  %108 = vmatpush.msra.mxu0 0.0
  %109 = vmatpush.msra.mxu0 0.0
  %110 = vmatpush.msra.mxu0 0.0
  %111 = vmatpush.msra.mxu0 0.0
  %112 = vmatpush.msra.mxu0 0.0
  %113 = vmatpush.msra.mxu0 0.0
  %114 = vmatpush.msra.mxu0 0.0
  %115 = vmatpush.msra.mxu0 %v38
  %116 = vmatpush.msra.mxu0 %v37
  %117 = vmatmul.f32.gmra.mxu0 %v90
  %v118 = vpop.f32.mrf.mxu0
  %v119 = vadd.f32 0.0, %v118
  %120 = vmatmul.f32.gmra.mxu0 %v93
  %v121 = vpop.f32.mrf.mxu0
  %v122 = vadd.f32 0.0, %v121
  %123 = vmatmul.f32.gmra.mxu0 %v96
  %v124 = vpop.f32.mrf.mxu0
  %v125 = vadd.f32 0.0, %v124
  %126 = vmatmul.f32.gmra.mxu0 %v99
  %v127 = vpop.f32.mrf.mxu0
  %v128 = vadd.f32 0.0, %v127
  %129 = vdwg.mxu0
  %v131 = vsel %vm47, %v19, 0
  %v134 = vsel %vm47, %v20, 0
  %v137 = vsel %vm47, %v21, 0
  %v140 = vsel %vm47, %v22, 0
  %142 = vmatpush.msra.mxu0 0.0
  %143 = vmatpush.msra.mxu0 0.0
  %144 = vmatpush.msra.mxu0 0.0
  %145 = vmatpush.msra.mxu0 0.0
  %146 = vmatpush.msra.mxu0 0.0
  %147 = vmatpush.msra.mxu0 0.0
  %148 = vmatpush.msra.mxu0 0.0
  %149 = vmatpush.msra.mxu0 0.0
  %150 = vmatpush.msra.mxu0 0.0
  %151 = vmatpush.msra.mxu0 0.0
  %152 = vmatpush.msra.mxu0 0.0
  %153 = vmatpush.msra.mxu0 0.0
  %154 = vmatpush.msra.mxu0 0.0
  %155 = vmatpush.msra.mxu0 0.0
  %156 = vmatpush.msra.mxu0 %v40
  %157 = vmatpush.msra.mxu0 %v39
  %158 = vmatmul.f32.gmra.mxu0 %v131
  %v159 = vpop.f32.mrf.mxu0
  %v160 = vadd.f32 0.0, %v159
  %161 = vmatmul.f32.gmra.mxu0 %v134
  %v162 = vpop.f32.mrf.mxu0
  %v163 = vadd.f32 0.0, %v162
  %164 = vmatmul.f32.gmra.mxu0 %v137
  %v165 = vpop.f32.mrf.mxu0
  %v166 = vadd.f32 0.0, %v165
  %167 = vmatmul.f32.gmra.mxu0 %v140
  %v168 = vpop.f32.mrf.mxu0
  %v169 = vadd.f32 0.0, %v168
  %170 = vdwg.mxu0
  %v172 = vsel %vm47, %v23, 0
  %v175 = vsel %vm47, %v24, 0
  %v178 = vsel %vm47, %v25, 0
  %v181 = vsel %vm47, %v26, 0
  %183 = vmatpush.msra.mxu0 0.0
  %184 = vmatpush.msra.mxu0 0.0
  %185 = vmatpush.msra.mxu0 0.0
  %186 = vmatpush.msra.mxu0 0.0
  %187 = vmatpush.msra.mxu0 0.0
  %188 = vmatpush.msra.mxu0 0.0
  %189 = vmatpush.msra.mxu0 0.0
  %190 = vmatpush.msra.mxu0 0.0
  %191 = vmatpush.msra.mxu0 0.0
  %192 = vmatpush.msra.mxu0 0.0
  %193 = vmatpush.msra.mxu0 0.0
  %194 = vmatpush.msra.mxu0 0.0
  %195 = vmatpush.msra.mxu0 0.0
  %196 = vmatpush.msra.mxu0 0.0
  %197 = vmatpush.msra.mxu0 %v42
  %198 = vmatpush.msra.mxu0 %v41
  %199 = vmatmul.f32.gmra.mxu0 %v172
  %v200 = vpop.f32.mrf.mxu0
  %v201 = vadd.f32 0.0, %v200
  %202 = vmatmul.f32.gmra.mxu0 %v175
  %v203 = vpop.f32.mrf.mxu0
  %v204 = vadd.f32 0.0, %v203
  %205 = vmatmul.f32.gmra.mxu0 %v178
  %v206 = vpop.f32.mrf.mxu0
  %v207 = vadd.f32 0.0, %v206
  %208 = vmatmul.f32.gmra.mxu0 %v181
  %v209 = vpop.f32.mrf.mxu0
  %v210 = vadd.f32 0.0, %v209
  %211 = vdwg.mxu0
  %v213 = vsel %vm47, %v27, 0
  %v216 = vsel %vm47, %v28, 0
  %v219 = vsel %vm47, %v29, 0
  %v222 = vsel %vm47, %v30, 0
  %224 = vmatpush.msra.mxu0 0.0
  %225 = vmatpush.msra.mxu0 0.0
  %226 = vmatpush.msra.mxu0 0.0
  %227 = vmatpush.msra.mxu0 0.0
  %228 = vmatpush.msra.mxu0 0.0
  %229 = vmatpush.msra.mxu0 0.0
  %230 = vmatpush.msra.mxu0 0.0
  %231 = vmatpush.msra.mxu0 0.0
  %232 = vmatpush.msra.mxu0 0.0
  %233 = vmatpush.msra.mxu0 0.0
  %234 = vmatpush.msra.mxu0 0.0
  %235 = vmatpush.msra.mxu0 0.0
  %236 = vmatpush.msra.mxu0 0.0
  %237 = vmatpush.msra.mxu0 0.0
  %238 = vmatpush.msra.mxu0 %v44
  %239 = vmatpush.msra.mxu0 %v43
  %240 = vmatmul.f32.gmra.mxu0 %v213
  %v241 = vpop.f32.mrf.mxu0
  %v242 = vadd.f32 0.0, %v241
  %243 = vmatmul.f32.gmra.mxu0 %v216
  %v244 = vpop.f32.mrf.mxu0
  %v245 = vadd.f32 0.0, %v244
  %246 = vmatmul.f32.gmra.mxu0 %v219
  %v247 = vpop.f32.mrf.mxu0
  %v248 = vadd.f32 0.0, %v247
  %249 = vmatmul.f32.gmra.mxu0 %v222
  %v250 = vpop.f32.mrf.mxu0
  %v251 = vadd.f32 0.0, %v250
  %252 = vdwg.mxu0
  %v254 = vsel %vm47, %v31, 0
  %v257 = vsel %vm47, %v32, 0
  %v260 = vsel %vm47, %v33, 0
  %v263 = vsel %vm47, %v34, 0
  %265 = vmatpush.msra.mxu0 0.0
  %266 = vmatpush.msra.mxu0 0.0
  %267 = vmatpush.msra.mxu0 0.0
  %268 = vmatpush.msra.mxu0 0.0
  %269 = vmatpush.msra.mxu0 0.0
  %270 = vmatpush.msra.mxu0 0.0
  %271 = vmatpush.msra.mxu0 0.0
  %272 = vmatpush.msra.mxu0 0.0
  %273 = vmatpush.msra.mxu0 0.0
  %274 = vmatpush.msra.mxu0 0.0
  %275 = vmatpush.msra.mxu0 0.0
  %276 = vmatpush.msra.mxu0 0.0
  %277 = vmatpush.msra.mxu0 0.0
  %278 = vmatpush.msra.mxu0 0.0
  %279 = vmatpush.msra.mxu0 %v46
  %280 = vmatpush.msra.mxu0 %v45
  %281 = vmatmul.f32.gmra.mxu0 %v254
  %v282 = vpop.f32.mrf.mxu0
  %v283 = vadd.f32 0.0, %v282
  %284 = vmatmul.f32.gmra.mxu0 %v257
  %v285 = vpop.f32.mrf.mxu0
  %v286 = vadd.f32 0.0, %v285
  %287 = vmatmul.f32.gmra.mxu0 %v260
  %v288 = vpop.f32.mrf.mxu0
  %v289 = vadd.f32 0.0, %v288
  %290 = vmatmul.f32.gmra.mxu0 %v263
  %v291 = vpop.f32.mrf.mxu0
  %v292 = vadd.f32 0.0, %v291
  %293 = vdwg.mxu0
  %294 = vst.msk [vmem:[%s2] sm:$0xff] %vm47, %v78
  %295 = vst.msk [vmem:[%s2 + $0x8] sm:$0xff] %vm47, %v81
  %296 = vst.msk [vmem:[%s2 + $0x10] sm:$0xff] %vm47, %v84
  %297 = vst.msk [vmem:[%s2 + $0x18] sm:$0xff] %vm47, %v87
  %298 = vst.msk [vmem:[%s2 + $0x20] sm:$0xff] %vm47, %v119
  %299 = vst.msk [vmem:[%s2 + $0x28] sm:$0xff] %vm47, %v122
  %300 = vst.msk [vmem:[%s2 + $0x30] sm:$0xff] %vm47, %v125
  %301 = vst.msk [vmem:[%s2 + $0x38] sm:$0xff] %vm47, %v128
  %302 = vst.msk [vmem:[%s2 + $0x40] sm:$0xff] %vm47, %v160
  %303 = vst.msk [vmem:[%s2 + $0x48] sm:$0xff] %vm47, %v163
  %304 = vst.msk [vmem:[%s2 + $0x50] sm:$0xff] %vm47, %v166
  %305 = vst.msk [vmem:[%s2 + $0x58] sm:$0xff] %vm47, %v169
  %306 = vst.msk [vmem:[%s2 + $0x60] sm:$0xff] %vm47, %v201
  %307 = vst.msk [vmem:[%s2 + $0x68] sm:$0xff] %vm47, %v204
  %308 = vst.msk [vmem:[%s2 + $0x70] sm:$0xff] %vm47, %v207
  %309 = vst.msk [vmem:[%s2 + $0x78] sm:$0xff] %vm47, %v210
  %310 = vst.msk [vmem:[%s2 + $0x80] sm:$0xff] %vm47, %v242
  %311 = vst.msk [vmem:[%s2 + $0x88] sm:$0xff] %vm47, %v245
  %312 = vst.msk [vmem:[%s2 + $0x90] sm:$0xff] %vm47, %v248
  %313 = vst.msk [vmem:[%s2 + $0x98] sm:$0xff] %vm47, %v251
  %314 = vst.msk [vmem:[%s2 + $0xa0] sm:$0xff] %vm47, %v283
  %315 = vst.msk [vmem:[%s2 + $0xa8] sm:$0xff] %vm47, %v286
  %316 = vst.msk [vmem:[%s2 + $0xb0] sm:$0xff] %vm47, %v289
  %317 = vst.msk [vmem:[%s2 + $0xb8] sm:$0xff] %vm47, %v292
  // Predicated region
  $region10: #{factor_fno2d_forward.15} parent=0 // pred_check
    _
  $region11: #{factor_fno2d_forward.15} parent=0 // pred_check_branch
    %319 = sbr.rel (0) target = $region13
  $region12: #{factor_fno2d_forward.15} parent=0 // pred_region
    _
  $region13: #{factor_fno2d_forward.15} parent=0 // pred_fallthru
    _
  // Predicated region
  $region14: #{factor_fno2d_forward.15} parent=0 // pred_check
    _
  $region15: #{factor_fno2d_forward.15} parent=0 // pred_check_branch
    %321 = sbr.rel (0) target = $region17
  $region16: #{factor_fno2d_forward.15} parent=0 // pred_region
    _
  $region17: #{factor_fno2d_forward.15} parent=0 // pred_fallthru
    _

// kernel: factor_fno2d_forward.21
$region0: #{factor_fno2d_forward.21}
  #allocation0 [shape = 'u32[]', space=smem, size = 0x4, offset = 0x4, fixed_abs, tag = 'smem constant byte address 0x4 - core index']
  #allocation1 [shape = 'u32[72,128]{1,0:T(1,128)}', space=vmem, size = 0x9000, scoped, tag = 'internal scratch']
  %s0 = inlined_call_operand.vmem [shape: f32[512,8], index: 0, kind: input, shape index: {}]
  %s1 = inlined_call_operand.vmem [shape: f32[8,16], index: 1, kind: input, shape index: {}]
  %s2 = inlined_call_operand.vmem [shape: f32[1,16], index: 2, kind: input, shape index: {}]
  %s3 = inlined_call_operand.vmem [shape: f32[16,2], index: 3, kind: input, shape index: {}]
  %s4 = inlined_call_operand.vmem [shape: f32[1,2], index: 4, kind: input, shape index: {}]
  %s5 = inlined_call_operand.vmem [shape: f32[512,2], index: 5, kind: output, shape index: {}]
  %s6 = sld [smem:[#allocation0]]
  $region30: #{factor_fno2d_forward.21} parent=0
    _
  %s8 = ssub.s32 1, %s6
  %s9 = scalar_select 0, %s8, %s6
  // Predicated region
  $region2: #{factor_fno2d_forward.21} parent=0 // pred_check
    _
  $region3: #{factor_fno2d_forward.21} parent=0 // pred_check_branch
    %11 = sbr.rel (0) target = $region5
  $region4: #{factor_fno2d_forward.21} parent=0 // pred_region
    _
  $region5: #{factor_fno2d_forward.21} parent=0 // pred_fallthru
    _
  // Predicated region
  $region6: #{factor_fno2d_forward.21} parent=0 // pred_check
    _
  $region7: #{factor_fno2d_forward.21} parent=0 // pred_check_branch
    %13 = sbr.rel (0) target = $region9
  $region8: #{factor_fno2d_forward.21} parent=0 // pred_region
    _
  $region9: #{factor_fno2d_forward.21} parent=0 // pred_fallthru
    _
  // Predicated region
  $region10: #{factor_fno2d_forward.21} parent=0 // pred_check
    _
  $region11: #{factor_fno2d_forward.21} parent=0 // pred_check_branch
    %15 = sbr.rel (0) target = $region13
  $region12: #{factor_fno2d_forward.21} parent=0 // pred_region
    _
  $region13: #{factor_fno2d_forward.21} parent=0 // pred_fallthru
    _
  // Predicated region
  $region14: #{factor_fno2d_forward.21} parent=0 // pred_check
    _
  $region15: #{factor_fno2d_forward.21} parent=0 // pred_check_branch
    %17 = sbr.rel (0) target = $region17
  $region16: #{factor_fno2d_forward.21} parent=0 // pred_region
    _
  $region17: #{factor_fno2d_forward.21} parent=0 // pred_fallthru
    _
  // Predicated region
  $region18: #{factor_fno2d_forward.21} parent=0 // pred_check
    _
  $region19: #{factor_fno2d_forward.21} parent=0 // pred_check_branch
    %19 = sbr.rel (0) target = $region21
  $region20: #{factor_fno2d_forward.21} parent=0 // pred_region
    _
  $region21: #{factor_fno2d_forward.21} parent=0 // pred_fallthru
    _
  %v20 = vld [vmem:[%s0] sm:$0xff]
  %v21 = vld [vmem:[%s0 + $0x8] sm:$0xff]
  %v22 = vld [vmem:[%s0 + $0x10] sm:$0xff]
  %v23 = vld [vmem:[%s0 + $0x18] sm:$0xff]
  %v24 = vld [vmem:[%s0 + $0x20] sm:$0xff]
  %v25 = vld [vmem:[%s0 + $0x28] sm:$0xff]
  %v26 = vld [vmem:[%s0 + $0x30] sm:$0xff]
  %v27 = vld [vmem:[%s0 + $0x38] sm:$0xff]
  %v28 = vld [vmem:[%s0 + $0x40] sm:$0xff]
  %v29 = vld [vmem:[%s0 + $0x48] sm:$0xff]
  %v30 = vld [vmem:[%s0 + $0x50] sm:$0xff]
  %v31 = vld [vmem:[%s0 + $0x58] sm:$0xff]
  %v32 = vld [vmem:[%s0 + $0x60] sm:$0xff]
  %v33 = vld [vmem:[%s0 + $0x68] sm:$0xff]
  %v34 = vld [vmem:[%s0 + $0x70] sm:$0xff]
  %v35 = vld [vmem:[%s0 + $0x78] sm:$0xff]
  %v36 = vld [vmem:[%s0 + $0x80] sm:$0xff]
  %v37 = vld [vmem:[%s0 + $0x88] sm:$0xff]
  %v38 = vld [vmem:[%s0 + $0x90] sm:$0xff]
  %v39 = vld [vmem:[%s0 + $0x98] sm:$0xff]
  %v40 = vld [vmem:[%s0 + $0xa0] sm:$0xff]
  %v41 = vld [vmem:[%s0 + $0xa8] sm:$0xff]
  %v42 = vld [vmem:[%s0 + $0xb0] sm:$0xff]
  %v43 = vld [vmem:[%s0 + $0xb8] sm:$0xff]
  %v44 = vld [vmem:[%s0 + $0xc0] sm:$0xff]
  %v45 = vld [vmem:[%s0 + $0xc8] sm:$0xff]
  %v46 = vld [vmem:[%s0 + $0xd0] sm:$0xff]
  %v47 = vld [vmem:[%s0 + $0xd8] sm:$0xff]
  %v48 = vld [vmem:[%s0 + $0xe0] sm:$0xff]
  %v49 = vld [vmem:[%s0 + $0xe8] sm:$0xff]
  %v50 = vld [vmem:[%s0 + $0xf0] sm:$0xff]
  %v51 = vld [vmem:[%s0 + $0xf8] sm:$0xff]
  %v52 = vld [vmem:[%s0 + $0x100] sm:$0xff]
  %v53 = vld [vmem:[%s0 + $0x108] sm:$0xff]
  %v54 = vld [vmem:[%s0 + $0x110] sm:$0xff]
  %v55 = vld [vmem:[%s0 + $0x118] sm:$0xff]
  %v56 = vld [vmem:[%s0 + $0x120] sm:$0xff]
  %v57 = vld [vmem:[%s0 + $0x128] sm:$0xff]
  %v58 = vld [vmem:[%s0 + $0x130] sm:$0xff]
  %v59 = vld [vmem:[%s0 + $0x138] sm:$0xff]
  %v60 = vld [vmem:[%s0 + $0x140] sm:$0xff]
  %v61 = vld [vmem:[%s0 + $0x148] sm:$0xff]
  %v62 = vld [vmem:[%s0 + $0x150] sm:$0xff]
  %v63 = vld [vmem:[%s0 + $0x158] sm:$0xff]
  %v64 = vld [vmem:[%s0 + $0x160] sm:$0xff]
  %v65 = vld [vmem:[%s0 + $0x168] sm:$0xff]
  %v66 = vld [vmem:[%s0 + $0x170] sm:$0xff]
  %v67 = vld [vmem:[%s0 + $0x178] sm:$0xff]
  %v68 = vld [vmem:[%s0 + $0x180] sm:$0xff]
  %v69 = vld [vmem:[%s0 + $0x188] sm:$0xff]
  %v70 = vld [vmem:[%s0 + $0x190] sm:$0xff]
  %v71 = vld [vmem:[%s0 + $0x198] sm:$0xff]
  %v72 = vld [vmem:[%s0 + $0x1a0] sm:$0xff]
  %v73 = vld [vmem:[%s0 + $0x1a8] sm:$0xff]
  %v74 = vld [vmem:[%s0 + $0x1b0] sm:$0xff]
  %v75 = vld [vmem:[%s0 + $0x1b8] sm:$0xff]
  %v76 = vld [vmem:[%s0 + $0x1c0] sm:$0xff]
  %v77 = vld [vmem:[%s0 + $0x1c8] sm:$0xff]
  %v78 = vld [vmem:[%s0 + $0x1d0] sm:$0xff]
  %v79 = vld [vmem:[%s0 + $0x1d8] sm:$0xff]
  %v80 = vld [vmem:[%s0 + $0x1e0] sm:$0xff]
  %v81 = vld [vmem:[%s0 + $0x1e8] sm:$0xff]
  %v82 = vld [vmem:[%s0 + $0x1f0] sm:$0xff]
  %v83 = vld [vmem:[%s0 + $0x1f8] sm:$0xff]
  %v84 = vld [vmem:[%s1] sm:$0xff]
  %v85 = vld [vmem:[%s2] sm:$0x1]
  %v87 = vperm.slane %v85, 0
  %vm89 = vcmask 64512
  %v91 = vsel %vm89, %v20, 0
  %v94 = vsel %vm89, %v21, 0
  %v97 = vsel %vm89, %v22, 0
  %v100 = vsel %vm89, %v23, 0
  %v103 = vsel %vm89, %v24, 0
  %v106 = vsel %vm89, %v25, 0
  %v109 = vsel %vm89, %v26, 0
  %v112 = vsel %vm89, %v27, 0
  %v115 = vsel %vm89, %v28, 0
  %v118 = vsel %vm89, %v29, 0
  %v121 = vsel %vm89, %v30, 0
  %v124 = vsel %vm89, %v31, 0
  %v127 = vsel %vm89, %v32, 0
  %v130 = vsel %vm89, %v33, 0
  %v133 = vsel %vm89, %v34, 0
  %v136 = vsel %vm89, %v35, 0
  %v139 = vsel %vm89, %v36, 0
  %v142 = vsel %vm89, %v37, 0
  %v145 = vsel %vm89, %v38, 0
  %v148 = vsel %vm89, %v39, 0
  %v151 = vsel %vm89, %v40, 0
  %v154 = vsel %vm89, %v41, 0
  %v157 = vsel %vm89, %v42, 0
  %v160 = vsel %vm89, %v43, 0
  %v163 = vsel %vm89, %v44, 0
  %v166 = vsel %vm89, %v45, 0
  %v169 = vsel %vm89, %v46, 0
  %v172 = vsel %vm89, %v47, 0
  %v175 = vsel %vm89, %v48, 0
  %v178 = vsel %vm89, %v49, 0
  %v181 = vsel %vm89, %v50, 0
  %v184 = vsel %vm89, %v51, 0
  %v187 = vsel %vm89, %v52, 0
  %v190 = vsel %vm89, %v53, 0
  %v193 = vsel %vm89, %v54, 0
  %v196 = vsel %vm89, %v55, 0
  %v199 = vsel %vm89, %v56, 0
  %v202 = vsel %vm89, %v57, 0
  %v205 = vsel %vm89, %v58, 0
  %v208 = vsel %vm89, %v59, 0
  %v211 = vsel %vm89, %v60, 0
  %v214 = vsel %vm89, %v61, 0
  %v217 = vsel %vm89, %v62, 0
  %v220 = vsel %vm89, %v63, 0
  %v223 = vsel %vm89, %v64, 0
  %v226 = vsel %vm89, %v65, 0
  %v229 = vsel %vm89, %v66, 0
  %v232 = vsel %vm89, %v67, 0
  %v235 = vsel %vm89, %v68, 0
  %v238 = vsel %vm89, %v69, 0
  %v241 = vsel %vm89, %v70, 0
  %v244 = vsel %vm89, %v71, 0
  %v247 = vsel %vm89, %v72, 0
  %v250 = vsel %vm89, %v73, 0
  %v253 = vsel %vm89, %v74, 0
  %v256 = vsel %vm89, %v75, 0
  %v259 = vsel %vm89, %v76, 0
  %v262 = vsel %vm89, %v77, 0
  %v265 = vsel %vm89, %v78, 0
  %v268 = vsel %vm89, %v79, 0
  %v271 = vsel %vm89, %v80, 0
  %v274 = vsel %vm89, %v81, 0
  %v277 = vsel %vm89, %v82, 0
  %v280 = vsel %vm89, %v83, 0
  %282 = vmatpush.msra.mxu0 0.0
  %283 = vmatpush.msra.mxu0 0.0
  %284 = vmatpush.msra.mxu0 0.0
  %285 = vmatpush.msra.mxu0 0.0
  %286 = vmatpush.msra.mxu0 0.0
  %287 = vmatpush.msra.mxu0 0.0
  %288 = vmatpush.msra.mxu0 0.0
  %289 = vmatpush.msra.mxu0 0.0
  %290 = vmatpush.msra.mxu0 0.0
  %291 = vmatpush.msra.mxu0 0.0
  %292 = vmatpush.msra.mxu0 0.0
  %293 = vmatpush.msra.mxu0 0.0
  %294 = vmatpush.msra.mxu0 0.0
  %295 = vmatpush.msra.mxu0 0.0
  %296 = vmatpush.msra.mxu0 0.0
  %297 = vmatpush.msra.mxu0 %v84
  %298 = vmatmul.f32.gmra.mxu0 %v91
  %v299 = vpop.f32.mrf.mxu0
  %v300 = vadd.f32 %v87, %v299
  %301 = vmatmul.f32.gmra.mxu0 %v94
  %v302 = vpop.f32.mrf.mxu0
  %v303 = vadd.f32 %v87, %v302
  %304 = vmatmul.f32.gmra.mxu0 %v97
  %v305 = vpop.f32.mrf.mxu0
  %v306 = vadd.f32 %v87, %v305
  %307 = vmatmul.f32.gmra.mxu0 %v100
  %v308 = vpop.f32.mrf.mxu0
  %v309 = vadd.f32 %v87, %v308
  %310 = vmatmul.f32.gmra.mxu0 %v103
  %v311 = vpop.f32.mrf.mxu0
  %v312 = vadd.f32 %v87, %v311
  %313 = vmatmul.f32.gmra.mxu0 %v106
  %v314 = vpop.f32.mrf.mxu0
  %v315 = vadd.f32 %v87, %v314
  %316 = vmatmul.f32.gmra.mxu0 %v109
  %v317 = vpop.f32.mrf.mxu0
  %v318 = vadd.f32 %v87, %v317
  %319 = vmatmul.f32.gmra.mxu0 %v112
  %v320 = vpop.f32.mrf.mxu0
  %v321 = vadd.f32 %v87, %v320
  %322 = vmatmul.f32.gmra.mxu0 %v115
  %v323 = vpop.f32.mrf.mxu0
  %v324 = vadd.f32 %v87, %v323
  %325 = vmatmul.f32.gmra.mxu0 %v118
  %v326 = vpop.f32.mrf.mxu0
  %v327 = vadd.f32 %v87, %v326
  %328 = vmatmul.f32.gmra.mxu0 %v121
  %v329 = vpop.f32.mrf.mxu0
  %v330 = vadd.f32 %v87, %v329
  %331 = vmatmul.f32.gmra.mxu0 %v124
  %v332 = vpop.f32.mrf.mxu0
  %v333 = vadd.f32 %v87, %v332
  %334 = vmatmul.f32.gmra.mxu0 %v127
  %v335 = vpop.f32.mrf.mxu0
  %v336 = vadd.f32 %v87, %v335
  %337 = vmatmul.f32.gmra.mxu0 %v130
  %v338 = vpop.f32.mrf.mxu0
  %v339 = vadd.f32 %v87, %v338
  %340 = vmatmul.f32.gmra.mxu0 %v133
  %v341 = vpop.f32.mrf.mxu0
  %v342 = vadd.f32 %v87, %v341
  %343 = vmatmul.f32.gmra.mxu0 %v136
  %v344 = vpop.f32.mrf.mxu0
  %v345 = vadd.f32 %v87, %v344
  %346 = vmatmul.f32.gmra.mxu0 %v139
  %v347 = vpop.f32.mrf.mxu0
  %v348 = vadd.f32 %v87, %v347
  %349 = vmatmul.f32.gmra.mxu0 %v142
  %v350 = vpop.f32.mrf.mxu0
  %v351 = vadd.f32 %v87, %v350
  %352 = vmatmul.f32.gmra.mxu0 %v145
  %v353 = vpop.f32.mrf.mxu0
  %v354 = vadd.f32 %v87, %v353
  %355 = vmatmul.f32.gmra.mxu0 %v148
  %v356 = vpop.f32.mrf.mxu0
  %v357 = vadd.f32 %v87, %v356
  %358 = vmatmul.f32.gmra.mxu0 %v151
  %v359 = vpop.f32.mrf.mxu0
  %v360 = vadd.f32 %v87, %v359
  %361 = vmatmul.f32.gmra.mxu0 %v154
  %v362 = vpop.f32.mrf.mxu0
  %v363 = vadd.f32 %v87, %v362
  %364 = vmatmul.f32.gmra.mxu0 %v157
  %v365 = vpop.f32.mrf.mxu0
  %v366 = vadd.f32 %v87, %v365
  %367 = vmatmul.f32.gmra.mxu0 %v160
  %v368 = vpop.f32.mrf.mxu0
  %v369 = vadd.f32 %v87, %v368
  %370 = vmatmul.f32.gmra.mxu0 %v163
  %v371 = vpop.f32.mrf.mxu0
  %v372 = vadd.f32 %v87, %v371
  %373 = vmatmul.f32.gmra.mxu0 %v166
  %v374 = vpop.f32.mrf.mxu0
  %v375 = vadd.f32 %v87, %v374
  %376 = vmatmul.f32.gmra.mxu0 %v169
  %v377 = vpop.f32.mrf.mxu0
  %v378 = vadd.f32 %v87, %v377
  %379 = vmatmul.f32.gmra.mxu0 %v172
  %v380 = vpop.f32.mrf.mxu0
  %v381 = vadd.f32 %v87, %v380
  %382 = vmatmul.f32.gmra.mxu0 %v175
  %v383 = vpop.f32.mrf.mxu0
  %v384 = vadd.f32 %v87, %v383
  %385 = vmatmul.f32.gmra.mxu0 %v178
  %v386 = vpop.f32.mrf.mxu0
  %v387 = vadd.f32 %v87, %v386
  %388 = vmatmul.f32.gmra.mxu0 %v181
  %v389 = vpop.f32.mrf.mxu0
  %v390 = vadd.f32 %v87, %v389
  %391 = vmatmul.f32.gmra.mxu0 %v184
  %v392 = vpop.f32.mrf.mxu0
  %v393 = vadd.f32 %v87, %v392
  %394 = vmatmul.f32.gmra.mxu0 %v187
  %v395 = vpop.f32.mrf.mxu0
  %v396 = vadd.f32 %v87, %v395
  %397 = vmatmul.f32.gmra.mxu0 %v190
  %v398 = vpop.f32.mrf.mxu0
  %v399 = vadd.f32 %v87, %v398
  %400 = vmatmul.f32.gmra.mxu0 %v193
  %v401 = vpop.f32.mrf.mxu0
  %v402 = vadd.f32 %v87, %v401
  %403 = vmatmul.f32.gmra.mxu0 %v196
  %v404 = vpop.f32.mrf.mxu0
  %v405 = vadd.f32 %v87, %v404
  %406 = vmatmul.f32.gmra.mxu0 %v199
  %v407 = vpop.f32.mrf.mxu0
  %v408 = vadd.f32 %v87, %v407
  %409 = vmatmul.f32.gmra.mxu0 %v202
  %v410 = vpop.f32.mrf.mxu0
  %v411 = vadd.f32 %v87, %v410
  %412 = vmatmul.f32.gmra.mxu0 %v205
  %v413 = vpop.f32.mrf.mxu0
  %v414 = vadd.f32 %v87, %v413
  %415 = vmatmul.f32.gmra.mxu0 %v208
  %v416 = vpop.f32.mrf.mxu0
  %v417 = vadd.f32 %v87, %v416
  %418 = vmatmul.f32.gmra.mxu0 %v211
  %v419 = vpop.f32.mrf.mxu0
  %v420 = vadd.f32 %v87, %v419
  %421 = vmatmul.f32.gmra.mxu0 %v214
  %v422 = vpop.f32.mrf.mxu0
  %v423 = vadd.f32 %v87, %v422
  %424 = vmatmul.f32.gmra.mxu0 %v217
  %v425 = vpop.f32.mrf.mxu0
  %v426 = vadd.f32 %v87, %v425
  %427 = vmatmul.f32.gmra.mxu0 %v220
  %v428 = vpop.f32.mrf.mxu0
  %v429 = vadd.f32 %v87, %v428
  %430 = vmatmul.f32.gmra.mxu0 %v223
  %v431 = vpop.f32.mrf.mxu0
  %v432 = vadd.f32 %v87, %v431
  %433 = vmatmul.f32.gmra.mxu0 %v226
  %v434 = vpop.f32.mrf.mxu0
  %v435 = vadd.f32 %v87, %v434
  %436 = vmatmul.f32.gmra.mxu0 %v229
  %v437 = vpop.f32.mrf.mxu0
  %v438 = vadd.f32 %v87, %v437
  %439 = vmatmul.f32.gmra.mxu0 %v232
  %v440 = vpop.f32.mrf.mxu0
  %v441 = vadd.f32 %v87, %v440
  %442 = vmatmul.f32.gmra.mxu0 %v235
  %v443 = vpop.f32.mrf.mxu0
  %v444 = vadd.f32 %v87, %v443
  %445 = vmatmul.f32.gmra.mxu0 %v238
  %v446 = vpop.f32.mrf.mxu0
  %v447 = vadd.f32 %v87, %v446
  %448 = vmatmul.f32.gmra.mxu0 %v241
  %v449 = vpop.f32.mrf.mxu0
  %v450 = vadd.f32 %v87, %v449
  %451 = vmatmul.f32.gmra.mxu0 %v244
  %v452 = vpop.f32.mrf.mxu0
  %v453 = vadd.f32 %v87, %v452
  %454 = vmatmul.f32.gmra.mxu0 %v247
  %v455 = vpop.f32.mrf.mxu0
  %v456 = vadd.f32 %v87, %v455
  %457 = vmatmul.f32.gmra.mxu0 %v250
  %v458 = vpop.f32.mrf.mxu0
  %v459 = vadd.f32 %v87, %v458
  %460 = vmatmul.f32.gmra.mxu0 %v253
  %v461 = vpop.f32.mrf.mxu0
  %v462 = vadd.f32 %v87, %v461
  %463 = vmatmul.f32.gmra.mxu0 %v256
  %v464 = vpop.f32.mrf.mxu0
  %v465 = vadd.f32 %v87, %v464
  %466 = vmatmul.f32.gmra.mxu0 %v259
  %v467 = vpop.f32.mrf.mxu0
  %v468 = vadd.f32 %v87, %v467
  %469 = vmatmul.f32.gmra.mxu0 %v262
  %v470 = vpop.f32.mrf.mxu0
  %v471 = vadd.f32 %v87, %v470
  %472 = vmatmul.f32.gmra.mxu0 %v265
  %v473 = vpop.f32.mrf.mxu0
  %v474 = vadd.f32 %v87, %v473
  %475 = vmatmul.f32.gmra.mxu0 %v268
  %v476 = vpop.f32.mrf.mxu0
  %v477 = vadd.f32 %v87, %v476
  %478 = vmatmul.f32.gmra.mxu0 %v271
  %v479 = vpop.f32.mrf.mxu0
  %v480 = vadd.f32 %v87, %v479
  %481 = vmatmul.f32.gmra.mxu0 %v274
  %v482 = vpop.f32.mrf.mxu0
  %v483 = vadd.f32 %v87, %v482
  %484 = vmatmul.f32.gmra.mxu0 %v277
  %v485 = vpop.f32.mrf.mxu0
  %v486 = vadd.f32 %v87, %v485
  %487 = vmatmul.f32.gmra.mxu0 %v280
  %v488 = vpop.f32.mrf.mxu0
  %v489 = vadd.f32 %v87, %v488
  %490 = vdwg.mxu0
  %v491 = vld [vmem:[%s3] sm:$0xff]
  %v492 = vld [vmem:[%s3 + $0x8] sm:$0xff]
  %v493 = vld [vmem:[%s4] sm:$0x1]
  %v495 = vperm.slane %v493, 0
  %vm497 = vcmask 130048
  %v499 = vsel %vm497, %v300, 0
  %v502 = vsel %vm497, %v303, 0
  %v505 = vsel %vm497, %v306, 0
  %v508 = vsel %vm497, %v309, 0
  %v511 = vsel %vm497, %v312, 0
  %v514 = vsel %vm497, %v315, 0
  %v517 = vsel %vm497, %v318, 0
  %v520 = vsel %vm497, %v321, 0
  %v523 = vsel %vm497, %v324, 0
  %v526 = vsel %vm497, %v327, 0
  %v529 = vsel %vm497, %v330, 0
  %v532 = vsel %vm497, %v333, 0
  %v535 = vsel %vm497, %v336, 0
  %v538 = vsel %vm497, %v339, 0
  %v541 = vsel %vm497, %v342, 0
  %v544 = vsel %vm497, %v345, 0
  %v547 = vsel %vm497, %v348, 0
  %v550 = vsel %vm497, %v351, 0
  %v553 = vsel %vm497, %v354, 0
  %v556 = vsel %vm497, %v357, 0
  %v559 = vsel %vm497, %v360, 0
  %v562 = vsel %vm497, %v363, 0
  %v565 = vsel %vm497, %v366, 0
  %v568 = vsel %vm497, %v369, 0
  %v571 = vsel %vm497, %v372, 0
  %v574 = vsel %vm497, %v375, 0
  %v577 = vsel %vm497, %v378, 0
  %v580 = vsel %vm497, %v381, 0
  %v583 = vsel %vm497, %v384, 0
  %v586 = vsel %vm497, %v387, 0
  %v589 = vsel %vm497, %v390, 0
  %v592 = vsel %vm497, %v393, 0
  %v595 = vsel %vm497, %v396, 0
  %v598 = vsel %vm497, %v399, 0
  %v601 = vsel %vm497, %v402, 0
  %v604 = vsel %vm497, %v405, 0
  %v607 = vsel %vm497, %v408, 0
  %v610 = vsel %vm497, %v411, 0
  %v613 = vsel %vm497, %v414, 0
  %v616 = vsel %vm497, %v417, 0
  %v619 = vsel %vm497, %v420, 0
  %v622 = vsel %vm497, %v423, 0
  %v625 = vsel %vm497, %v426, 0
  %v628 = vsel %vm497, %v429, 0
  %v631 = vsel %vm497, %v432, 0
  %v634 = vsel %vm497, %v435, 0
  %v637 = vsel %vm497, %v438, 0
  %v640 = vsel %vm497, %v441, 0
  %v643 = vsel %vm497, %v444, 0
  %v646 = vsel %vm497, %v447, 0
  %v649 = vsel %vm497, %v450, 0
  %v652 = vsel %vm497, %v453, 0
  %v655 = vsel %vm497, %v456, 0
  %v658 = vsel %vm497, %v459, 0
  %v661 = vsel %vm497, %v462, 0
  %v664 = vsel %vm497, %v465, 0
  %v667 = vsel %vm497, %v468, 0
  %v670 = vsel %vm497, %v471, 0
  %v673 = vsel %vm497, %v474, 0
  %v676 = vsel %vm497, %v477, 0
  %v679 = vsel %vm497, %v480, 0
  %v682 = vsel %vm497, %v483, 0
  %v685 = vsel %vm497, %v486, 0
  %v688 = vsel %vm497, %v489, 0
  %690 = vmatpush.msra.mxu0 0.0
  %691 = vmatpush.msra.mxu0 0.0
  %692 = vmatpush.msra.mxu0 0.0
  %693 = vmatpush.msra.mxu0 0.0
  %694 = vmatpush.msra.mxu0 0.0
  %695 = vmatpush.msra.mxu0 0.0
  %696 = vmatpush.msra.mxu0 0.0
  %697 = vmatpush.msra.mxu0 0.0
  %698 = vmatpush.msra.mxu0 0.0
  %699 = vmatpush.msra.mxu0 0.0
  %700 = vmatpush.msra.mxu0 0.0
  %701 = vmatpush.msra.mxu0 0.0
  %702 = vmatpush.msra.mxu0 0.0
  %703 = vmatpush.msra.mxu0 0.0
  %704 = vmatpush.msra.mxu0 %v492
  %705 = vmatpush.msra.mxu0 %v491
  %706 = vmatmul.f32.gmra.mxu0 %v499
  %v707 = vpop.f32.mrf.mxu0
  %v708 = vadd.f32 %v495, %v707
  %709 = vmatmul.f32.gmra.mxu0 %v502
  %v710 = vpop.f32.mrf.mxu0
  %v711 = vadd.f32 %v495, %v710
  %712 = vmatmul.f32.gmra.mxu0 %v505
  %v713 = vpop.f32.mrf.mxu0
  %v714 = vadd.f32 %v495, %v713
  %715 = vmatmul.f32.gmra.mxu0 %v508
  %v716 = vpop.f32.mrf.mxu0
  %v717 = vadd.f32 %v495, %v716
  %718 = vmatmul.f32.gmra.mxu0 %v511
  %v719 = vpop.f32.mrf.mxu0
  %v720 = vadd.f32 %v495, %v719
  %721 = vmatmul.f32.gmra.mxu0 %v514
  %v722 = vpop.f32.mrf.mxu0
  %v723 = vadd.f32 %v495, %v722
  %724 = vmatmul.f32.gmra.mxu0 %v517
  %v725 = vpop.f32.mrf.mxu0
  %v726 = vadd.f32 %v495, %v725
  %727 = vmatmul.f32.gmra.mxu0 %v520
  %v728 = vpop.f32.mrf.mxu0
  %v729 = vadd.f32 %v495, %v728
  %730 = vmatmul.f32.gmra.mxu0 %v523
  %v731 = vpop.f32.mrf.mxu0
  %v732 = vadd.f32 %v495, %v731
  %733 = vmatmul.f32.gmra.mxu0 %v526
  %v734 = vpop.f32.mrf.mxu0
  %v735 = vadd.f32 %v495, %v734
  %736 = vmatmul.f32.gmra.mxu0 %v529
  %v737 = vpop.f32.mrf.mxu0
  %v738 = vadd.f32 %v495, %v737
  %739 = vmatmul.f32.gmra.mxu0 %v532
  %v740 = vpop.f32.mrf.mxu0
  %v741 = vadd.f32 %v495, %v740
  %742 = vmatmul.f32.gmra.mxu0 %v535
  %v743 = vpop.f32.mrf.mxu0
  %v744 = vadd.f32 %v495, %v743
  %745 = vmatmul.f32.gmra.mxu0 %v538
  %v746 = vpop.f32.mrf.mxu0
  %v747 = vadd.f32 %v495, %v746
  %748 = vmatmul.f32.gmra.mxu0 %v541
  %v749 = vpop.f32.mrf.mxu0
  %v750 = vadd.f32 %v495, %v749
  %751 = vmatmul.f32.gmra.mxu0 %v544
  %v752 = vpop.f32.mrf.mxu0
  %v753 = vadd.f32 %v495, %v752
  %754 = vmatmul.f32.gmra.mxu0 %v547
  %v755 = vpop.f32.mrf.mxu0
  %v756 = vadd.f32 %v495, %v755
  %757 = vmatmul.f32.gmra.mxu0 %v550
  %v758 = vpop.f32.mrf.mxu0
  %v759 = vadd.f32 %v495, %v758
  %760 = vmatmul.f32.gmra.mxu0 %v553
  %v761 = vpop.f32.mrf.mxu0
  %v762 = vadd.f32 %v495, %v761
  %763 = vmatmul.f32.gmra.mxu0 %v556
  %v764 = vpop.f32.mrf.mxu0
  %v765 = vadd.f32 %v495, %v764
  %766 = vmatmul.f32.gmra.mxu0 %v559
  %v767 = vpop.f32.mrf.mxu0
  %v768 = vadd.f32 %v495, %v767
  %769 = vmatmul.f32.gmra.mxu0 %v562
  %v770 = vpop.f32.mrf.mxu0
  %v771 = vadd.f32 %v495, %v770
  %772 = vmatmul.f32.gmra.mxu0 %v565
  %v773 = vpop.f32.mrf.mxu0
  %v774 = vadd.f32 %v495, %v773
  %775 = vmatmul.f32.gmra.mxu0 %v568
  %v776 = vpop.f32.mrf.mxu0
  %v777 = vadd.f32 %v495, %v776
  %778 = vmatmul.f32.gmra.mxu0 %v571
  %v779 = vpop.f32.mrf.mxu0
  %v780 = vadd.f32 %v495, %v779
  %781 = vmatmul.f32.gmra.mxu0 %v574
  %v782 = vpop.f32.mrf.mxu0
  %v783 = vadd.f32 %v495, %v782
  %784 = vmatmul.f32.gmra.mxu0 %v577
  %v785 = vpop.f32.mrf.mxu0
  %v786 = vadd.f32 %v495, %v785
  %787 = vmatmul.f32.gmra.mxu0 %v580
  %v788 = vpop.f32.mrf.mxu0
  %v789 = vadd.f32 %v495, %v788
  %790 = vmatmul.f32.gmra.mxu0 %v583
  %v791 = vpop.f32.mrf.mxu0
  %v792 = vadd.f32 %v495, %v791
  %793 = vmatmul.f32.gmra.mxu0 %v586
  %v794 = vpop.f32.mrf.mxu0
  %v795 = vadd.f32 %v495, %v794
  %796 = vmatmul.f32.gmra.mxu0 %v589
  %v797 = vpop.f32.mrf.mxu0
  %v798 = vadd.f32 %v495, %v797
  %799 = vmatmul.f32.gmra.mxu0 %v592
  %v800 = vpop.f32.mrf.mxu0
  %v801 = vadd.f32 %v495, %v800
  %802 = vmatmul.f32.gmra.mxu0 %v595
  %v803 = vpop.f32.mrf.mxu0
  %v804 = vadd.f32 %v495, %v803
  %805 = vmatmul.f32.gmra.mxu0 %v598
  %v806 = vpop.f32.mrf.mxu0
  %v807 = vadd.f32 %v495, %v806
  %808 = vmatmul.f32.gmra.mxu0 %v601
  %v809 = vpop.f32.mrf.mxu0
  %v810 = vadd.f32 %v495, %v809
  %811 = vmatmul.f32.gmra.mxu0 %v604
  %v812 = vpop.f32.mrf.mxu0
  %v813 = vadd.f32 %v495, %v812
  %814 = vmatmul.f32.gmra.mxu0 %v607
  %v815 = vpop.f32.mrf.mxu0
  %v816 = vadd.f32 %v495, %v815
  %817 = vmatmul.f32.gmra.mxu0 %v610
  %v818 = vpop.f32.mrf.mxu0
  %v819 = vadd.f32 %v495, %v818
  %820 = vmatmul.f32.gmra.mxu0 %v613
  %v821 = vpop.f32.mrf.mxu0
  %v822 = vadd.f32 %v495, %v821
  %823 = vmatmul.f32.gmra.mxu0 %v616
  %v824 = vpop.f32.mrf.mxu0
  %v825 = vadd.f32 %v495, %v824
  %826 = vmatmul.f32.gmra.mxu0 %v619
  %v827 = vpop.f32.mrf.mxu0
  %v828 = vadd.f32 %v495, %v827
  %829 = vmatmul.f32.gmra.mxu0 %v622
  %v830 = vpop.f32.mrf.mxu0
  %v831 = vadd.f32 %v495, %v830
  %832 = vmatmul.f32.gmra.mxu0 %v625
  %v833 = vpop.f32.mrf.mxu0
  %v834 = vadd.f32 %v495, %v833
  %835 = vmatmul.f32.gmra.mxu0 %v628
  %v836 = vpop.f32.mrf.mxu0
  %v837 = vadd.f32 %v495, %v836
  %838 = vmatmul.f32.gmra.mxu0 %v631
  %v839 = vpop.f32.mrf.mxu0
  %v840 = vadd.f32 %v495, %v839
  %841 = vmatmul.f32.gmra.mxu0 %v634
  %v842 = vpop.f32.mrf.mxu0
  %v843 = vadd.f32 %v495, %v842
  %844 = vmatmul.f32.gmra.mxu0 %v637
  %v845 = vpop.f32.mrf.mxu0
  %v846 = vadd.f32 %v495, %v845
  %847 = vmatmul.f32.gmra.mxu0 %v640
  %v848 = vpop.f32.mrf.mxu0
  %v849 = vadd.f32 %v495, %v848
  %850 = vmatmul.f32.gmra.mxu0 %v643
  %v851 = vpop.f32.mrf.mxu0
  %v852 = vadd.f32 %v495, %v851
  %853 = vmatmul.f32.gmra.mxu0 %v646
  %v854 = vpop.f32.mrf.mxu0
  %v855 = vadd.f32 %v495, %v854
  %856 = vmatmul.f32.gmra.mxu0 %v649
  %v857 = vpop.f32.mrf.mxu0
  %v858 = vadd.f32 %v495, %v857
  %859 = vmatmul.f32.gmra.mxu0 %v652
  %v860 = vpop.f32.mrf.mxu0
  %v861 = vadd.f32 %v495, %v860
  %862 = vmatmul.f32.gmra.mxu0 %v655
  %v863 = vpop.f32.mrf.mxu0
  %v864 = vadd.f32 %v495, %v863
  %865 = vmatmul.f32.gmra.mxu0 %v658
  %v866 = vpop.f32.mrf.mxu0
  %v867 = vadd.f32 %v495, %v866
  %868 = vmatmul.f32.gmra.mxu0 %v661
  %v869 = vpop.f32.mrf.mxu0
  %v870 = vadd.f32 %v495, %v869
  %871 = vmatmul.f32.gmra.mxu0 %v664
  %v872 = vpop.f32.mrf.mxu0
  %v873 = vadd.f32 %v495, %v872
  %874 = vmatmul.f32.gmra.mxu0 %v667
  %v875 = vpop.f32.mrf.mxu0
  %v876 = vadd.f32 %v495, %v875
  %877 = vmatmul.f32.gmra.mxu0 %v670
  %v878 = vpop.f32.mrf.mxu0
  %v879 = vadd.f32 %v495, %v878
  %880 = vmatmul.f32.gmra.mxu0 %v673
  %v881 = vpop.f32.mrf.mxu0
  %v882 = vadd.f32 %v495, %v881
  %883 = vmatmul.f32.gmra.mxu0 %v676
  %v884 = vpop.f32.mrf.mxu0
  %v885 = vadd.f32 %v495, %v884
  %886 = vmatmul.f32.gmra.mxu0 %v679
  %v887 = vpop.f32.mrf.mxu0
  %v888 = vadd.f32 %v495, %v887
  %889 = vmatmul.f32.gmra.mxu0 %v682
  %v890 = vpop.f32.mrf.mxu0
  %v891 = vadd.f32 %v495, %v890
  %892 = vmatmul.f32.gmra.mxu0 %v685
  %v893 = vpop.f32.mrf.mxu0
  %v894 = vadd.f32 %v495, %v893
  %895 = vmatmul.f32.gmra.mxu0 %v688
  %v896 = vpop.f32.mrf.mxu0
  %v897 = vadd.f32 %v495, %v896
  %898 = vdwg.mxu0
  %vm899 = vcmask 15360
  %900 = vst.msk [vmem:[%s5] sm:$0xff] %vm899, %v708
  %901 = vst.msk [vmem:[%s5 + $0x8] sm:$0xff] %vm899, %v711
  %902 = vst.msk [vmem:[%s5 + $0x10] sm:$0xff] %vm899, %v714
  %903 = vst.msk [vmem:[%s5 + $0x18] sm:$0xff] %vm899, %v717
  %904 = vst.msk [vmem:[%s5 + $0x20] sm:$0xff] %vm899, %v720
  %905 = vst.msk [vmem:[%s5 + $0x28] sm:$0xff] %vm899, %v723
  %906 = vst.msk [vmem:[%s5 + $0x30] sm:$0xff] %vm899, %v726
  %907 = vst.msk [vmem:[%s5 + $0x38] sm:$0xff] %vm899, %v729
  %908 = vst.msk [vmem:[%s5 + $0x40] sm:$0xff] %vm899, %v732
  %909 = vst.msk [vmem:[%s5 + $0x48] sm:$0xff] %vm899, %v735
  %910 = vst.msk [vmem:[%s5 + $0x50] sm:$0xff] %vm899, %v738
  %911 = vst.msk [vmem:[%s5 + $0x58] sm:$0xff] %vm899, %v741
  %912 = vst.msk [vmem:[%s5 + $0x60] sm:$0xff] %vm899, %v744
  %913 = vst.msk [vmem:[%s5 + $0x68] sm:$0xff] %vm899, %v747
  %914 = vst.msk [vmem:[%s5 + $0x70] sm:$0xff] %vm899, %v750
  %915 = vst.msk [vmem:[%s5 + $0x78] sm:$0xff] %vm899, %v753
  %916 = vst.msk [vmem:[%s5 + $0x80] sm:$0xff] %vm899, %v756
  %917 = vst.msk [vmem:[%s5 + $0x88] sm:$0xff] %vm899, %v759
  %918 = vst.msk [vmem:[%s5 + $0x90] sm:$0xff] %vm899, %v762
  %919 = vst.msk [vmem:[%s5 + $0x98] sm:$0xff] %vm899, %v765
  %920 = vst.msk [vmem:[%s5 + $0xa0] sm:$0xff] %vm899, %v768
  %921 = vst.msk [vmem:[%s5 + $0xa8] sm:$0xff] %vm899, %v771
  %922 = vst.msk [vmem:[%s5 + $0xb0] sm:$0xff] %vm899, %v774
  %923 = vst.msk [vmem:[%s5 + $0xb8] sm:$0xff] %vm899, %v777
  %924 = vst.msk [vmem:[%s5 + $0xc0] sm:$0xff] %vm899, %v780
  %925 = vst.msk [vmem:[%s5 + $0xc8] sm:$0xff] %vm899, %v783
  %926 = vst.msk [vmem:[%s5 + $0xd0] sm:$0xff] %vm899, %v786
  %927 = vst.msk [vmem:[%s5 + $0xd8] sm:$0xff] %vm899, %v789
  %928 = vst.msk [vmem:[%s5 + $0xe0] sm:$0xff] %vm899, %v792
  %929 = vst.msk [vmem:[%s5 + $0xe8] sm:$0xff] %vm899, %v795
  %930 = vst.msk [vmem:[%s5 + $0xf0] sm:$0xff] %vm899, %v798
  %931 = vst.msk [vmem:[%s5 + $0xf8] sm:$0xff] %vm899, %v801
  %932 = vst.msk [vmem:[%s5 + $0x100] sm:$0xff] %vm899, %v804
  %933 = vst.msk [vmem:[%s5 + $0x108] sm:$0xff] %vm899, %v807
  %934 = vst.msk [vmem:[%s5 + $0x110] sm:$0xff] %vm899, %v810
  %935 = vst.msk [vmem:[%s5 + $0x118] sm:$0xff] %vm899, %v813
  %936 = vst.msk [vmem:[%s5 + $0x120] sm:$0xff] %vm899, %v816
  %937 = vst.msk [vmem:[%s5 + $0x128] sm:$0xff] %vm899, %v819
  %938 = vst.msk [vmem:[%s5 + $0x130] sm:$0xff] %vm899, %v822
  %939 = vst.msk [vmem:[%s5 + $0x138] sm:$0xff] %vm899, %v825
  %940 = vst.msk [vmem:[%s5 + $0x140] sm:$0xff] %vm899, %v828
  %941 = vst.msk [vmem:[%s5 + $0x148] sm:$0xff] %vm899, %v831
  %942 = vst.msk [vmem:[%s5 + $0x150] sm:$0xff] %vm899, %v834
  %943 = vst.msk [vmem:[%s5 + $0x158] sm:$0xff] %vm899, %v837
  %944 = vst.msk [vmem:[%s5 + $0x160] sm:$0xff] %vm899, %v840
  %945 = vst.msk [vmem:[%s5 + $0x168] sm:$0xff] %vm899, %v843
  %946 = vst.msk [vmem:[%s5 + $0x170] sm:$0xff] %vm899, %v846
  %947 = vst.msk [vmem:[%s5 + $0x178] sm:$0xff] %vm899, %v849
  %948 = vst.msk [vmem:[%s5 + $0x180] sm:$0xff] %vm899, %v852
  %949 = vst.msk [vmem:[%s5 + $0x188] sm:$0xff] %vm899, %v855
  %950 = vst.msk [vmem:[%s5 + $0x190] sm:$0xff] %vm899, %v858
  %951 = vst.msk [vmem:[%s5 + $0x198] sm:$0xff] %vm899, %v861
  %952 = vst.msk [vmem:[%s5 + $0x1a0] sm:$0xff] %vm899, %v864
  %953 = vst.msk [vmem:[%s5 + $0x1a8] sm:$0xff] %vm899, %v867
  %954 = vst.msk [vmem:[%s5 + $0x1b0] sm:$0xff] %vm899, %v870
  %955 = vst.msk [vmem:[%s5 + $0x1b8] sm:$0xff] %vm899, %v873
  %956 = vst.msk [vmem:[%s5 + $0x1c0] sm:$0xff] %vm899, %v876
  %957 = vst.msk [vmem:[%s5 + $0x1c8] sm:$0xff] %vm899, %v879
  %958 = vst.msk [vmem:[%s5 + $0x1d0] sm:$0xff] %vm899, %v882
  %959 = vst.msk [vmem:[%s5 + $0x1d8] sm:$0xff] %vm899, %v885
  %960 = vst.msk [vmem:[%s5 + $0x1e0] sm:$0xff] %vm899, %v888
  %961 = vst.msk [vmem:[%s5 + $0x1e8] sm:$0xff] %vm899, %v891
  %962 = vst.msk [vmem:[%s5 + $0x1f0] sm:$0xff] %vm899, %v894
  %963 = vst.msk [vmem:[%s5 + $0x1f8] sm:$0xff] %vm899, %v897
  // Predicated region
  $region22: #{factor_fno2d_forward.21} parent=0 // pred_check
    _
  $region23: #{factor_fno2d_forward.21} parent=0 // pred_check_branch
    %965 = sbr.rel (0) target = $region25
  $region24: #{factor_fno2d_forward.21} parent=0 // pred_region
    _
  $region25: #{factor_fno2d_forward.21} parent=0 // pred_fallthru
    _
  // Predicated region
  $region26: #{factor_fno2d_forward.21} parent=0 // pred_check
    _
  $region27: #{factor_fno2d_forward.21} parent=0 // pred_check_branch
    %967 = sbr.rel (0) target = $region29
  $region28: #{factor_fno2d_forward.21} parent=0 // pred_region
    _
  $region29: #{factor_fno2d_forward.21} parent=0 // pred_fallthru
    _

// kernel: factor_fno2d_forward.16
$region0: #{factor_fno2d_forward.16}
  #allocation0 [shape = 'u32[]', space=smem, size = 0x4, offset = 0x4, fixed_abs, tag = 'smem constant byte address 0x4 - core index']
  #allocation1 [shape = 'u32[72,128]{1,0:T(1,128)}', space=vmem, size = 0x9000, scoped, tag = 'internal scratch']
  %s0 = inlined_call_operand.vmem [shape: f32[512,8], index: 0, kind: input, shape index: {}]
  %s1 = inlined_call_operand.vmem [shape: f32[512,8], index: 1, kind: input, shape index: {}]
  %s2 = inlined_call_operand.vmem [shape: f32[512,8], index: 2, kind: input, shape index: {}]
  %s3 = inlined_call_operand.vmem [shape: f32[8,16], index: 3, kind: input, shape index: {}]
  %s4 = inlined_call_operand.vmem [shape: f32[1,16], index: 4, kind: input, shape index: {}]
  %s5 = inlined_call_operand.vmem [shape: f32[1,16], index: 5, kind: input, shape index: {}]
  %s6 = inlined_call_operand.vmem [shape: f32[1,16], index: 6, kind: input, shape index: {}]
  %s7 = inlined_call_operand.vmem [shape: f32[16,8], index: 7, kind: input, shape index: {}]
  %s8 = inlined_call_operand.vmem [shape: f32[1,8], index: 8, kind: input, shape index: {}]
  %s9 = inlined_call_operand.vmem [shape: f32[512,8], index: 9, kind: output, shape index: {}]
  %s10 = sld [smem:[#allocation0]]
  $region46: #{factor_fno2d_forward.16} parent=0
    _
  %s12 = ssub.s32 1, %s10
  %s13 = scalar_select 0, %s12, %s10
  // Predicated region
  $region2: #{factor_fno2d_forward.16} parent=0 // pred_check
    _
  $region3: #{factor_fno2d_forward.16} parent=0 // pred_check_branch
    %15 = sbr.rel (0) target = $region5
  $region4: #{factor_fno2d_forward.16} parent=0 // pred_region
    _
  $region5: #{factor_fno2d_forward.16} parent=0 // pred_fallthru
    _
  // Predicated region
  $region6: #{factor_fno2d_forward.16} parent=0 // pred_check
    _
  $region7: #{factor_fno2d_forward.16} parent=0 // pred_check_branch
    %17 = sbr.rel (0) target = $region9
  $region8: #{factor_fno2d_forward.16} parent=0 // pred_region
    _
  $region9: #{factor_fno2d_forward.16} parent=0 // pred_fallthru
    _
  // Predicated region
  $region10: #{factor_fno2d_forward.16} parent=0 // pred_check
    _
  $region11: #{factor_fno2d_forward.16} parent=0 // pred_check_branch
    %19 = sbr.rel (0) target = $region13
  $region12: #{factor_fno2d_forward.16} parent=0 // pred_region
    _
  $region13: #{factor_fno2d_forward.16} parent=0 // pred_fallthru
    _
  // Predicated region
  $region14: #{factor_fno2d_forward.16} parent=0 // pred_check
    _
  $region15: #{factor_fno2d_forward.16} parent=0 // pred_check_branch
    %21 = sbr.rel (0) target = $region17
  $region16: #{factor_fno2d_forward.16} parent=0 // pred_region
    _
  $region17: #{factor_fno2d_forward.16} parent=0 // pred_fallthru
    _
  // Predicated region
  $region18: #{factor_fno2d_forward.16} parent=0 // pred_check
    _
  $region19: #{factor_fno2d_forward.16} parent=0 // pred_check_branch
    %23 = sbr.rel (0) target = $region21
  $region20: #{factor_fno2d_forward.16} parent=0 // pred_region
    _
  $region21: #{factor_fno2d_forward.16} parent=0 // pred_fallthru
    _
  // Predicated region
  $region22: #{factor_fno2d_forward.16} parent=0 // pred_check
    _
  $region23: #{factor_fno2d_forward.16} parent=0 // pred_check_branch
    %25 = sbr.rel (0) target = $region25
  $region24: #{factor_fno2d_forward.16} parent=0 // pred_region
    _
  $region25: #{factor_fno2d_forward.16} parent=0 // pred_fallthru
    _
  // Predicated region
  $region26: #{factor_fno2d_forward.16} parent=0 // pred_check
    _
  $region27: #{factor_fno2d_forward.16} parent=0 // pred_check_branch
    %27 = sbr.rel (0) target = $region29
  $region28: #{factor_fno2d_forward.16} parent=0 // pred_region
    _
  $region29: #{factor_fno2d_forward.16} parent=0 // pred_fallthru
    _
  // Predicated region
  $region30: #{factor_fno2d_forward.16} parent=0 // pred_check
    _
  $region31: #{factor_fno2d_forward.16} parent=0 // pred_check_branch
    %29 = sbr.rel (0) target = $region33
  $region32: #{factor_fno2d_forward.16} parent=0 // pred_region
    _
  $region33: #{factor_fno2d_forward.16} parent=0 // pred_fallthru
    _
  // Predicated region
  $region34: #{factor_fno2d_forward.16} parent=0 // pred_check
    _
  $region35: #{factor_fno2d_forward.16} parent=0 // pred_check_branch
    %31 = sbr.rel (0) target = $region37
  $region36: #{factor_fno2d_forward.16} parent=0 // pred_region
    _
  $region37: #{factor_fno2d_forward.16} parent=0 // pred_fallthru
    _
  %v32 = vld [vmem:[%s0] sm:$0xff]
  %v33 = vld [vmem:[%s0 + $0x8] sm:$0xff]
  %v34 = vld [vmem:[%s0 + $0x10] sm:$0xff]
  %v35 = vld [vmem:[%s0 + $0x18] sm:$0xff]
  %v36 = vld [vmem:[%s0 + $0x20] sm:$0xff]
  %v37 = vld [vmem:[%s0 + $0x28] sm:$0xff]
  %v38 = vld [vmem:[%s0 + $0x30] sm:$0xff]
  %v39 = vld [vmem:[%s0 + $0x38] sm:$0xff]
  %v40 = vld [vmem:[%s0 + $0x40] sm:$0xff]
  %v41 = vld [vmem:[%s0 + $0x48] sm:$0xff]
  %v42 = vld [vmem:[%s0 + $0x50] sm:$0xff]
  %v43 = vld [vmem:[%s0 + $0x58] sm:$0xff]
  %v44 = vld [vmem:[%s0 + $0x60] sm:$0xff]
  %v45 = vld [vmem:[%s0 + $0x68] sm:$0xff]
  %v46 = vld [vmem:[%s0 + $0x70] sm:$0xff]
  %v47 = vld [vmem:[%s0 + $0x78] sm:$0xff]
  %v48 = vld [vmem:[%s0 + $0x80] sm:$0xff]
  %v49 = vld [vmem:[%s0 + $0x88] sm:$0xff]
  %v50 = vld [vmem:[%s0 + $0x90] sm:$0xff]
  %v51 = vld [vmem:[%s0 + $0x98] sm:$0xff]
  %v52 = vld [vmem:[%s0 + $0xa0] sm:$0xff]
  %v53 = vld [vmem:[%s0 + $0xa8] sm:$0xff]
  %v54 = vld [vmem:[%s0 + $0xb0] sm:$0xff]
  %v55 = vld [vmem:[%s0 + $0xb8] sm:$0xff]
  %v56 = vld [vmem:[%s0 + $0xc0] sm:$0xff]
  %v57 = vld [vmem:[%s0 + $0xc8] sm:$0xff]
  %v58 = vld [vmem:[%s0 + $0xd0] sm:$0xff]
  %v59 = vld [vmem:[%s0 + $0xd8] sm:$0xff]
  %v60 = vld [vmem:[%s0 + $0xe0] sm:$0xff]
  %v61 = vld [vmem:[%s0 + $0xe8] sm:$0xff]
  %v62 = vld [vmem:[%s0 + $0xf0] sm:$0xff]
  %v63 = vld [vmem:[%s0 + $0xf8] sm:$0xff]
  %v64 = vld [vmem:[%s0 + $0x100] sm:$0xff]
  %v65 = vld [vmem:[%s0 + $0x108] sm:$0xff]
  %v66 = vld [vmem:[%s0 + $0x110] sm:$0xff]
  %v67 = vld [vmem:[%s0 + $0x118] sm:$0xff]
  %v68 = vld [vmem:[%s0 + $0x120] sm:$0xff]
  %v69 = vld [vmem:[%s0 + $0x128] sm:$0xff]
  %v70 = vld [vmem:[%s0 + $0x130] sm:$0xff]
  %v71 = vld [vmem:[%s0 + $0x138] sm:$0xff]
  %v72 = vld [vmem:[%s0 + $0x140] sm:$0xff]
  %v73 = vld [vmem:[%s0 + $0x148] sm:$0xff]
  %v74 = vld [vmem:[%s0 + $0x150] sm:$0xff]
  %v75 = vld [vmem:[%s0 + $0x158] sm:$0xff]
  %v76 = vld [vmem:[%s0 + $0x160] sm:$0xff]
  %v77 = vld [vmem:[%s0 + $0x168] sm:$0xff]
  %v78 = vld [vmem:[%s0 + $0x170] sm:$0xff]
  %v79 = vld [vmem:[%s0 + $0x178] sm:$0xff]
  %v80 = vld [vmem:[%s0 + $0x180] sm:$0xff]
  %v81 = vld [vmem:[%s0 + $0x188] sm:$0xff]
  %v82 = vld [vmem:[%s0 + $0x190] sm:$0xff]
  %v83 = vld [vmem:[%s0 + $0x198] sm:$0xff]
  %v84 = vld [vmem:[%s0 + $0x1a0] sm:$0xff]
  %v85 = vld [vmem:[%s0 + $0x1a8] sm:$0xff]
  %v86 = vld [vmem:[%s0 + $0x1b0] sm:$0xff]
  %v87 = vld [vmem:[%s0 + $0x1b8] sm:$0xff]
  %v88 = vld [vmem:[%s0 + $0x1c0] sm:$0xff]
  %v89 = vld [vmem:[%s0 + $0x1c8] sm:$0xff]
  %v90 = vld [vmem:[%s0 + $0x1d0] sm:$0xff]
  %v91 = vld [vmem:[%s0 + $0x1d8] sm:$0xff]
  %v92 = vld [vmem:[%s0 + $0x1e0] sm:$0xff]
  %v93 = vld [vmem:[%s0 + $0x1e8] sm:$0xff]
  %v94 = vld [vmem:[%s0 + $0x1f0] sm:$0xff]
  %v95 = vld [vmem:[%s0 + $0x1f8] sm:$0xff]
  %v96 = vld [vmem:[%s1] sm:$0xff]
  %v97 = vld [vmem:[%s1 + $0x8] sm:$0xff]
  %v98 = vld [vmem:[%s1 + $0x10] sm:$0xff]
  %v99 = vld [vmem:[%s1 + $0x18] sm:$0xff]
  %v100 = vld [vmem:[%s1 + $0x20] sm:$0xff]
  %v101 = vld [vmem:[%s1 + $0x28] sm:$0xff]
  %v102 = vld [vmem:[%s1 + $0x30] sm:$0xff]
  %v103 = vld [vmem:[%s1 + $0x38] sm:$0xff]
  %v104 = vld [vmem:[%s1 + $0x40] sm:$0xff]
  %v105 = vld [vmem:[%s1 + $0x48] sm:$0xff]
  %v106 = vld [vmem:[%s1 + $0x50] sm:$0xff]
  %v107 = vld [vmem:[%s1 + $0x58] sm:$0xff]
  %v108 = vld [vmem:[%s1 + $0x60] sm:$0xff]
  %v109 = vld [vmem:[%s1 + $0x68] sm:$0xff]
  %v110 = vld [vmem:[%s1 + $0x70] sm:$0xff]
  %v111 = vld [vmem:[%s1 + $0x78] sm:$0xff]
  %v112 = vld [vmem:[%s1 + $0x80] sm:$0xff]
  %v113 = vld [vmem:[%s1 + $0x88] sm:$0xff]
  %v114 = vld [vmem:[%s1 + $0x90] sm:$0xff]
  %v115 = vld [vmem:[%s1 + $0x98] sm:$0xff]
  %v116 = vld [vmem:[%s1 + $0xa0] sm:$0xff]
  %v117 = vld [vmem:[%s1 + $0xa8] sm:$0xff]
  %v118 = vld [vmem:[%s1 + $0xb0] sm:$0xff]
  %v119 = vld [vmem:[%s1 + $0xb8] sm:$0xff]
  %v120 = vld [vmem:[%s1 + $0xc0] sm:$0xff]
  %v121 = vld [vmem:[%s1 + $0xc8] sm:$0xff]
  %v122 = vld [vmem:[%s1 + $0xd0] sm:$0xff]
  %v123 = vld [vmem:[%s1 + $0xd8] sm:$0xff]
  %v124 = vld [vmem:[%s1 + $0xe0] sm:$0xff]
  %v125 = vld [vmem:[%s1 + $0xe8] sm:$0xff]
  %v126 = vld [vmem:[%s1 + $0xf0] sm:$0xff]
  %v127 = vld [vmem:[%s1 + $0xf8] sm:$0xff]
  %v128 = vld [vmem:[%s1 + $0x100] sm:$0xff]
  %v129 = vld [vmem:[%s1 + $0x108] sm:$0xff]
  %v130 = vld [vmem:[%s1 + $0x110] sm:$0xff]
  %v131 = vld [vmem:[%s1 + $0x118] sm:$0xff]
  %v132 = vld [vmem:[%s1 + $0x120] sm:$0xff]
  %v133 = vld [vmem:[%s1 + $0x128] sm:$0xff]
  %v134 = vld [vmem:[%s1 + $0x130] sm:$0xff]
  %v135 = vld [vmem:[%s1 + $0x138] sm:$0xff]
  %v136 = vld [vmem:[%s1 + $0x140] sm:$0xff]
  %v137 = vld [vmem:[%s1 + $0x148] sm:$0xff]
  %v138 = vld [vmem:[%s1 + $0x150] sm:$0xff]
  %v139 = vld [vmem:[%s1 + $0x158] sm:$0xff]
  %v140 = vld [vmem:[%s1 + $0x160] sm:$0xff]
  %v141 = vld [vmem:[%s1 + $0x168] sm:$0xff]
  %v142 = vld [vmem:[%s1 + $0x170] sm:$0xff]
  %v143 = vld [vmem:[%s1 + $0x178] sm:$0xff]
  %v144 = vld [vmem:[%s1 + $0x180] sm:$0xff]
  %v145 = vld [vmem:[%s1 + $0x188] sm:$0xff]
  %v146 = vld [vmem:[%s1 + $0x190] sm:$0xff]
  %v147 = vld [vmem:[%s1 + $0x198] sm:$0xff]
  %v148 = vld [vmem:[%s1 + $0x1a0] sm:$0xff]
  %v149 = vld [vmem:[%s1 + $0x1a8] sm:$0xff]
  %v150 = vld [vmem:[%s1 + $0x1b0] sm:$0xff]
  %v151 = vld [vmem:[%s1 + $0x1b8] sm:$0xff]
  %v152 = vld [vmem:[%s1 + $0x1c0] sm:$0xff]
  %v153 = vld [vmem:[%s1 + $0x1c8] sm:$0xff]
  %v154 = vld [vmem:[%s1 + $0x1d0] sm:$0xff]
  %v155 = vld [vmem:[%s1 + $0x1d8] sm:$0xff]
  %v156 = vld [vmem:[%s1 + $0x1e0] sm:$0xff]
  %v157 = vld [vmem:[%s1 + $0x1e8] sm:$0xff]
  %v158 = vld [vmem:[%s1 + $0x1f0] sm:$0xff]
  %v159 = vld [vmem:[%s1 + $0x1f8] sm:$0xff]
  %v160 = vadd.f32 %v32, %v96
  %v161 = vadd.f32 %v33, %v97
  %v162 = vadd.f32 %v34, %v98
  %v163 = vadd.f32 %v35, %v99
  %v164 = vadd.f32 %v36, %v100
  %v165 = vadd.f32 %v37, %v101
  %v166 = vadd.f32 %v38, %v102
  %v167 = vadd.f32 %v39, %v103
  %v168 = vadd.f32 %v40, %v104
  %v169 = vadd.f32 %v41, %v105
  %v170 = vadd.f32 %v42, %v106
  %v171 = vadd.f32 %v43, %v107
  %v172 = vadd.f32 %v44, %v108
  %v173 = vadd.f32 %v45, %v109
  %v174 = vadd.f32 %v46, %v110
  %v175 = vadd.f32 %v47, %v111
  %v176 = vadd.f32 %v48, %v112
  %v177 = vadd.f32 %v49, %v113
  %v178 = vadd.f32 %v50, %v114
  %v179 = vadd.f32 %v51, %v115
  %v180 = vadd.f32 %v52, %v116
  %v181 = vadd.f32 %v53, %v117
  %v182 = vadd.f32 %v54, %v118
  %v183 = vadd.f32 %v55, %v119
  %v184 = vadd.f32 %v56, %v120
  %v185 = vadd.f32 %v57, %v121
  %v186 = vadd.f32 %v58, %v122
  %v187 = vadd.f32 %v59, %v123
  %v188 = vadd.f32 %v60, %v124
  %v189 = vadd.f32 %v61, %v125
  %v190 = vadd.f32 %v62, %v126
  %v191 = vadd.f32 %v63, %v127
  %v192 = vadd.f32 %v64, %v128
  %v193 = vadd.f32 %v65, %v129
  %v194 = vadd.f32 %v66, %v130
  %v195 = vadd.f32 %v67, %v131
  %v196 = vadd.f32 %v68, %v132
  %v197 = vadd.f32 %v69, %v133
  %v198 = vadd.f32 %v70, %v134
  %v199 = vadd.f32 %v71, %v135
  %v200 = vadd.f32 %v72, %v136
  %v201 = vadd.f32 %v73, %v137
  %v202 = vadd.f32 %v74, %v138
  %v203 = vadd.f32 %v75, %v139
  %v204 = vadd.f32 %v76, %v140
  %v205 = vadd.f32 %v77, %v141
  %v206 = vadd.f32 %v78, %v142
  %v207 = vadd.f32 %v79, %v143
  %v208 = vadd.f32 %v80, %v144
  %v209 = vadd.f32 %v81, %v145
  %v210 = vadd.f32 %v82, %v146
  %v211 = vadd.f32 %v83, %v147
  %v212 = vadd.f32 %v84, %v148
  %v213 = vadd.f32 %v85, %v149
  %v214 = vadd.f32 %v86, %v150
  %v215 = vadd.f32 %v87, %v151
  %v216 = vadd.f32 %v88, %v152
  %v217 = vadd.f32 %v89, %v153
  %v218 = vadd.f32 %v90, %v154
  %v219 = vadd.f32 %v91, %v155
  %v220 = vadd.f32 %v92, %v156
  %v221 = vadd.f32 %v93, %v157
  %v222 = vadd.f32 %v94, %v158
  %v223 = vadd.f32 %v95, %v159
  %v224 = vld [vmem:[%s3] sm:$0xff]
  %v225 = vld [vmem:[%s4] sm:$0x1]
  %v227 = vperm.slane %v225, 0
  %vm229 = vcmask 64512
  %v231 = vsel %vm229, %v160, 0
  %v234 = vsel %vm229, %v161, 0
  %v237 = vsel %vm229, %v162, 0
  %v240 = vsel %vm229, %v163, 0
  %v243 = vsel %vm229, %v164, 0
  %v246 = vsel %vm229, %v165, 0
  %v249 = vsel %vm229, %v166, 0
  %v252 = vsel %vm229, %v167, 0
  %v255 = vsel %vm229, %v168, 0
  %v258 = vsel %vm229, %v169, 0
  %v261 = vsel %vm229, %v170, 0
  %v264 = vsel %vm229, %v171, 0
  %v267 = vsel %vm229, %v172, 0
  %v270 = vsel %vm229, %v173, 0
  %v273 = vsel %vm229, %v174, 0
  %v276 = vsel %vm229, %v175, 0
  %v279 = vsel %vm229, %v176, 0
  %v282 = vsel %vm229, %v177, 0
  %v285 = vsel %vm229, %v178, 0
  %v288 = vsel %vm229, %v179, 0
  %v291 = vsel %vm229, %v180, 0
  %v294 = vsel %vm229, %v181, 0
  %v297 = vsel %vm229, %v182, 0
  %v300 = vsel %vm229, %v183, 0
  %v303 = vsel %vm229, %v184, 0
  %v306 = vsel %vm229, %v185, 0
  %v309 = vsel %vm229, %v186, 0
  %v312 = vsel %vm229, %v187, 0
  %v315 = vsel %vm229, %v188, 0
  %v318 = vsel %vm229, %v189, 0
  %v321 = vsel %vm229, %v190, 0
  %v324 = vsel %vm229, %v191, 0
  %v327 = vsel %vm229, %v192, 0
  %v330 = vsel %vm229, %v193, 0
  %v333 = vsel %vm229, %v194, 0
  %v336 = vsel %vm229, %v195, 0
  %v339 = vsel %vm229, %v196, 0
  %v342 = vsel %vm229, %v197, 0
  %v345 = vsel %vm229, %v198, 0
  %v348 = vsel %vm229, %v199, 0
  %v351 = vsel %vm229, %v200, 0
  %v354 = vsel %vm229, %v201, 0
  %v357 = vsel %vm229, %v202, 0
  %v360 = vsel %vm229, %v203, 0
  %v363 = vsel %vm229, %v204, 0
  %v366 = vsel %vm229, %v205, 0
  %v369 = vsel %vm229, %v206, 0
  %v372 = vsel %vm229, %v207, 0
  %v375 = vsel %vm229, %v208, 0
  %v378 = vsel %vm229, %v209, 0
  %v381 = vsel %vm229, %v210, 0
  %v384 = vsel %vm229, %v211, 0
  %v387 = vsel %vm229, %v212, 0
  %v390 = vsel %vm229, %v213, 0
  %v393 = vsel %vm229, %v214, 0
  %v396 = vsel %vm229, %v215, 0
  %v399 = vsel %vm229, %v216, 0
  %v402 = vsel %vm229, %v217, 0
  %v405 = vsel %vm229, %v218, 0
  %v408 = vsel %vm229, %v219, 0
  %v411 = vsel %vm229, %v220, 0
  %v414 = vsel %vm229, %v221, 0
  %v417 = vsel %vm229, %v222, 0
  %v420 = vsel %vm229, %v223, 0
  %422 = vmatpush.msra.mxu0 0.0
  %423 = vmatpush.msra.mxu0 0.0
  %424 = vmatpush.msra.mxu0 0.0
  %425 = vmatpush.msra.mxu0 0.0
  %426 = vmatpush.msra.mxu0 0.0
  %427 = vmatpush.msra.mxu0 0.0
  %428 = vmatpush.msra.mxu0 0.0
  %429 = vmatpush.msra.mxu0 0.0
  %430 = vmatpush.msra.mxu0 0.0
  %431 = vmatpush.msra.mxu0 0.0
  %432 = vmatpush.msra.mxu0 0.0
  %433 = vmatpush.msra.mxu0 0.0
  %434 = vmatpush.msra.mxu0 0.0
  %435 = vmatpush.msra.mxu0 0.0
  %436 = vmatpush.msra.mxu0 0.0
  %437 = vmatpush.msra.mxu0 %v224
  %438 = vmatmul.f32.gmra.mxu0 %v231
  %v439 = vpop.f32.mrf.mxu0
  %v440 = vadd.f32 %v227, %v439
  %441 = vmatmul.f32.gmra.mxu0 %v234
  %v442 = vpop.f32.mrf.mxu0
  %v443 = vadd.f32 %v227, %v442
  %444 = vmatmul.f32.gmra.mxu0 %v237
  %v445 = vpop.f32.mrf.mxu0
  %v446 = vadd.f32 %v227, %v445
  %447 = vmatmul.f32.gmra.mxu0 %v240
  %v448 = vpop.f32.mrf.mxu0
  %v449 = vadd.f32 %v227, %v448
  %450 = vmatmul.f32.gmra.mxu0 %v243
  %v451 = vpop.f32.mrf.mxu0
  %v452 = vadd.f32 %v227, %v451
  %453 = vmatmul.f32.gmra.mxu0 %v246
  %v454 = vpop.f32.mrf.mxu0
  %v455 = vadd.f32 %v227, %v454
  %456 = vmatmul.f32.gmra.mxu0 %v249
  %v457 = vpop.f32.mrf.mxu0
  %v458 = vadd.f32 %v227, %v457
  %459 = vmatmul.f32.gmra.mxu0 %v252
  %v460 = vpop.f32.mrf.mxu0
  %v461 = vadd.f32 %v227, %v460
  %462 = vmatmul.f32.gmra.mxu0 %v255
  %v463 = vpop.f32.mrf.mxu0
  %v464 = vadd.f32 %v227, %v463
  %465 = vmatmul.f32.gmra.mxu0 %v258
  %v466 = vpop.f32.mrf.mxu0
  %v467 = vadd.f32 %v227, %v466
  %468 = vmatmul.f32.gmra.mxu0 %v261
  %v469 = vpop.f32.mrf.mxu0
  %v470 = vadd.f32 %v227, %v469
  %471 = vmatmul.f32.gmra.mxu0 %v264
  %v472 = vpop.f32.mrf.mxu0
  %v473 = vadd.f32 %v227, %v472
  %474 = vmatmul.f32.gmra.mxu0 %v267
  %v475 = vpop.f32.mrf.mxu0
  %v476 = vadd.f32 %v227, %v475
  %477 = vmatmul.f32.gmra.mxu0 %v270
  %v478 = vpop.f32.mrf.mxu0
  %v479 = vadd.f32 %v227, %v478
  %480 = vmatmul.f32.gmra.mxu0 %v273
  %v481 = vpop.f32.mrf.mxu0
  %v482 = vadd.f32 %v227, %v481
  %483 = vmatmul.f32.gmra.mxu0 %v276
  %v484 = vpop.f32.mrf.mxu0
  %v485 = vadd.f32 %v227, %v484
  %486 = vmatmul.f32.gmra.mxu0 %v279
  %v487 = vpop.f32.mrf.mxu0
  %v488 = vadd.f32 %v227, %v487
  %489 = vmatmul.f32.gmra.mxu0 %v282
  %v490 = vpop.f32.mrf.mxu0
  %v491 = vadd.f32 %v227, %v490
  %492 = vmatmul.f32.gmra.mxu0 %v285
  %v493 = vpop.f32.mrf.mxu0
  %v494 = vadd.f32 %v227, %v493
  %495 = vmatmul.f32.gmra.mxu0 %v288
  %v496 = vpop.f32.mrf.mxu0
  %v497 = vadd.f32 %v227, %v496
  %498 = vmatmul.f32.gmra.mxu0 %v291
  %v499 = vpop.f32.mrf.mxu0
  %v500 = vadd.f32 %v227, %v499
  %501 = vmatmul.f32.gmra.mxu0 %v294
  %v502 = vpop.f32.mrf.mxu0
  %v503 = vadd.f32 %v227, %v502
  %504 = vmatmul.f32.gmra.mxu0 %v297
  %v505 = vpop.f32.mrf.mxu0
  %v506 = vadd.f32 %v227, %v505
  %507 = vmatmul.f32.gmra.mxu0 %v300
  %v508 = vpop.f32.mrf.mxu0
  %v509 = vadd.f32 %v227, %v508
  %510 = vmatmul.f32.gmra.mxu0 %v303
  %v511 = vpop.f32.mrf.mxu0
  %v512 = vadd.f32 %v227, %v511
  %513 = vmatmul.f32.gmra.mxu0 %v306
  %v514 = vpop.f32.mrf.mxu0
  %v515 = vadd.f32 %v227, %v514
  %516 = vmatmul.f32.gmra.mxu0 %v309
  %v517 = vpop.f32.mrf.mxu0
  %v518 = vadd.f32 %v227, %v517
  %519 = vmatmul.f32.gmra.mxu0 %v312
  %v520 = vpop.f32.mrf.mxu0
  %v521 = vadd.f32 %v227, %v520
  %522 = vmatmul.f32.gmra.mxu0 %v315
  %v523 = vpop.f32.mrf.mxu0
  %v524 = vadd.f32 %v227, %v523
  %525 = vmatmul.f32.gmra.mxu0 %v318
  %v526 = vpop.f32.mrf.mxu0
  %v527 = vadd.f32 %v227, %v526
  %528 = vmatmul.f32.gmra.mxu0 %v321
  %v529 = vpop.f32.mrf.mxu0
  %v530 = vadd.f32 %v227, %v529
  %531 = vmatmul.f32.gmra.mxu0 %v324
  %v532 = vpop.f32.mrf.mxu0
  %v533 = vadd.f32 %v227, %v532
  %534 = vmatmul.f32.gmra.mxu0 %v327
  %v535 = vpop.f32.mrf.mxu0
  %v536 = vadd.f32 %v227, %v535
  %537 = vmatmul.f32.gmra.mxu0 %v330
  %v538 = vpop.f32.mrf.mxu0
  %v539 = vadd.f32 %v227, %v538
  %540 = vmatmul.f32.gmra.mxu0 %v333
  %v541 = vpop.f32.mrf.mxu0
  %v542 = vadd.f32 %v227, %v541
  %543 = vmatmul.f32.gmra.mxu0 %v336
  %v544 = vpop.f32.mrf.mxu0
  %v545 = vadd.f32 %v227, %v544
  %546 = vmatmul.f32.gmra.mxu0 %v339
  %v547 = vpop.f32.mrf.mxu0
  %v548 = vadd.f32 %v227, %v547
  %549 = vmatmul.f32.gmra.mxu0 %v342
  %v550 = vpop.f32.mrf.mxu0
  %v551 = vadd.f32 %v227, %v550
  %552 = vmatmul.f32.gmra.mxu0 %v345
  %v553 = vpop.f32.mrf.mxu0
  %v554 = vadd.f32 %v227, %v553
  %555 = vmatmul.f32.gmra.mxu0 %v348
  %v556 = vpop.f32.mrf.mxu0
  %v557 = vadd.f32 %v227, %v556
  %558 = vmatmul.f32.gmra.mxu0 %v351
  %v559 = vpop.f32.mrf.mxu0
  %v560 = vadd.f32 %v227, %v559
  %561 = vmatmul.f32.gmra.mxu0 %v354
  %v562 = vpop.f32.mrf.mxu0
  %v563 = vadd.f32 %v227, %v562
  %564 = vmatmul.f32.gmra.mxu0 %v357
  %v565 = vpop.f32.mrf.mxu0
  %v566 = vadd.f32 %v227, %v565
  %567 = vmatmul.f32.gmra.mxu0 %v360
  %v568 = vpop.f32.mrf.mxu0
  %v569 = vadd.f32 %v227, %v568
  %570 = vmatmul.f32.gmra.mxu0 %v363
  %v571 = vpop.f32.mrf.mxu0
  %v572 = vadd.f32 %v227, %v571
  %573 = vmatmul.f32.gmra.mxu0 %v366
  %v574 = vpop.f32.mrf.mxu0
  %v575 = vadd.f32 %v227, %v574
  %576 = vmatmul.f32.gmra.mxu0 %v369
  %v577 = vpop.f32.mrf.mxu0
  %v578 = vadd.f32 %v227, %v577
  %579 = vmatmul.f32.gmra.mxu0 %v372
  %v580 = vpop.f32.mrf.mxu0
  %v581 = vadd.f32 %v227, %v580
  %582 = vmatmul.f32.gmra.mxu0 %v375
  %v583 = vpop.f32.mrf.mxu0
  %v584 = vadd.f32 %v227, %v583
  %585 = vmatmul.f32.gmra.mxu0 %v378
  %v586 = vpop.f32.mrf.mxu0
  %v587 = vadd.f32 %v227, %v586
  %588 = vmatmul.f32.gmra.mxu0 %v381
  %v589 = vpop.f32.mrf.mxu0
  %v590 = vadd.f32 %v227, %v589
  %591 = vmatmul.f32.gmra.mxu0 %v384
  %v592 = vpop.f32.mrf.mxu0
  %v593 = vadd.f32 %v227, %v592
  %594 = vmatmul.f32.gmra.mxu0 %v387
  %v595 = vpop.f32.mrf.mxu0
  %v596 = vadd.f32 %v227, %v595
  %597 = vmatmul.f32.gmra.mxu0 %v390
  %v598 = vpop.f32.mrf.mxu0
  %v599 = vadd.f32 %v227, %v598
  %600 = vmatmul.f32.gmra.mxu0 %v393
  %v601 = vpop.f32.mrf.mxu0
  %v602 = vadd.f32 %v227, %v601
  %603 = vmatmul.f32.gmra.mxu0 %v396
  %v604 = vpop.f32.mrf.mxu0
  %v605 = vadd.f32 %v227, %v604
  %606 = vmatmul.f32.gmra.mxu0 %v399
  %v607 = vpop.f32.mrf.mxu0
  %v608 = vadd.f32 %v227, %v607
  %609 = vmatmul.f32.gmra.mxu0 %v402
  %v610 = vpop.f32.mrf.mxu0
  %v611 = vadd.f32 %v227, %v610
  %612 = vmatmul.f32.gmra.mxu0 %v405
  %v613 = vpop.f32.mrf.mxu0
  %v614 = vadd.f32 %v227, %v613
  %615 = vmatmul.f32.gmra.mxu0 %v408
  %v616 = vpop.f32.mrf.mxu0
  %v617 = vadd.f32 %v227, %v616
  %618 = vmatmul.f32.gmra.mxu0 %v411
  %v619 = vpop.f32.mrf.mxu0
  %v620 = vadd.f32 %v227, %v619
  %621 = vmatmul.f32.gmra.mxu0 %v414
  %v622 = vpop.f32.mrf.mxu0
  %v623 = vadd.f32 %v227, %v622
  %624 = vmatmul.f32.gmra.mxu0 %v417
  %v625 = vpop.f32.mrf.mxu0
  %v626 = vadd.f32 %v227, %v625
  %627 = vmatmul.f32.gmra.mxu0 %v420
  %v628 = vpop.f32.mrf.mxu0
  %v629 = vadd.f32 %v227, %v628
  %630 = vdwg.mxu0
  %v631 = vmax.f32 %v440, 0.0
  %v632 = vmax.f32 %v443, 0.0
  %v633 = vmax.f32 %v446, 0.0
  %v634 = vmax.f32 %v449, 0.0
  %v635 = vmax.f32 %v452, 0.0
  %v636 = vmax.f32 %v455, 0.0
  %v637 = vmax.f32 %v458, 0.0
  %v638 = vmax.f32 %v461, 0.0
  %v639 = vmax.f32 %v464, 0.0
  %v640 = vmax.f32 %v467, 0.0
  %v641 = vmax.f32 %v470, 0.0
  %v642 = vmax.f32 %v473, 0.0
  %v643 = vmax.f32 %v476, 0.0
  %v644 = vmax.f32 %v479, 0.0
  %v645 = vmax.f32 %v482, 0.0
  %v646 = vmax.f32 %v485, 0.0
  %v647 = vmax.f32 %v488, 0.0
  %v648 = vmax.f32 %v491, 0.0
  %v649 = vmax.f32 %v494, 0.0
  %v650 = vmax.f32 %v497, 0.0
  %v651 = vmax.f32 %v500, 0.0
  %v652 = vmax.f32 %v503, 0.0
  %v653 = vmax.f32 %v506, 0.0
  %v654 = vmax.f32 %v509, 0.0
  %v655 = vmax.f32 %v512, 0.0
  %v656 = vmax.f32 %v515, 0.0
  %v657 = vmax.f32 %v518, 0.0
  %v658 = vmax.f32 %v521, 0.0
  %v659 = vmax.f32 %v524, 0.0
  %v660 = vmax.f32 %v527, 0.0
  %v661 = vmax.f32 %v530, 0.0
  %v662 = vmax.f32 %v533, 0.0
  %v663 = vmax.f32 %v536, 0.0
  %v664 = vmax.f32 %v539, 0.0
  %v665 = vmax.f32 %v542, 0.0
  %v666 = vmax.f32 %v545, 0.0
  %v667 = vmax.f32 %v548, 0.0
  %v668 = vmax.f32 %v551, 0.0
  %v669 = vmax.f32 %v554, 0.0
  %v670 = vmax.f32 %v557, 0.0
  %v671 = vmax.f32 %v560, 0.0
  %v672 = vmax.f32 %v563, 0.0
  %v673 = vmax.f32 %v566, 0.0
  %v674 = vmax.f32 %v569, 0.0
  %v675 = vmax.f32 %v572, 0.0
  %v676 = vmax.f32 %v575, 0.0
  %v677 = vmax.f32 %v578, 0.0
  %v678 = vmax.f32 %v581, 0.0
  %v679 = vmax.f32 %v584, 0.0
  %v680 = vmax.f32 %v587, 0.0
  %v681 = vmax.f32 %v590, 0.0
  %v682 = vmax.f32 %v593, 0.0
  %v683 = vmax.f32 %v596, 0.0
  %v684 = vmax.f32 %v599, 0.0
  %v685 = vmax.f32 %v602, 0.0
  %v686 = vmax.f32 %v605, 0.0
  %v687 = vmax.f32 %v608, 0.0
  %v688 = vmax.f32 %v611, 0.0
  %v689 = vmax.f32 %v614, 0.0
  %v690 = vmax.f32 %v617, 0.0
  %v691 = vmax.f32 %v620, 0.0
  %v692 = vmax.f32 %v623, 0.0
  %v693 = vmax.f32 %v626, 0.0
  %v694 = vmax.f32 %v629, 0.0
  %vm695 = vcmask 130048
  %v696 = vsel %vm695, %v631, 0.0
  %697 = vadd.xlane.f32.xlu0 %v696
  %v698 = vpop.xlane.xlu0 %697
  %v699 = vsel %vm695, %v632, 0.0
  %700 = vadd.xlane.f32.xlu0 %v699
  %v701 = vpop.xlane.xlu0 %700
  %v702 = vsel %vm695, %v633, 0.0
  %703 = vadd.xlane.f32.xlu0 %v702
  %v704 = vpop.xlane.xlu0 %703
  %v705 = vsel %vm695, %v634, 0.0
  %706 = vadd.xlane.f32.xlu0 %v705
  %v707 = vpop.xlane.xlu0 %706
  %v708 = vsel %vm695, %v635, 0.0
  %709 = vadd.xlane.f32.xlu0 %v708
  %v710 = vpop.xlane.xlu0 %709
  %v711 = vsel %vm695, %v636, 0.0
  %712 = vadd.xlane.f32.xlu0 %v711
  %v713 = vpop.xlane.xlu0 %712
  %v714 = vsel %vm695, %v637, 0.0
  %715 = vadd.xlane.f32.xlu0 %v714
  %v716 = vpop.xlane.xlu0 %715
  %v717 = vsel %vm695, %v638, 0.0
  %718 = vadd.xlane.f32.xlu0 %v717
  %v719 = vpop.xlane.xlu0 %718
  %v720 = vsel %vm695, %v639, 0.0
  %721 = vadd.xlane.f32.xlu0 %v720
  %v722 = vpop.xlane.xlu0 %721
  %v723 = vsel %vm695, %v640, 0.0
  %724 = vadd.xlane.f32.xlu0 %v723
  %v725 = vpop.xlane.xlu0 %724
  %v726 = vsel %vm695, %v641, 0.0
  %727 = vadd.xlane.f32.xlu0 %v726
  %v728 = vpop.xlane.xlu0 %727
  %v729 = vsel %vm695, %v642, 0.0
  %730 = vadd.xlane.f32.xlu0 %v729
  %v731 = vpop.xlane.xlu0 %730
  %v732 = vsel %vm695, %v643, 0.0
  %733 = vadd.xlane.f32.xlu0 %v732
  %v734 = vpop.xlane.xlu0 %733
  %v735 = vsel %vm695, %v644, 0.0
  %736 = vadd.xlane.f32.xlu0 %v735
  %v737 = vpop.xlane.xlu0 %736
  %v738 = vsel %vm695, %v645, 0.0
  %739 = vadd.xlane.f32.xlu0 %v738
  %v740 = vpop.xlane.xlu0 %739
  %v741 = vsel %vm695, %v646, 0.0
  %742 = vadd.xlane.f32.xlu0 %v741
  %v743 = vpop.xlane.xlu0 %742
  %v744 = vsel %vm695, %v647, 0.0
  %745 = vadd.xlane.f32.xlu0 %v744
  %v746 = vpop.xlane.xlu0 %745
  %v747 = vsel %vm695, %v648, 0.0
  %748 = vadd.xlane.f32.xlu0 %v747
  %v749 = vpop.xlane.xlu0 %748
  %v750 = vsel %vm695, %v649, 0.0
  %751 = vadd.xlane.f32.xlu0 %v750
  %v752 = vpop.xlane.xlu0 %751
  %v753 = vsel %vm695, %v650, 0.0
  %754 = vadd.xlane.f32.xlu0 %v753
  %v755 = vpop.xlane.xlu0 %754
  %v756 = vsel %vm695, %v651, 0.0
  %757 = vadd.xlane.f32.xlu0 %v756
  %v758 = vpop.xlane.xlu0 %757
  %v759 = vsel %vm695, %v652, 0.0
  %760 = vadd.xlane.f32.xlu0 %v759
  %v761 = vpop.xlane.xlu0 %760
  %v762 = vsel %vm695, %v653, 0.0
  %763 = vadd.xlane.f32.xlu0 %v762
  %v764 = vpop.xlane.xlu0 %763
  %v765 = vsel %vm695, %v654, 0.0
  %766 = vadd.xlane.f32.xlu0 %v765
  %v767 = vpop.xlane.xlu0 %766
  %v768 = vsel %vm695, %v655, 0.0
  %769 = vadd.xlane.f32.xlu0 %v768
  %v770 = vpop.xlane.xlu0 %769
  %v771 = vsel %vm695, %v656, 0.0
  %772 = vadd.xlane.f32.xlu0 %v771
  %v773 = vpop.xlane.xlu0 %772
  %v774 = vsel %vm695, %v657, 0.0
  %775 = vadd.xlane.f32.xlu0 %v774
  %v776 = vpop.xlane.xlu0 %775
  %v777 = vsel %vm695, %v658, 0.0
  %778 = vadd.xlane.f32.xlu0 %v777
  %v779 = vpop.xlane.xlu0 %778
  %v780 = vsel %vm695, %v659, 0.0
  %781 = vadd.xlane.f32.xlu0 %v780
  %v782 = vpop.xlane.xlu0 %781
  %v783 = vsel %vm695, %v660, 0.0
  %784 = vadd.xlane.f32.xlu0 %v783
  %v785 = vpop.xlane.xlu0 %784
  %v786 = vsel %vm695, %v661, 0.0
  %787 = vadd.xlane.f32.xlu0 %v786
  %v788 = vpop.xlane.xlu0 %787
  %v789 = vsel %vm695, %v662, 0.0
  %790 = vadd.xlane.f32.xlu0 %v789
  %v791 = vpop.xlane.xlu0 %790
  %v792 = vsel %vm695, %v663, 0.0
  %793 = vadd.xlane.f32.xlu0 %v792
  %v794 = vpop.xlane.xlu0 %793
  %v795 = vsel %vm695, %v664, 0.0
  %796 = vadd.xlane.f32.xlu0 %v795
  %v797 = vpop.xlane.xlu0 %796
  %v798 = vsel %vm695, %v665, 0.0
  %799 = vadd.xlane.f32.xlu0 %v798
  %v800 = vpop.xlane.xlu0 %799
  %v801 = vsel %vm695, %v666, 0.0
  %802 = vadd.xlane.f32.xlu0 %v801
  %v803 = vpop.xlane.xlu0 %802
  %v804 = vsel %vm695, %v667, 0.0
  %805 = vadd.xlane.f32.xlu0 %v804
  %v806 = vpop.xlane.xlu0 %805
  %v807 = vsel %vm695, %v668, 0.0
  %808 = vadd.xlane.f32.xlu0 %v807
  %v809 = vpop.xlane.xlu0 %808
  %v810 = vsel %vm695, %v669, 0.0
  %811 = vadd.xlane.f32.xlu0 %v810
  %v812 = vpop.xlane.xlu0 %811
  %v813 = vsel %vm695, %v670, 0.0
  %814 = vadd.xlane.f32.xlu0 %v813
  %v815 = vpop.xlane.xlu0 %814
  %v816 = vsel %vm695, %v671, 0.0
  %817 = vadd.xlane.f32.xlu0 %v816
  %v818 = vpop.xlane.xlu0 %817
  %v819 = vsel %vm695, %v672, 0.0
  %820 = vadd.xlane.f32.xlu0 %v819
  %v821 = vpop.xlane.xlu0 %820
  %v822 = vsel %vm695, %v673, 0.0
  %823 = vadd.xlane.f32.xlu0 %v822
  %v824 = vpop.xlane.xlu0 %823
  %v825 = vsel %vm695, %v674, 0.0
  %826 = vadd.xlane.f32.xlu0 %v825
  %v827 = vpop.xlane.xlu0 %826
  %v828 = vsel %vm695, %v675, 0.0
  %829 = vadd.xlane.f32.xlu0 %v828
  %v830 = vpop.xlane.xlu0 %829
  %v831 = vsel %vm695, %v676, 0.0
  %832 = vadd.xlane.f32.xlu0 %v831
  %v833 = vpop.xlane.xlu0 %832
  %v834 = vsel %vm695, %v677, 0.0
  %835 = vadd.xlane.f32.xlu0 %v834
  %v836 = vpop.xlane.xlu0 %835
  %v837 = vsel %vm695, %v678, 0.0
  %838 = vadd.xlane.f32.xlu0 %v837
  %v839 = vpop.xlane.xlu0 %838
  %v840 = vsel %vm695, %v679, 0.0
  %841 = vadd.xlane.f32.xlu0 %v840
  %v842 = vpop.xlane.xlu0 %841
  %v843 = vsel %vm695, %v680, 0.0
  %844 = vadd.xlane.f32.xlu0 %v843
  %v845 = vpop.xlane.xlu0 %844
  %v846 = vsel %vm695, %v681, 0.0
  %847 = vadd.xlane.f32.xlu0 %v846
  %v848 = vpop.xlane.xlu0 %847
  %v849 = vsel %vm695, %v682, 0.0
  %850 = vadd.xlane.f32.xlu0 %v849
  %v851 = vpop.xlane.xlu0 %850
  %v852 = vsel %vm695, %v683, 0.0
  %853 = vadd.xlane.f32.xlu0 %v852
  %v854 = vpop.xlane.xlu0 %853
  %v855 = vsel %vm695, %v684, 0.0
  %856 = vadd.xlane.f32.xlu0 %v855
  %v857 = vpop.xlane.xlu0 %856
  %v858 = vsel %vm695, %v685, 0.0
  %859 = vadd.xlane.f32.xlu0 %v858
  %v860 = vpop.xlane.xlu0 %859
  %v861 = vsel %vm695, %v686, 0.0
  %862 = vadd.xlane.f32.xlu0 %v861
  %v863 = vpop.xlane.xlu0 %862
  %v864 = vsel %vm695, %v687, 0.0
  %865 = vadd.xlane.f32.xlu0 %v864
  %v866 = vpop.xlane.xlu0 %865
  %v867 = vsel %vm695, %v688, 0.0
  %868 = vadd.xlane.f32.xlu0 %v867
  %v869 = vpop.xlane.xlu0 %868
  %v870 = vsel %vm695, %v689, 0.0
  %871 = vadd.xlane.f32.xlu0 %v870
  %v872 = vpop.xlane.xlu0 %871
  %v873 = vsel %vm695, %v690, 0.0
  %874 = vadd.xlane.f32.xlu0 %v873
  %v875 = vpop.xlane.xlu0 %874
  %v876 = vsel %vm695, %v691, 0.0
  %877 = vadd.xlane.f32.xlu0 %v876
  %v878 = vpop.xlane.xlu0 %877
  %v879 = vsel %vm695, %v692, 0.0
  %880 = vadd.xlane.f32.xlu0 %v879
  %v881 = vpop.xlane.xlu0 %880
  %v882 = vsel %vm695, %v693, 0.0
  %883 = vadd.xlane.f32.xlu0 %v882
  %v884 = vpop.xlane.xlu0 %883
  %v885 = vsel %vm695, %v694, 0.0
  %886 = vadd.xlane.f32.xlu0 %v885
  %v887 = vpop.xlane.xlu0 %886
  %v888 = vrcp.pop 16.0
  %v889 = vmul.f32 16.0, %v888
  %v890 = vsub.f32 1.0, %v889
  %v891 = vmul.f32 %v888, %v890
  %v892 = vadd.f32 %v888, %v891
  %vm893 = vweird.f32 %v888
  %v894 = vsel %vm893, %v888, %v892
  %v895 = vmul.f32 %v698, %v894
  %v896 = vmul.f32 %v701, %v894
  %v897 = vmul.f32 %v704, %v894
  %v898 = vmul.f32 %v707, %v894
  %v899 = vmul.f32 %v710, %v894
  %v900 = vmul.f32 %v713, %v894
  %v901 = vmul.f32 %v716, %v894
  %v902 = vmul.f32 %v719, %v894
  %v903 = vmul.f32 %v722, %v894
  %v904 = vmul.f32 %v725, %v894
  %v905 = vmul.f32 %v728, %v894
  %v906 = vmul.f32 %v731, %v894
  %v907 = vmul.f32 %v734, %v894
  %v908 = vmul.f32 %v737, %v894
  %v909 = vmul.f32 %v740, %v894
  %v910 = vmul.f32 %v743, %v894
  %v911 = vmul.f32 %v746, %v894
  %v912 = vmul.f32 %v749, %v894
  %v913 = vmul.f32 %v752, %v894
  %v914 = vmul.f32 %v755, %v894
  %v915 = vmul.f32 %v758, %v894
  %v916 = vmul.f32 %v761, %v894
  %v917 = vmul.f32 %v764, %v894
  %v918 = vmul.f32 %v767, %v894
  %v919 = vmul.f32 %v770, %v894
  %v920 = vmul.f32 %v773, %v894
  %v921 = vmul.f32 %v776, %v894
  %v922 = vmul.f32 %v779, %v894
  %v923 = vmul.f32 %v782, %v894
  %v924 = vmul.f32 %v785, %v894
  %v925 = vmul.f32 %v788, %v894
  %v926 = vmul.f32 %v791, %v894
  %v927 = vmul.f32 %v794, %v894
  %v928 = vmul.f32 %v797, %v894
  %v929 = vmul.f32 %v800, %v894
  %v930 = vmul.f32 %v803, %v894
  %v931 = vmul.f32 %v806, %v894
  %v932 = vmul.f32 %v809, %v894
  %v933 = vmul.f32 %v812, %v894
  %v934 = vmul.f32 %v815, %v894
  %v935 = vmul.f32 %v818, %v894
  %v936 = vmul.f32 %v821, %v894
  %v937 = vmul.f32 %v824, %v894
  %v938 = vmul.f32 %v827, %v894
  %v939 = vmul.f32 %v830, %v894
  %v940 = vmul.f32 %v833, %v894
  %v941 = vmul.f32 %v836, %v894
  %v942 = vmul.f32 %v839, %v894
  %v943 = vmul.f32 %v842, %v894
  %v944 = vmul.f32 %v845, %v894
  %v945 = vmul.f32 %v848, %v894
  %v946 = vmul.f32 %v851, %v894
  %v947 = vmul.f32 %v854, %v894
  %v948 = vmul.f32 %v857, %v894
  %v949 = vmul.f32 %v860, %v894
  %v950 = vmul.f32 %v863, %v894
  %v951 = vmul.f32 %v866, %v894
  %v952 = vmul.f32 %v869, %v894
  %v953 = vmul.f32 %v872, %v894
  %v954 = vmul.f32 %v875, %v894
  %v955 = vmul.f32 %v878, %v894
  %v956 = vmul.f32 %v881, %v894
  %v957 = vmul.f32 %v884, %v894
  %v958 = vmul.f32 %v887, %v894
  %v959 = vsub.f32 %v631, %v895
  %v960 = vsub.f32 %v632, %v896
  %v961 = vsub.f32 %v633, %v897
  %v962 = vsub.f32 %v634, %v898
  %v963 = vsub.f32 %v635, %v899
  %v964 = vsub.f32 %v636, %v900
  %v965 = vsub.f32 %v637, %v901
  %v966 = vsub.f32 %v638, %v902
  %v967 = vsub.f32 %v639, %v903
  %v968 = vsub.f32 %v640, %v904
  %v969 = vsub.f32 %v641, %v905
  %v970 = vsub.f32 %v642, %v906
  %v971 = vsub.f32 %v643, %v907
  %v972 = vsub.f32 %v644, %v908
  %v973 = vsub.f32 %v645, %v909
  %v974 = vsub.f32 %v646, %v910
  %v975 = vsub.f32 %v647, %v911
  %v976 = vsub.f32 %v648, %v912
  %v977 = vsub.f32 %v649, %v913
  %v978 = vsub.f32 %v650, %v914
  %v979 = vsub.f32 %v651, %v915
  %v980 = vsub.f32 %v652, %v916
  %v981 = vsub.f32 %v653, %v917
  %v982 = vsub.f32 %v654, %v918
  %v983 = vsub.f32 %v655, %v919
  %v984 = vsub.f32 %v656, %v920
  %v985 = vsub.f32 %v657, %v921
  %v986 = vsub.f32 %v658, %v922
  %v987 = vsub.f32 %v659, %v923
  %v988 = vsub.f32 %v660, %v924
  %v989 = vsub.f32 %v661, %v925
  %v990 = vsub.f32 %v662, %v926
  %v991 = vsub.f32 %v663, %v927
  %v992 = vsub.f32 %v664, %v928
  %v993 = vsub.f32 %v665, %v929
  %v994 = vsub.f32 %v666, %v930
  %v995 = vsub.f32 %v667, %v931
  %v996 = vsub.f32 %v668, %v932
  %v997 = vsub.f32 %v669, %v933
  %v998 = vsub.f32 %v670, %v934
  %v999 = vsub.f32 %v671, %v935
  %v1000 = vsub.f32 %v672, %v936
  %v1001 = vsub.f32 %v673, %v937
  %v1002 = vsub.f32 %v674, %v938
  %v1003 = vsub.f32 %v675, %v939
  %v1004 = vsub.f32 %v676, %v940
  %v1005 = vsub.f32 %v677, %v941
  %v1006 = vsub.f32 %v678, %v942
  %v1007 = vsub.f32 %v679, %v943
  %v1008 = vsub.f32 %v680, %v944
  %v1009 = vsub.f32 %v681, %v945
  %v1010 = vsub.f32 %v682, %v946
  %v1011 = vsub.f32 %v683, %v947
  %v1012 = vsub.f32 %v684, %v948
  %v1013 = vsub.f32 %v685, %v949
  %v1014 = vsub.f32 %v686, %v950
  %v1015 = vsub.f32 %v687, %v951
  %v1016 = vsub.f32 %v688, %v952
  %v1017 = vsub.f32 %v689, %v953
  %v1018 = vsub.f32 %v690, %v954
  %v1019 = vsub.f32 %v691, %v955
  %v1020 = vsub.f32 %v692, %v956
  %v1021 = vsub.f32 %v693, %v957
  %v1022 = vsub.f32 %v694, %v958
  %v1023 = vmul.f32 %v959, %v959
  %v1024 = vmul.f32 %v960, %v960
  %v1025 = vmul.f32 %v961, %v961
  %v1026 = vmul.f32 %v962, %v962
  %v1027 = vmul.f32 %v963, %v963
  %v1028 = vmul.f32 %v964, %v964
  %v1029 = vmul.f32 %v965, %v965
  %v1030 = vmul.f32 %v966, %v966
  %v1031 = vmul.f32 %v967, %v967
  %v1032 = vmul.f32 %v968, %v968
  %v1033 = vmul.f32 %v969, %v969
  %v1034 = vmul.f32 %v970, %v970
  %v1035 = vmul.f32 %v971, %v971
  %v1036 = vmul.f32 %v972, %v972
  %v1037 = vmul.f32 %v973, %v973
  %v1038 = vmul.f32 %v974, %v974
  %v1039 = vmul.f32 %v975, %v975
  %v1040 = vmul.f32 %v976, %v976
  %v1041 = vmul.f32 %v977, %v977
  %v1042 = vmul.f32 %v978, %v978
  %v1043 = vmul.f32 %v979, %v979
  %v1044 = vmul.f32 %v980, %v980
  %v1045 = vmul.f32 %v981, %v981
  %v1046 = vmul.f32 %v982, %v982
  %v1047 = vmul.f32 %v983, %v983
  %v1048 = vmul.f32 %v984, %v984
  %v1049 = vmul.f32 %v985, %v985
  %v1050 = vmul.f32 %v986, %v986
  %v1051 = vmul.f32 %v987, %v987
  %v1052 = vmul.f32 %v988, %v988
  %v1053 = vmul.f32 %v989, %v989
  %v1054 = vmul.f32 %v990, %v990
  %v1055 = vmul.f32 %v991, %v991
  %v1056 = vmul.f32 %v992, %v992
  %v1057 = vmul.f32 %v993, %v993
  %v1058 = vmul.f32 %v994, %v994
  %v1059 = vmul.f32 %v995, %v995
  %v1060 = vmul.f32 %v996, %v996
  %v1061 = vmul.f32 %v997, %v997
  %v1062 = vmul.f32 %v998, %v998
  %v1063 = vmul.f32 %v999, %v999
  %v1064 = vmul.f32 %v1000, %v1000
  %v1065 = vmul.f32 %v1001, %v1001
  %v1066 = vmul.f32 %v1002, %v1002
  %v1067 = vmul.f32 %v1003, %v1003
  %v1068 = vmul.f32 %v1004, %v1004
  %v1069 = vmul.f32 %v1005, %v1005
  %v1070 = vmul.f32 %v1006, %v1006
  %v1071 = vmul.f32 %v1007, %v1007
  %v1072 = vmul.f32 %v1008, %v1008
  %v1073 = vmul.f32 %v1009, %v1009
  %v1074 = vmul.f32 %v1010, %v1010
  %v1075 = vmul.f32 %v1011, %v1011
  %v1076 = vmul.f32 %v1012, %v1012
  %v1077 = vmul.f32 %v1013, %v1013
  %v1078 = vmul.f32 %v1014, %v1014
  %v1079 = vmul.f32 %v1015, %v1015
  %v1080 = vmul.f32 %v1016, %v1016
  %v1081 = vmul.f32 %v1017, %v1017
  %v1082 = vmul.f32 %v1018, %v1018
  %v1083 = vmul.f32 %v1019, %v1019
  %v1084 = vmul.f32 %v1020, %v1020
  %v1085 = vmul.f32 %v1021, %v1021
  %v1086 = vmul.f32 %v1022, %v1022
  %v1087 = vsel %vm695, %v1023, 0.0
  %1088 = vadd.xlane.f32.xlu0 %v1087
  %v1089 = vpop.xlane.xlu0 %1088
  %v1090 = vsel %vm695, %v1024, 0.0
  %1091 = vadd.xlane.f32.xlu0 %v1090
  %v1092 = vpop.xlane.xlu0 %1091
  %v1093 = vsel %vm695, %v1025, 0.0
  %1094 = vadd.xlane.f32.xlu0 %v1093
  %v1095 = vpop.xlane.xlu0 %1094
  %v1096 = vsel %vm695, %v1026, 0.0
  %1097 = vadd.xlane.f32.xlu0 %v1096
  %v1098 = vpop.xlane.xlu0 %1097
  %v1099 = vsel %vm695, %v1027, 0.0
  %1100 = vadd.xlane.f32.xlu0 %v1099
  %v1101 = vpop.xlane.xlu0 %1100
  %v1102 = vsel %vm695, %v1028, 0.0
  %1103 = vadd.xlane.f32.xlu0 %v1102
  %v1104 = vpop.xlane.xlu0 %1103
  %v1105 = vsel %vm695, %v1029, 0.0
  %1106 = vadd.xlane.f32.xlu0 %v1105
  %v1107 = vpop.xlane.xlu0 %1106
  %v1108 = vsel %vm695, %v1030, 0.0
  %1109 = vadd.xlane.f32.xlu0 %v1108
  %v1110 = vpop.xlane.xlu0 %1109
  %v1111 = vsel %vm695, %v1031, 0.0
  %1112 = vadd.xlane.f32.xlu0 %v1111
  %v1113 = vpop.xlane.xlu0 %1112
  %v1114 = vsel %vm695, %v1032, 0.0
  %1115 = vadd.xlane.f32.xlu0 %v1114
  %v1116 = vpop.xlane.xlu0 %1115
  %v1117 = vsel %vm695, %v1033, 0.0
  %1118 = vadd.xlane.f32.xlu0 %v1117
  %v1119 = vpop.xlane.xlu0 %1118
  %v1120 = vsel %vm695, %v1034, 0.0
  %1121 = vadd.xlane.f32.xlu0 %v1120
  %v1122 = vpop.xlane.xlu0 %1121
  %v1123 = vsel %vm695, %v1035, 0.0
  %1124 = vadd.xlane.f32.xlu0 %v1123
  %v1125 = vpop.xlane.xlu0 %1124
  %v1126 = vsel %vm695, %v1036, 0.0
  %1127 = vadd.xlane.f32.xlu0 %v1126
  %v1128 = vpop.xlane.xlu0 %1127
  %v1129 = vsel %vm695, %v1037, 0.0
  %1130 = vadd.xlane.f32.xlu0 %v1129
  %v1131 = vpop.xlane.xlu0 %1130
  %v1132 = vsel %vm695, %v1038, 0.0
  %1133 = vadd.xlane.f32.xlu0 %v1132
  %v1134 = vpop.xlane.xlu0 %1133
  %v1135 = vsel %vm695, %v1039, 0.0
  %1136 = vadd.xlane.f32.xlu0 %v1135
  %v1137 = vpop.xlane.xlu0 %1136
  %v1138 = vsel %vm695, %v1040, 0.0
  %1139 = vadd.xlane.f32.xlu0 %v1138
  %v1140 = vpop.xlane.xlu0 %1139
  %v1141 = vsel %vm695, %v1041, 0.0
  %1142 = vadd.xlane.f32.xlu0 %v1141
  %v1143 = vpop.xlane.xlu0 %1142
  %v1144 = vsel %vm695, %v1042, 0.0
  %1145 = vadd.xlane.f32.xlu0 %v1144
  %v1146 = vpop.xlane.xlu0 %1145
  %v1147 = vsel %vm695, %v1043, 0.0
  %1148 = vadd.xlane.f32.xlu0 %v1147
  %v1149 = vpop.xlane.xlu0 %1148
  %v1150 = vsel %vm695, %v1044, 0.0
  %1151 = vadd.xlane.f32.xlu0 %v1150
  %v1152 = vpop.xlane.xlu0 %1151
  %v1153 = vsel %vm695, %v1045, 0.0
  %1154 = vadd.xlane.f32.xlu0 %v1153
  %v1155 = vpop.xlane.xlu0 %1154
  %v1156 = vsel %vm695, %v1046, 0.0
  %1157 = vadd.xlane.f32.xlu0 %v1156
  %v1158 = vpop.xlane.xlu0 %1157
  %v1159 = vsel %vm695, %v1047, 0.0
  %1160 = vadd.xlane.f32.xlu0 %v1159
  %v1161 = vpop.xlane.xlu0 %1160
  %v1162 = vsel %vm695, %v1048, 0.0
  %1163 = vadd.xlane.f32.xlu0 %v1162
  %v1164 = vpop.xlane.xlu0 %1163
  %v1165 = vsel %vm695, %v1049, 0.0
  %1166 = vadd.xlane.f32.xlu0 %v1165
  %v1167 = vpop.xlane.xlu0 %1166
  %v1168 = vsel %vm695, %v1050, 0.0
  %1169 = vadd.xlane.f32.xlu0 %v1168
  %v1170 = vpop.xlane.xlu0 %1169
  %v1171 = vsel %vm695, %v1051, 0.0
  %1172 = vadd.xlane.f32.xlu0 %v1171
  %v1173 = vpop.xlane.xlu0 %1172
  %v1174 = vsel %vm695, %v1052, 0.0
  %1175 = vadd.xlane.f32.xlu0 %v1174
  %v1176 = vpop.xlane.xlu0 %1175
  %v1177 = vsel %vm695, %v1053, 0.0
  %1178 = vadd.xlane.f32.xlu0 %v1177
  %v1179 = vpop.xlane.xlu0 %1178
  %v1180 = vsel %vm695, %v1054, 0.0
  %1181 = vadd.xlane.f32.xlu0 %v1180
  %v1182 = vpop.xlane.xlu0 %1181
  %v1183 = vsel %vm695, %v1055, 0.0
  %1184 = vadd.xlane.f32.xlu0 %v1183
  %v1185 = vpop.xlane.xlu0 %1184
  %v1186 = vsel %vm695, %v1056, 0.0
  %1187 = vadd.xlane.f32.xlu0 %v1186
  %v1188 = vpop.xlane.xlu0 %1187
  %v1189 = vsel %vm695, %v1057, 0.0
  %1190 = vadd.xlane.f32.xlu0 %v1189
  %v1191 = vpop.xlane.xlu0 %1190
  %v1192 = vsel %vm695, %v1058, 0.0
  %1193 = vadd.xlane.f32.xlu0 %v1192
  %v1194 = vpop.xlane.xlu0 %1193
  %v1195 = vsel %vm695, %v1059, 0.0
  %1196 = vadd.xlane.f32.xlu0 %v1195
  %v1197 = vpop.xlane.xlu0 %1196
  %v1198 = vsel %vm695, %v1060, 0.0
  %1199 = vadd.xlane.f32.xlu0 %v1198
  %v1200 = vpop.xlane.xlu0 %1199
  %v1201 = vsel %vm695, %v1061, 0.0
  %1202 = vadd.xlane.f32.xlu0 %v1201
  %v1203 = vpop.xlane.xlu0 %1202
  %v1204 = vsel %vm695, %v1062, 0.0
  %1205 = vadd.xlane.f32.xlu0 %v1204
  %v1206 = vpop.xlane.xlu0 %1205
  %v1207 = vsel %vm695, %v1063, 0.0
  %1208 = vadd.xlane.f32.xlu0 %v1207
  %v1209 = vpop.xlane.xlu0 %1208
  %v1210 = vsel %vm695, %v1064, 0.0
  %1211 = vadd.xlane.f32.xlu0 %v1210
  %v1212 = vpop.xlane.xlu0 %1211
  %v1213 = vsel %vm695, %v1065, 0.0
  %1214 = vadd.xlane.f32.xlu0 %v1213
  %v1215 = vpop.xlane.xlu0 %1214
  %v1216 = vsel %vm695, %v1066, 0.0
  %1217 = vadd.xlane.f32.xlu0 %v1216
  %v1218 = vpop.xlane.xlu0 %1217
  %v1219 = vsel %vm695, %v1067, 0.0
  %1220 = vadd.xlane.f32.xlu0 %v1219
  %v1221 = vpop.xlane.xlu0 %1220
  %v1222 = vsel %vm695, %v1068, 0.0
  %1223 = vadd.xlane.f32.xlu0 %v1222
  %v1224 = vpop.xlane.xlu0 %1223
  %v1225 = vsel %vm695, %v1069, 0.0
  %1226 = vadd.xlane.f32.xlu0 %v1225
  %v1227 = vpop.xlane.xlu0 %1226
  %v1228 = vsel %vm695, %v1070, 0.0
  %1229 = vadd.xlane.f32.xlu0 %v1228
  %v1230 = vpop.xlane.xlu0 %1229
  %v1231 = vsel %vm695, %v1071, 0.0
  %1232 = vadd.xlane.f32.xlu0 %v1231
  %v1233 = vpop.xlane.xlu0 %1232
  %v1234 = vsel %vm695, %v1072, 0.0
  %1235 = vadd.xlane.f32.xlu0 %v1234
  %v1236 = vpop.xlane.xlu0 %1235
  %v1237 = vsel %vm695, %v1073, 0.0
  %1238 = vadd.xlane.f32.xlu0 %v1237
  %v1239 = vpop.xlane.xlu0 %1238
  %v1240 = vsel %vm695, %v1074, 0.0
  %1241 = vadd.xlane.f32.xlu0 %v1240
  %v1242 = vpop.xlane.xlu0 %1241
  %v1243 = vsel %vm695, %v1075, 0.0
  %1244 = vadd.xlane.f32.xlu0 %v1243
  %v1245 = vpop.xlane.xlu0 %1244
  %v1246 = vsel %vm695, %v1076, 0.0
  %1247 = vadd.xlane.f32.xlu0 %v1246
  %v1248 = vpop.xlane.xlu0 %1247
  %v1249 = vsel %vm695, %v1077, 0.0
  %1250 = vadd.xlane.f32.xlu0 %v1249
  %v1251 = vpop.xlane.xlu0 %1250
  %v1252 = vsel %vm695, %v1078, 0.0
  %1253 = vadd.xlane.f32.xlu0 %v1252
  %v1254 = vpop.xlane.xlu0 %1253
  %v1255 = vsel %vm695, %v1079, 0.0
  %1256 = vadd.xlane.f32.xlu0 %v1255
  %v1257 = vpop.xlane.xlu0 %1256
  %v1258 = vsel %vm695, %v1080, 0.0
  %1259 = vadd.xlane.f32.xlu0 %v1258
  %v1260 = vpop.xlane.xlu0 %1259
  %v1261 = vsel %vm695, %v1081, 0.0
  %1262 = vadd.xlane.f32.xlu0 %v1261
  %v1263 = vpop.xlane.xlu0 %1262
  %v1264 = vsel %vm695, %v1082, 0.0
  %1265 = vadd.xlane.f32.xlu0 %v1264
  %v1266 = vpop.xlane.xlu0 %1265
  %v1267 = vsel %vm695, %v1083, 0.0
  %1268 = vadd.xlane.f32.xlu0 %v1267
  %v1269 = vpop.xlane.xlu0 %1268
  %v1270 = vsel %vm695, %v1084, 0.0
  %1271 = vadd.xlane.f32.xlu0 %v1270
  %v1272 = vpop.xlane.xlu0 %1271
  %v1273 = vsel %vm695, %v1085, 0.0
  %1274 = vadd.xlane.f32.xlu0 %v1273
  %v1275 = vpop.xlane.xlu0 %1274
  %v1276 = vsel %vm695, %v1086, 0.0
  %1277 = vadd.xlane.f32.xlu0 %v1276
  %v1278 = vpop.xlane.xlu0 %1277
  %v1279 = vmul.f32 %v1089, %v894
  %v1280 = vmul.f32 %v1092, %v894
  %v1281 = vmul.f32 %v1095, %v894
  %v1282 = vmul.f32 %v1098, %v894
  %v1283 = vmul.f32 %v1101, %v894
  %v1284 = vmul.f32 %v1104, %v894
  %v1285 = vmul.f32 %v1107, %v894
  %v1286 = vmul.f32 %v1110, %v894
  %v1287 = vmul.f32 %v1113, %v894
  %v1288 = vmul.f32 %v1116, %v894
  %v1289 = vmul.f32 %v1119, %v894
  %v1290 = vmul.f32 %v1122, %v894
  %v1291 = vmul.f32 %v1125, %v894
  %v1292 = vmul.f32 %v1128, %v894
  %v1293 = vmul.f32 %v1131, %v894
  %v1294 = vmul.f32 %v1134, %v894
  %v1295 = vmul.f32 %v1137, %v894
  %v1296 = vmul.f32 %v1140, %v894
  %v1297 = vmul.f32 %v1143, %v894
  %v1298 = vmul.f32 %v1146, %v894
  %v1299 = vmul.f32 %v1149, %v894
  %v1300 = vmul.f32 %v1152, %v894
  %v1301 = vmul.f32 %v1155, %v894
  %v1302 = vmul.f32 %v1158, %v894
  %v1303 = vmul.f32 %v1161, %v894
  %v1304 = vmul.f32 %v1164, %v894
  %v1305 = vmul.f32 %v1167, %v894
  %v1306 = vmul.f32 %v1170, %v894
  %v1307 = vmul.f32 %v1173, %v894
  %v1308 = vmul.f32 %v1176, %v894
  %v1309 = vmul.f32 %v1179, %v894
  %v1310 = vmul.f32 %v1182, %v894
  %v1311 = vmul.f32 %v1185, %v894
  %v1312 = vmul.f32 %v1188, %v894
  %v1313 = vmul.f32 %v1191, %v894
  %v1314 = vmul.f32 %v1194, %v894
  %v1315 = vmul.f32 %v1197, %v894
  %v1316 = vmul.f32 %v1200, %v894
  %v1317 = vmul.f32 %v1203, %v894
  %v1318 = vmul.f32 %v1206, %v894
  %v1319 = vmul.f32 %v1209, %v894
  %v1320 = vmul.f32 %v1212, %v894
  %v1321 = vmul.f32 %v1215, %v894
  %v1322 = vmul.f32 %v1218, %v894
  %v1323 = vmul.f32 %v1221, %v894
  %v1324 = vmul.f32 %v1224, %v894
  %v1325 = vmul.f32 %v1227, %v894
  %v1326 = vmul.f32 %v1230, %v894
  %v1327 = vmul.f32 %v1233, %v894
  %v1328 = vmul.f32 %v1236, %v894
  %v1329 = vmul.f32 %v1239, %v894
  %v1330 = vmul.f32 %v1242, %v894
  %v1331 = vmul.f32 %v1245, %v894
  %v1332 = vmul.f32 %v1248, %v894
  %v1333 = vmul.f32 %v1251, %v894
  %v1334 = vmul.f32 %v1254, %v894
  %v1335 = vmul.f32 %v1257, %v894
  %v1336 = vmul.f32 %v1260, %v894
  %v1337 = vmul.f32 %v1263, %v894
  %v1338 = vmul.f32 %v1266, %v894
  %v1339 = vmul.f32 %v1269, %v894
  %v1340 = vmul.f32 %v1272, %v894
  %v1341 = vmul.f32 %v1275, %v894
  %v1342 = vmul.f32 %v1278, %v894
  %v1343 = vadd.f32 %v1279, 1e-05
  %v1344 = vadd.f32 %v1280, 1e-05
  %v1345 = vadd.f32 %v1281, 1e-05
  %v1346 = vadd.f32 %v1282, 1e-05
  %v1347 = vadd.f32 %v1283, 1e-05
  %v1348 = vadd.f32 %v1284, 1e-05
  %v1349 = vadd.f32 %v1285, 1e-05
  %v1350 = vadd.f32 %v1286, 1e-05
  %v1351 = vadd.f32 %v1287, 1e-05
  %v1352 = vadd.f32 %v1288, 1e-05
  %v1353 = vadd.f32 %v1289, 1e-05
  %v1354 = vadd.f32 %v1290, 1e-05
  %v1355 = vadd.f32 %v1291, 1e-05
  %v1356 = vadd.f32 %v1292, 1e-05
  %v1357 = vadd.f32 %v1293, 1e-05
  %v1358 = vadd.f32 %v1294, 1e-05
  %v1359 = vadd.f32 %v1295, 1e-05
  %v1360 = vadd.f32 %v1296, 1e-05
  %v1361 = vadd.f32 %v1297, 1e-05
  %v1362 = vadd.f32 %v1298, 1e-05
  %v1363 = vadd.f32 %v1299, 1e-05
  %v1364 = vadd.f32 %v1300, 1e-05
  %v1365 = vadd.f32 %v1301, 1e-05
  %v1366 = vadd.f32 %v1302, 1e-05
  %v1367 = vadd.f32 %v1303, 1e-05
  %v1368 = vadd.f32 %v1304, 1e-05
  %v1369 = vadd.f32 %v1305, 1e-05
  %v1370 = vadd.f32 %v1306, 1e-05
  %v1371 = vadd.f32 %v1307, 1e-05
  %v1372 = vadd.f32 %v1308, 1e-05
  %v1373 = vadd.f32 %v1309, 1e-05
  %v1374 = vadd.f32 %v1310, 1e-05
  %v1375 = vadd.f32 %v1311, 1e-05
  %v1376 = vadd.f32 %v1312, 1e-05
  %v1377 = vadd.f32 %v1313, 1e-05
  %v1378 = vadd.f32 %v1314, 1e-05
  %v1379 = vadd.f32 %v1315, 1e-05
  %v1380 = vadd.f32 %v1316, 1e-05
  %v1381 = vadd.f32 %v1317, 1e-05
  %v1382 = vadd.f32 %v1318, 1e-05
  %v1383 = vadd.f32 %v1319, 1e-05
  %v1384 = vadd.f32 %v1320, 1e-05
  %v1385 = vadd.f32 %v1321, 1e-05
  %v1386 = vadd.f32 %v1322, 1e-05
  %v1387 = vadd.f32 %v1323, 1e-05
  %v1388 = vadd.f32 %v1324, 1e-05
  %v1389 = vadd.f32 %v1325, 1e-05
  %v1390 = vadd.f32 %v1326, 1e-05
  %v1391 = vadd.f32 %v1327, 1e-05
  %v1392 = vadd.f32 %v1328, 1e-05
  %v1393 = vadd.f32 %v1329, 1e-05
  %v1394 = vadd.f32 %v1330, 1e-05
  %v1395 = vadd.f32 %v1331, 1e-05
  %v1396 = vadd.f32 %v1332, 1e-05
  %v1397 = vadd.f32 %v1333, 1e-05
  %v1398 = vadd.f32 %v1334, 1e-05
  %v1399 = vadd.f32 %v1335, 1e-05
  %v1400 = vadd.f32 %v1336, 1e-05
  %v1401 = vadd.f32 %v1337, 1e-05
  %v1402 = vadd.f32 %v1338, 1e-05
  %v1403 = vadd.f32 %v1339, 1e-05
  %v1404 = vadd.f32 %v1340, 1e-05
  %v1405 = vadd.f32 %v1341, 1e-05
  %v1406 = vadd.f32 %v1342, 1e-05
  %v1407 = vrsqrt.pop %v1343
  %v1408 = vmul.f32 %v1407, %v1343
  %v1409 = vmul.f32 %v1408, %v1407
  %v1410 = vmul.f32 0.5, %v1409
  %v1411 = vsub.f32 1.5, %v1410
  %v1412 = vmul.f32 %v1407, %v1411
  %vm1413 = vweird.f32 %v1343
  %vm1414 = vweird.f32 %v1407
  %vm1415 = vmor %vm1413, %vm1414
  %v1416 = vsel %vm1415, %v1407, %v1412
  %v1417 = vrsqrt.pop %v1344
  %v1418 = vmul.f32 %v1417, %v1344
  %v1419 = vmul.f32 %v1418, %v1417
  %v1420 = vmul.f32 0.5, %v1419
  %v1421 = vsub.f32 1.5, %v1420
  %v1422 = vmul.f32 %v1417, %v1421
  %vm1423 = vweird.f32 %v1344
  %vm1424 = vweird.f32 %v1417
  %vm1425 = vmor %vm1423, %vm1424
  %v1426 = vsel %vm1425, %v1417, %v1422
  %v1427 = vrsqrt.pop %v1345
  %v1428 = vmul.f32 %v1427, %v1345
  %v1429 = vmul.f32 %v1428, %v1427
  %v1430 = vmul.f32 0.5, %v1429
  %v1431 = vsub.f32 1.5, %v1430
  %v1432 = vmul.f32 %v1427, %v1431
  %vm1433 = vweird.f32 %v1345
  %vm1434 = vweird.f32 %v1427
  %vm1435 = vmor %vm1433, %vm1434
  %v1436 = vsel %vm1435, %v1427, %v1432
  %v1437 = vrsqrt.pop %v1346
  %v1438 = vmul.f32 %v1437, %v1346
  %v1439 = vmul.f32 %v1438, %v1437
  %v1440 = vmul.f32 0.5, %v1439
  %v1441 = vsub.f32 1.5, %v1440
  %v1442 = vmul.f32 %v1437, %v1441
  %vm1443 = vweird.f32 %v1346
  %vm1444 = vweird.f32 %v1437
  %vm1445 = vmor %vm1443, %vm1444
  %v1446 = vsel %vm1445, %v1437, %v1442
  %v1447 = vrsqrt.pop %v1347
  %v1448 = vmul.f32 %v1447, %v1347
  %v1449 = vmul.f32 %v1448, %v1447
  %v1450 = vmul.f32 0.5, %v1449
  %v1451 = vsub.f32 1.5, %v1450
  %v1452 = vmul.f32 %v1447, %v1451
  %vm1453 = vweird.f32 %v1347
  %vm1454 = vweird.f32 %v1447
  %vm1455 = vmor %vm1453, %vm1454
  %v1456 = vsel %vm1455, %v1447, %v1452
  %v1457 = vrsqrt.pop %v1348
  %v1458 = vmul.f32 %v1457, %v1348
  %v1459 = vmul.f32 %v1458, %v1457
  %v1460 = vmul.f32 0.5, %v1459
  %v1461 = vsub.f32 1.5, %v1460
  %v1462 = vmul.f32 %v1457, %v1461
  %vm1463 = vweird.f32 %v1348
  %vm1464 = vweird.f32 %v1457
  %vm1465 = vmor %vm1463, %vm1464
  %v1466 = vsel %vm1465, %v1457, %v1462
  %v1467 = vrsqrt.pop %v1349
  %v1468 = vmul.f32 %v1467, %v1349
  %v1469 = vmul.f32 %v1468, %v1467
  %v1470 = vmul.f32 0.5, %v1469
  %v1471 = vsub.f32 1.5, %v1470
  %v1472 = vmul.f32 %v1467, %v1471
  %vm1473 = vweird.f32 %v1349
  %vm1474 = vweird.f32 %v1467
  %vm1475 = vmor %vm1473, %vm1474
  %v1476 = vsel %vm1475, %v1467, %v1472
  %v1477 = vrsqrt.pop %v1350
  %v1478 = vmul.f32 %v1477, %v1350
  %v1479 = vmul.f32 %v1478, %v1477
  %v1480 = vmul.f32 0.5, %v1479
  %v1481 = vsub.f32 1.5, %v1480
  %v1482 = vmul.f32 %v1477, %v1481
  %vm1483 = vweird.f32 %v1350
  %vm1484 = vweird.f32 %v1477
  %vm1485 = vmor %vm1483, %vm1484
  %v1486 = vsel %vm1485, %v1477, %v1482
  %v1487 = vrsqrt.pop %v1351
  %v1488 = vmul.f32 %v1487, %v1351
  %v1489 = vmul.f32 %v1488, %v1487
  %v1490 = vmul.f32 0.5, %v1489
  %v1491 = vsub.f32 1.5, %v1490
  %v1492 = vmul.f32 %v1487, %v1491
  %vm1493 = vweird.f32 %v1351
  %vm1494 = vweird.f32 %v1487
  %vm1495 = vmor %vm1493, %vm1494
  %v1496 = vsel %vm1495, %v1487, %v1492
  %v1497 = vrsqrt.pop %v1352
  %v1498 = vmul.f32 %v1497, %v1352
  %v1499 = vmul.f32 %v1498, %v1497
  %v1500 = vmul.f32 0.5, %v1499
  %v1501 = vsub.f32 1.5, %v1500
  %v1502 = vmul.f32 %v1497, %v1501
  %vm1503 = vweird.f32 %v1352
  %vm1504 = vweird.f32 %v1497
  %vm1505 = vmor %vm1503, %vm1504
  %v1506 = vsel %vm1505, %v1497, %v1502
  %v1507 = vrsqrt.pop %v1353
  %v1508 = vmul.f32 %v1507, %v1353
  %v1509 = vmul.f32 %v1508, %v1507
  %v1510 = vmul.f32 0.5, %v1509
  %v1511 = vsub.f32 1.5, %v1510
  %v1512 = vmul.f32 %v1507, %v1511
  %vm1513 = vweird.f32 %v1353
  %vm1514 = vweird.f32 %v1507
  %vm1515 = vmor %vm1513, %vm1514
  %v1516 = vsel %vm1515, %v1507, %v1512
  %v1517 = vrsqrt.pop %v1354
  %v1518 = vmul.f32 %v1517, %v1354
  %v1519 = vmul.f32 %v1518, %v1517
  %v1520 = vmul.f32 0.5, %v1519
  %v1521 = vsub.f32 1.5, %v1520
  %v1522 = vmul.f32 %v1517, %v1521
  %vm1523 = vweird.f32 %v1354
  %vm1524 = vweird.f32 %v1517
  %vm1525 = vmor %vm1523, %vm1524
  %v1526 = vsel %vm1525, %v1517, %v1522
  %v1527 = vrsqrt.pop %v1355
  %v1528 = vmul.f32 %v1527, %v1355
  %v1529 = vmul.f32 %v1528, %v1527
  %v1530 = vmul.f32 0.5, %v1529
  %v1531 = vsub.f32 1.5, %v1530
  %v1532 = vmul.f32 %v1527, %v1531
  %vm1533 = vweird.f32 %v1355
  %vm1534 = vweird.f32 %v1527
  %vm1535 = vmor %vm1533, %vm1534
  %v1536 = vsel %vm1535, %v1527, %v1532
  %v1537 = vrsqrt.pop %v1356
  %v1538 = vmul.f32 %v1537, %v1356
  %v1539 = vmul.f32 %v1538, %v1537
  %v1540 = vmul.f32 0.5, %v1539
  %v1541 = vsub.f32 1.5, %v1540
  %v1542 = vmul.f32 %v1537, %v1541
  %vm1543 = vweird.f32 %v1356
  %vm1544 = vweird.f32 %v1537
  %vm1545 = vmor %vm1543, %vm1544
  %v1546 = vsel %vm1545, %v1537, %v1542
  %v1547 = vrsqrt.pop %v1357
  %v1548 = vmul.f32 %v1547, %v1357
  %v1549 = vmul.f32 %v1548, %v1547
  %v1550 = vmul.f32 0.5, %v1549
  %v1551 = vsub.f32 1.5, %v1550
  %v1552 = vmul.f32 %v1547, %v1551
  %vm1553 = vweird.f32 %v1357
  %vm1554 = vweird.f32 %v1547
  %vm1555 = vmor %vm1553, %vm1554
  %v1556 = vsel %vm1555, %v1547, %v1552
  %v1557 = vrsqrt.pop %v1358
  %v1558 = vmul.f32 %v1557, %v1358
  %v1559 = vmul.f32 %v1558, %v1557
  %v1560 = vmul.f32 0.5, %v1559
  %v1561 = vsub.f32 1.5, %v1560
  %v1562 = vmul.f32 %v1557, %v1561
  %vm1563 = vweird.f32 %v1358
  %vm1564 = vweird.f32 %v1557
  %vm1565 = vmor %vm1563, %vm1564
  %v1566 = vsel %vm1565, %v1557, %v1562
  %v1567 = vrsqrt.pop %v1359
  %v1568 = vmul.f32 %v1567, %v1359
  %v1569 = vmul.f32 %v1568, %v1567
  %v1570 = vmul.f32 0.5, %v1569
  %v1571 = vsub.f32 1.5, %v1570
  %v1572 = vmul.f32 %v1567, %v1571
  %vm1573 = vweird.f32 %v1359
  %vm1574 = vweird.f32 %v1567
  %vm1575 = vmor %vm1573, %vm1574
  %v1576 = vsel %vm1575, %v1567, %v1572
  %v1577 = vrsqrt.pop %v1360
  %v1578 = vmul.f32 %v1577, %v1360
  %v1579 = vmul.f32 %v1578, %v1577
  %v1580 = vmul.f32 0.5, %v1579
  %v1581 = vsub.f32 1.5, %v1580
  %v1582 = vmul.f32 %v1577, %v1581
  %vm1583 = vweird.f32 %v1360
  %vm1584 = vweird.f32 %v1577
  %vm1585 = vmor %vm1583, %vm1584
  %v1586 = vsel %vm1585, %v1577, %v1582
  %v1587 = vrsqrt.pop %v1361
  %v1588 = vmul.f32 %v1587, %v1361
  %v1589 = vmul.f32 %v1588, %v1587
  %v1590 = vmul.f32 0.5, %v1589
  %v1591 = vsub.f32 1.5, %v1590
  %v1592 = vmul.f32 %v1587, %v1591
  %vm1593 = vweird.f32 %v1361
  %vm1594 = vweird.f32 %v1587
  %vm1595 = vmor %vm1593, %vm1594
  %v1596 = vsel %vm1595, %v1587, %v1592
  %v1597 = vrsqrt.pop %v1362
  %v1598 = vmul.f32 %v1597, %v1362
  %v1599 = vmul.f32 %v1598, %v1597
  %v1600 = vmul.f32 0.5, %v1599
  %v1601 = vsub.f32 1.5, %v1600
  %v1602 = vmul.f32 %v1597, %v1601
  %vm1603 = vweird.f32 %v1362
  %vm1604 = vweird.f32 %v1597
  %vm1605 = vmor %vm1603, %vm1604
  %v1606 = vsel %vm1605, %v1597, %v1602
  %v1607 = vrsqrt.pop %v1363
  %v1608 = vmul.f32 %v1607, %v1363
  %v1609 = vmul.f32 %v1608, %v1607
  %v1610 = vmul.f32 0.5, %v1609
  %v1611 = vsub.f32 1.5, %v1610
  %v1612 = vmul.f32 %v1607, %v1611
  %vm1613 = vweird.f32 %v1363
  %vm1614 = vweird.f32 %v1607
  %vm1615 = vmor %vm1613, %vm1614
  %v1616 = vsel %vm1615, %v1607, %v1612
  %v1617 = vrsqrt.pop %v1364
  %v1618 = vmul.f32 %v1617, %v1364
  %v1619 = vmul.f32 %v1618, %v1617
  %v1620 = vmul.f32 0.5, %v1619
  %v1621 = vsub.f32 1.5, %v1620
  %v1622 = vmul.f32 %v1617, %v1621
  %vm1623 = vweird.f32 %v1364
  %vm1624 = vweird.f32 %v1617
  %vm1625 = vmor %vm1623, %vm1624
  %v1626 = vsel %vm1625, %v1617, %v1622
  %v1627 = vrsqrt.pop %v1365
  %v1628 = vmul.f32 %v1627, %v1365
  %v1629 = vmul.f32 %v1628, %v1627
  %v1630 = vmul.f32 0.5, %v1629
  %v1631 = vsub.f32 1.5, %v1630
  %v1632 = vmul.f32 %v1627, %v1631
  %vm1633 = vweird.f32 %v1365
  %vm1634 = vweird.f32 %v1627
  %vm1635 = vmor %vm1633, %vm1634
  %v1636 = vsel %vm1635, %v1627, %v1632
  %v1637 = vrsqrt.pop %v1366
  %v1638 = vmul.f32 %v1637, %v1366
  %v1639 = vmul.f32 %v1638, %v1637
  %v1640 = vmul.f32 0.5, %v1639
  %v1641 = vsub.f32 1.5, %v1640
  %v1642 = vmul.f32 %v1637, %v1641
  %vm1643 = vweird.f32 %v1366
  %vm1644 = vweird.f32 %v1637
  %vm1645 = vmor %vm1643, %vm1644
  %v1646 = vsel %vm1645, %v1637, %v1642
  %v1647 = vrsqrt.pop %v1367
  %v1648 = vmul.f32 %v1647, %v1367
  %v1649 = vmul.f32 %v1648, %v1647
  %v1650 = vmul.f32 0.5, %v1649
  %v1651 = vsub.f32 1.5, %v1650
  %v1652 = vmul.f32 %v1647, %v1651
  %vm1653 = vweird.f32 %v1367
  %vm1654 = vweird.f32 %v1647
  %vm1655 = vmor %vm1653, %vm1654
  %v1656 = vsel %vm1655, %v1647, %v1652
  %v1657 = vrsqrt.pop %v1368
  %v1658 = vmul.f32 %v1657, %v1368
  %v1659 = vmul.f32 %v1658, %v1657
  %v1660 = vmul.f32 0.5, %v1659
  %v1661 = vsub.f32 1.5, %v1660
  %v1662 = vmul.f32 %v1657, %v1661
  %vm1663 = vweird.f32 %v1368
  %vm1664 = vweird.f32 %v1657
  %vm1665 = vmor %vm1663, %vm1664
  %v1666 = vsel %vm1665, %v1657, %v1662
  %v1667 = vrsqrt.pop %v1369
  %v1668 = vmul.f32 %v1667, %v1369
  %v1669 = vmul.f32 %v1668, %v1667
  %v1670 = vmul.f32 0.5, %v1669
  %v1671 = vsub.f32 1.5, %v1670
  %v1672 = vmul.f32 %v1667, %v1671
  %vm1673 = vweird.f32 %v1369
  %vm1674 = vweird.f32 %v1667
  %vm1675 = vmor %vm1673, %vm1674
  %v1676 = vsel %vm1675, %v1667, %v1672
  %v1677 = vrsqrt.pop %v1370
  %v1678 = vmul.f32 %v1677, %v1370
  %v1679 = vmul.f32 %v1678, %v1677
  %v1680 = vmul.f32 0.5, %v1679
  %v1681 = vsub.f32 1.5, %v1680
  %v1682 = vmul.f32 %v1677, %v1681
  %vm1683 = vweird.f32 %v1370
  %vm1684 = vweird.f32 %v1677
  %vm1685 = vmor %vm1683, %vm1684
  %v1686 = vsel %vm1685, %v1677, %v1682
  %v1687 = vrsqrt.pop %v1371
  %v1688 = vmul.f32 %v1687, %v1371
  %v1689 = vmul.f32 %v1688, %v1687
  %v1690 = vmul.f32 0.5, %v1689
  %v1691 = vsub.f32 1.5, %v1690
  %v1692 = vmul.f32 %v1687, %v1691
  %vm1693 = vweird.f32 %v1371
  %vm1694 = vweird.f32 %v1687
  %vm1695 = vmor %vm1693, %vm1694
  %v1696 = vsel %vm1695, %v1687, %v1692
  %v1697 = vrsqrt.pop %v1372
  %v1698 = vmul.f32 %v1697, %v1372
  %v1699 = vmul.f32 %v1698, %v1697
  %v1700 = vmul.f32 0.5, %v1699
  %v1701 = vsub.f32 1.5, %v1700
  %v1702 = vmul.f32 %v1697, %v1701
  %vm1703 = vweird.f32 %v1372
  %vm1704 = vweird.f32 %v1697
  %vm1705 = vmor %vm1703, %vm1704
  %v1706 = vsel %vm1705, %v1697, %v1702
  %v1707 = vrsqrt.pop %v1373
  %v1708 = vmul.f32 %v1707, %v1373
  %v1709 = vmul.f32 %v1708, %v1707
  %v1710 = vmul.f32 0.5, %v1709
  %v1711 = vsub.f32 1.5, %v1710
  %v1712 = vmul.f32 %v1707, %v1711
  %vm1713 = vweird.f32 %v1373
  %vm1714 = vweird.f32 %v1707
  %vm1715 = vmor %vm1713, %vm1714
  %v1716 = vsel %vm1715, %v1707, %v1712
  %v1717 = vrsqrt.pop %v1374
  %v1718 = vmul.f32 %v1717, %v1374
  %v1719 = vmul.f32 %v1718, %v1717
  %v1720 = vmul.f32 0.5, %v1719
  %v1721 = vsub.f32 1.5, %v1720
  %v1722 = vmul.f32 %v1717, %v1721
  %vm1723 = vweird.f32 %v1374
  %vm1724 = vweird.f32 %v1717
  %vm1725 = vmor %vm1723, %vm1724
  %v1726 = vsel %vm1725, %v1717, %v1722
  %v1727 = vrsqrt.pop %v1375
  %v1728 = vmul.f32 %v1727, %v1375
  %v1729 = vmul.f32 %v1728, %v1727
  %v1730 = vmul.f32 0.5, %v1729
  %v1731 = vsub.f32 1.5, %v1730
  %v1732 = vmul.f32 %v1727, %v1731
  %vm1733 = vweird.f32 %v1375
  %vm1734 = vweird.f32 %v1727
  %vm1735 = vmor %vm1733, %vm1734
  %v1736 = vsel %vm1735, %v1727, %v1732
  %v1737 = vrsqrt.pop %v1376
  %v1738 = vmul.f32 %v1737, %v1376
  %v1739 = vmul.f32 %v1738, %v1737
  %v1740 = vmul.f32 0.5, %v1739
  %v1741 = vsub.f32 1.5, %v1740
  %v1742 = vmul.f32 %v1737, %v1741
  %vm1743 = vweird.f32 %v1376
  %vm1744 = vweird.f32 %v1737
  %vm1745 = vmor %vm1743, %vm1744
  %v1746 = vsel %vm1745, %v1737, %v1742
  %v1747 = vrsqrt.pop %v1377
  %v1748 = vmul.f32 %v1747, %v1377
  %v1749 = vmul.f32 %v1748, %v1747
  %v1750 = vmul.f32 0.5, %v1749
  %v1751 = vsub.f32 1.5, %v1750
  %v1752 = vmul.f32 %v1747, %v1751
  %vm1753 = vweird.f32 %v1377
  %vm1754 = vweird.f32 %v1747
  %vm1755 = vmor %vm1753, %vm1754
  %v1756 = vsel %vm1755, %v1747, %v1752
  %v1757 = vrsqrt.pop %v1378
  %v1758 = vmul.f32 %v1757, %v1378
  %v1759 = vmul.f32 %v1758, %v1757
  %v1760 = vmul.f32 0.5, %v1759
  %v1761 = vsub.f32 1.5, %v1760
  %v1762 = vmul.f32 %v1757, %v1761
  %vm1763 = vweird.f32 %v1378
  %vm1764 = vweird.f32 %v1757
  %vm1765 = vmor %vm1763, %vm1764
  %v1766 = vsel %vm1765, %v1757, %v1762
  %v1767 = vrsqrt.pop %v1379
  %v1768 = vmul.f32 %v1767, %v1379
  %v1769 = vmul.f32 %v1768, %v1767
  %v1770 = vmul.f32 0.5, %v1769
  %v1771 = vsub.f32 1.5, %v1770
  %v1772 = vmul.f32 %v1767, %v1771
  %vm1773 = vweird.f32 %v1379
  %vm1774 = vweird.f32 %v1767
  %vm1775 = vmor %vm1773, %vm1774
  %v1776 = vsel %vm1775, %v1767, %v1772
  %v1777 = vrsqrt.pop %v1380
  %v1778 = vmul.f32 %v1777, %v1380
  %v1779 = vmul.f32 %v1778, %v1777
  %v1780 = vmul.f32 0.5, %v1779
  %v1781 = vsub.f32 1.5, %v1780
  %v1782 = vmul.f32 %v1777, %v1781
  %vm1783 = vweird.f32 %v1380
  %vm1784 = vweird.f32 %v1777
  %vm1785 = vmor %vm1783, %vm1784
  %v1786 = vsel %vm1785, %v1777, %v1782
  %v1787 = vrsqrt.pop %v1381
  %v1788 = vmul.f32 %v1787, %v1381
  %v1789 = vmul.f32 %v1788, %v1787
  %v1790 = vmul.f32 0.5, %v1789
  %v1791 = vsub.f32 1.5, %v1790
  %v1792 = vmul.f32 %v1787, %v1791
  %vm1793 = vweird.f32 %v1381
  %vm1794 = vweird.f32 %v1787
  %vm1795 = vmor %vm1793, %vm1794
  %v1796 = vsel %vm1795, %v1787, %v1792
  %v1797 = vrsqrt.pop %v1382
  %v1798 = vmul.f32 %v1797, %v1382
  %v1799 = vmul.f32 %v1798, %v1797
  %v1800 = vmul.f32 0.5, %v1799
  %v1801 = vsub.f32 1.5, %v1800
  %v1802 = vmul.f32 %v1797, %v1801
  %vm1803 = vweird.f32 %v1382
  %vm1804 = vweird.f32 %v1797
  %vm1805 = vmor %vm1803, %vm1804
  %v1806 = vsel %vm1805, %v1797, %v1802
  %v1807 = vrsqrt.pop %v1383
  %v1808 = vmul.f32 %v1807, %v1383
  %v1809 = vmul.f32 %v1808, %v1807
  %v1810 = vmul.f32 0.5, %v1809
  %v1811 = vsub.f32 1.5, %v1810
  %v1812 = vmul.f32 %v1807, %v1811
  %vm1813 = vweird.f32 %v1383
  %vm1814 = vweird.f32 %v1807
  %vm1815 = vmor %vm1813, %vm1814
  %v1816 = vsel %vm1815, %v1807, %v1812
  %v1817 = vrsqrt.pop %v1384
  %v1818 = vmul.f32 %v1817, %v1384
  %v1819 = vmul.f32 %v1818, %v1817
  %v1820 = vmul.f32 0.5, %v1819
  %v1821 = vsub.f32 1.5, %v1820
  %v1822 = vmul.f32 %v1817, %v1821
  %vm1823 = vweird.f32 %v1384
  %vm1824 = vweird.f32 %v1817
  %vm1825 = vmor %vm1823, %vm1824
  %v1826 = vsel %vm1825, %v1817, %v1822
  %v1827 = vrsqrt.pop %v1385
  %v1828 = vmul.f32 %v1827, %v1385
  %v1829 = vmul.f32 %v1828, %v1827
  %v1830 = vmul.f32 0.5, %v1829
  %v1831 = vsub.f32 1.5, %v1830
  %v1832 = vmul.f32 %v1827, %v1831
  %vm1833 = vweird.f32 %v1385
  %vm1834 = vweird.f32 %v1827
  %vm1835 = vmor %vm1833, %vm1834
  %v1836 = vsel %vm1835, %v1827, %v1832
  %v1837 = vrsqrt.pop %v1386
  %v1838 = vmul.f32 %v1837, %v1386
  %v1839 = vmul.f32 %v1838, %v1837
  %v1840 = vmul.f32 0.5, %v1839
  %v1841 = vsub.f32 1.5, %v1840
  %v1842 = vmul.f32 %v1837, %v1841
  %vm1843 = vweird.f32 %v1386
  %vm1844 = vweird.f32 %v1837
  %vm1845 = vmor %vm1843, %vm1844
  %v1846 = vsel %vm1845, %v1837, %v1842
  %v1847 = vrsqrt.pop %v1387
  %v1848 = vmul.f32 %v1847, %v1387
  %v1849 = vmul.f32 %v1848, %v1847
  %v1850 = vmul.f32 0.5, %v1849
  %v1851 = vsub.f32 1.5, %v1850
  %v1852 = vmul.f32 %v1847, %v1851
  %vm1853 = vweird.f32 %v1387
  %vm1854 = vweird.f32 %v1847
  %vm1855 = vmor %vm1853, %vm1854
  %v1856 = vsel %vm1855, %v1847, %v1852
  %v1857 = vrsqrt.pop %v1388
  %v1858 = vmul.f32 %v1857, %v1388
  %v1859 = vmul.f32 %v1858, %v1857
  %v1860 = vmul.f32 0.5, %v1859
  %v1861 = vsub.f32 1.5, %v1860
  %v1862 = vmul.f32 %v1857, %v1861
  %vm1863 = vweird.f32 %v1388
  %vm1864 = vweird.f32 %v1857
  %vm1865 = vmor %vm1863, %vm1864
  %v1866 = vsel %vm1865, %v1857, %v1862
  %v1867 = vrsqrt.pop %v1389
  %v1868 = vmul.f32 %v1867, %v1389
  %v1869 = vmul.f32 %v1868, %v1867
  %v1870 = vmul.f32 0.5, %v1869
  %v1871 = vsub.f32 1.5, %v1870
  %v1872 = vmul.f32 %v1867, %v1871
  %vm1873 = vweird.f32 %v1389
  %vm1874 = vweird.f32 %v1867
  %vm1875 = vmor %vm1873, %vm1874
  %v1876 = vsel %vm1875, %v1867, %v1872
  %v1877 = vrsqrt.pop %v1390
  %v1878 = vmul.f32 %v1877, %v1390
  %v1879 = vmul.f32 %v1878, %v1877
  %v1880 = vmul.f32 0.5, %v1879
  %v1881 = vsub.f32 1.5, %v1880
  %v1882 = vmul.f32 %v1877, %v1881
  %vm1883 = vweird.f32 %v1390
  %vm1884 = vweird.f32 %v1877
  %vm1885 = vmor %vm1883, %vm1884
  %v1886 = vsel %vm1885, %v1877, %v1882
  %v1887 = vrsqrt.pop %v1391
  %v1888 = vmul.f32 %v1887, %v1391
  %v1889 = vmul.f32 %v1888, %v1887
  %v1890 = vmul.f32 0.5, %v1889
  %v1891 = vsub.f32 1.5, %v1890
  %v1892 = vmul.f32 %v1887, %v1891
  %vm1893 = vweird.f32 %v1391
  %vm1894 = vweird.f32 %v1887
  %vm1895 = vmor %vm1893, %vm1894
  %v1896 = vsel %vm1895, %v1887, %v1892
  %v1897 = vrsqrt.pop %v1392
  %v1898 = vmul.f32 %v1897, %v1392
  %v1899 = vmul.f32 %v1898, %v1897
  %v1900 = vmul.f32 0.5, %v1899
  %v1901 = vsub.f32 1.5, %v1900
  %v1902 = vmul.f32 %v1897, %v1901
  %vm1903 = vweird.f32 %v1392
  %vm1904 = vweird.f32 %v1897
  %vm1905 = vmor %vm1903, %vm1904
  %v1906 = vsel %vm1905, %v1897, %v1902
  %v1907 = vrsqrt.pop %v1393
  %v1908 = vmul.f32 %v1907, %v1393
  %v1909 = vmul.f32 %v1908, %v1907
  %v1910 = vmul.f32 0.5, %v1909
  %v1911 = vsub.f32 1.5, %v1910
  %v1912 = vmul.f32 %v1907, %v1911
  %vm1913 = vweird.f32 %v1393
  %vm1914 = vweird.f32 %v1907
  %vm1915 = vmor %vm1913, %vm1914
  %v1916 = vsel %vm1915, %v1907, %v1912
  %v1917 = vrsqrt.pop %v1394
  %v1918 = vmul.f32 %v1917, %v1394
  %v1919 = vmul.f32 %v1918, %v1917
  %v1920 = vmul.f32 0.5, %v1919
  %v1921 = vsub.f32 1.5, %v1920
  %v1922 = vmul.f32 %v1917, %v1921
  %vm1923 = vweird.f32 %v1394
  %vm1924 = vweird.f32 %v1917
  %vm1925 = vmor %vm1923, %vm1924
  %v1926 = vsel %vm1925, %v1917, %v1922
  %v1927 = vrsqrt.pop %v1395
  %v1928 = vmul.f32 %v1927, %v1395
  %v1929 = vmul.f32 %v1928, %v1927
  %v1930 = vmul.f32 0.5, %v1929
  %v1931 = vsub.f32 1.5, %v1930
  %v1932 = vmul.f32 %v1927, %v1931
  %vm1933 = vweird.f32 %v1395
  %vm1934 = vweird.f32 %v1927
  %vm1935 = vmor %vm1933, %vm1934
  %v1936 = vsel %vm1935, %v1927, %v1932
  %v1937 = vrsqrt.pop %v1396
  %v1938 = vmul.f32 %v1937, %v1396
  %v1939 = vmul.f32 %v1938, %v1937
  %v1940 = vmul.f32 0.5, %v1939
  %v1941 = vsub.f32 1.5, %v1940
  %v1942 = vmul.f32 %v1937, %v1941
  %vm1943 = vweird.f32 %v1396
  %vm1944 = vweird.f32 %v1937
  %vm1945 = vmor %vm1943, %vm1944
  %v1946 = vsel %vm1945, %v1937, %v1942
  %v1947 = vrsqrt.pop %v1397
  %v1948 = vmul.f32 %v1947, %v1397
  %v1949 = vmul.f32 %v1948, %v1947
  %v1950 = vmul.f32 0.5, %v1949
  %v1951 = vsub.f32 1.5, %v1950
  %v1952 = vmul.f32 %v1947, %v1951
  %vm1953 = vweird.f32 %v1397
  %vm1954 = vweird.f32 %v1947
  %vm1955 = vmor %vm1953, %vm1954
  %v1956 = vsel %vm1955, %v1947, %v1952
  %v1957 = vrsqrt.pop %v1398
  %v1958 = vmul.f32 %v1957, %v1398
  %v1959 = vmul.f32 %v1958, %v1957
  %v1960 = vmul.f32 0.5, %v1959
  %v1961 = vsub.f32 1.5, %v1960
  %v1962 = vmul.f32 %v1957, %v1961
  %vm1963 = vweird.f32 %v1398
  %vm1964 = vweird.f32 %v1957
  %vm1965 = vmor %vm1963, %vm1964
  %v1966 = vsel %vm1965, %v1957, %v1962
  %v1967 = vrsqrt.pop %v1399
  %v1968 = vmul.f32 %v1967, %v1399
  %v1969 = vmul.f32 %v1968, %v1967
  %v1970 = vmul.f32 0.5, %v1969
  %v1971 = vsub.f32 1.5, %v1970
  %v1972 = vmul.f32 %v1967, %v1971
  %vm1973 = vweird.f32 %v1399
  %vm1974 = vweird.f32 %v1967
  %vm1975 = vmor %vm1973, %vm1974
  %v1976 = vsel %vm1975, %v1967, %v1972
  %v1977 = vrsqrt.pop %v1400
  %v1978 = vmul.f32 %v1977, %v1400
  %v1979 = vmul.f32 %v1978, %v1977
  %v1980 = vmul.f32 0.5, %v1979
  %v1981 = vsub.f32 1.5, %v1980
  %v1982 = vmul.f32 %v1977, %v1981
  %vm1983 = vweird.f32 %v1400
  %vm1984 = vweird.f32 %v1977
  %vm1985 = vmor %vm1983, %vm1984
  %v1986 = vsel %vm1985, %v1977, %v1982
  %v1987 = vrsqrt.pop %v1401
  %v1988 = vmul.f32 %v1987, %v1401
  %v1989 = vmul.f32 %v1988, %v1987
  %v1990 = vmul.f32 0.5, %v1989
  %v1991 = vsub.f32 1.5, %v1990
  %v1992 = vmul.f32 %v1987, %v1991
  %vm1993 = vweird.f32 %v1401
  %vm1994 = vweird.f32 %v1987
  %vm1995 = vmor %vm1993, %vm1994
  %v1996 = vsel %vm1995, %v1987, %v1992
  %v1997 = vrsqrt.pop %v1402
  %v1998 = vmul.f32 %v1997, %v1402
  %v1999 = vmul.f32 %v1998, %v1997
  %v2000 = vmul.f32 0.5, %v1999
  %v2001 = vsub.f32 1.5, %v2000
  %v2002 = vmul.f32 %v1997, %v2001
  %vm2003 = vweird.f32 %v1402
  %vm2004 = vweird.f32 %v1997
  %vm2005 = vmor %vm2003, %vm2004
  %v2006 = vsel %vm2005, %v1997, %v2002
  %v2007 = vrsqrt.pop %v1403
  %v2008 = vmul.f32 %v2007, %v1403
  %v2009 = vmul.f32 %v2008, %v2007
  %v2010 = vmul.f32 0.5, %v2009
  %v2011 = vsub.f32 1.5, %v2010
  %v2012 = vmul.f32 %v2007, %v2011
  %vm2013 = vweird.f32 %v1403
  %vm2014 = vweird.f32 %v2007
  %vm2015 = vmor %vm2013, %vm2014
  %v2016 = vsel %vm2015, %v2007, %v2012
  %v2017 = vrsqrt.pop %v1404
  %v2018 = vmul.f32 %v2017, %v1404
  %v2019 = vmul.f32 %v2018, %v2017
  %v2020 = vmul.f32 0.5, %v2019
  %v2021 = vsub.f32 1.5, %v2020
  %v2022 = vmul.f32 %v2017, %v2021
  %vm2023 = vweird.f32 %v1404
  %vm2024 = vweird.f32 %v2017
  %vm2025 = vmor %vm2023, %vm2024
  %v2026 = vsel %vm2025, %v2017, %v2022
  %v2027 = vrsqrt.pop %v1405
  %v2028 = vmul.f32 %v2027, %v1405
  %v2029 = vmul.f32 %v2028, %v2027
  %v2030 = vmul.f32 0.5, %v2029
  %v2031 = vsub.f32 1.5, %v2030
  %v2032 = vmul.f32 %v2027, %v2031
  %vm2033 = vweird.f32 %v1405
  %vm2034 = vweird.f32 %v2027
  %vm2035 = vmor %vm2033, %vm2034
  %v2036 = vsel %vm2035, %v2027, %v2032
  %v2037 = vrsqrt.pop %v1406
  %v2038 = vmul.f32 %v2037, %v1406
  %v2039 = vmul.f32 %v2038, %v2037
  %v2040 = vmul.f32 0.5, %v2039
  %v2041 = vsub.f32 1.5, %v2040
  %v2042 = vmul.f32 %v2037, %v2041
  %vm2043 = vweird.f32 %v1406
  %vm2044 = vweird.f32 %v2037
  %vm2045 = vmor %vm2043, %vm2044
  %v2046 = vsel %vm2045, %v2037, %v2042
  %v2047 = vmul.f32 %v959, %v1416
  %v2048 = vmul.f32 %v960, %v1426
  %v2049 = vmul.f32 %v961, %v1436
  %v2050 = vmul.f32 %v962, %v1446
  %v2051 = vmul.f32 %v963, %v1456
  %v2052 = vmul.f32 %v964, %v1466
  %v2053 = vmul.f32 %v965, %v1476
  %v2054 = vmul.f32 %v966, %v1486
  %v2055 = vmul.f32 %v967, %v1496
  %v2056 = vmul.f32 %v968, %v1506
  %v2057 = vmul.f32 %v969, %v1516
  %v2058 = vmul.f32 %v970, %v1526
  %v2059 = vmul.f32 %v971, %v1536
  %v2060 = vmul.f32 %v972, %v1546
  %v2061 = vmul.f32 %v973, %v1556
  %v2062 = vmul.f32 %v974, %v1566
  %v2063 = vmul.f32 %v975, %v1576
  %v2064 = vmul.f32 %v976, %v1586
  %v2065 = vmul.f32 %v977, %v1596
  %v2066 = vmul.f32 %v978, %v1606
  %v2067 = vmul.f32 %v979, %v1616
  %v2068 = vmul.f32 %v980, %v1626
  %v2069 = vmul.f32 %v981, %v1636
  %v2070 = vmul.f32 %v982, %v1646
  %v2071 = vmul.f32 %v983, %v1656
  %v2072 = vmul.f32 %v984, %v1666
  %v2073 = vmul.f32 %v985, %v1676
  %v2074 = vmul.f32 %v986, %v1686
  %v2075 = vmul.f32 %v987, %v1696
  %v2076 = vmul.f32 %v988, %v1706
  %v2077 = vmul.f32 %v989, %v1716
  %v2078 = vmul.f32 %v990, %v1726
  %v2079 = vmul.f32 %v991, %v1736
  %v2080 = vmul.f32 %v992, %v1746
  %v2081 = vmul.f32 %v993, %v1756
  %v2082 = vmul.f32 %v994, %v1766
  %v2083 = vmul.f32 %v995, %v1776
  %v2084 = vmul.f32 %v996, %v1786
  %v2085 = vmul.f32 %v997, %v1796
  %v2086 = vmul.f32 %v998, %v1806
  %v2087 = vmul.f32 %v999, %v1816
  %v2088 = vmul.f32 %v1000, %v1826
  %v2089 = vmul.f32 %v1001, %v1836
  %v2090 = vmul.f32 %v1002, %v1846
  %v2091 = vmul.f32 %v1003, %v1856
  %v2092 = vmul.f32 %v1004, %v1866
  %v2093 = vmul.f32 %v1005, %v1876
  %v2094 = vmul.f32 %v1006, %v1886
  %v2095 = vmul.f32 %v1007, %v1896
  %v2096 = vmul.f32 %v1008, %v1906
  %v2097 = vmul.f32 %v1009, %v1916
  %v2098 = vmul.f32 %v1010, %v1926
  %v2099 = vmul.f32 %v1011, %v1936
  %v2100 = vmul.f32 %v1012, %v1946
  %v2101 = vmul.f32 %v1013, %v1956
  %v2102 = vmul.f32 %v1014, %v1966
  %v2103 = vmul.f32 %v1015, %v1976
  %v2104 = vmul.f32 %v1016, %v1986
  %v2105 = vmul.f32 %v1017, %v1996
  %v2106 = vmul.f32 %v1018, %v2006
  %v2107 = vmul.f32 %v1019, %v2016
  %v2108 = vmul.f32 %v1020, %v2026
  %v2109 = vmul.f32 %v1021, %v2036
  %v2110 = vmul.f32 %v1022, %v2046
  %v2111 = vld [vmem:[%s5] sm:$0x1]
  %v2113 = vperm.slane %v2111, 0
  %v2115 = vmul.f32 %v2047, %v2113
  %v2116 = vmul.f32 %v2048, %v2113
  %v2117 = vmul.f32 %v2049, %v2113
  %v2118 = vmul.f32 %v2050, %v2113
  %v2119 = vmul.f32 %v2051, %v2113
  %v2120 = vmul.f32 %v2052, %v2113
  %v2121 = vmul.f32 %v2053, %v2113
  %v2122 = vmul.f32 %v2054, %v2113
  %v2123 = vmul.f32 %v2055, %v2113
  %v2124 = vmul.f32 %v2056, %v2113
  %v2125 = vmul.f32 %v2057, %v2113
  %v2126 = vmul.f32 %v2058, %v2113
  %v2127 = vmul.f32 %v2059, %v2113
  %v2128 = vmul.f32 %v2060, %v2113
  %v2129 = vmul.f32 %v2061, %v2113
  %v2130 = vmul.f32 %v2062, %v2113
  %v2131 = vmul.f32 %v2063, %v2113
  %v2132 = vmul.f32 %v2064, %v2113
  %v2133 = vmul.f32 %v2065, %v2113
  %v2134 = vmul.f32 %v2066, %v2113
  %v2135 = vmul.f32 %v2067, %v2113
  %v2136 = vmul.f32 %v2068, %v2113
  %v2137 = vmul.f32 %v2069, %v2113
  %v2138 = vmul.f32 %v2070, %v2113
  %v2139 = vmul.f32 %v2071, %v2113
  %v2140 = vmul.f32 %v2072, %v2113
  %v2141 = vmul.f32 %v2073, %v2113
  %v2142 = vmul.f32 %v2074, %v2113
  %v2143 = vmul.f32 %v2075, %v2113
  %v2144 = vmul.f32 %v2076, %v2113
  %v2145 = vmul.f32 %v2077, %v2113
  %v2146 = vmul.f32 %v2078, %v2113
  %v2147 = vmul.f32 %v2079, %v2113
  %v2148 = vmul.f32 %v2080, %v2113
  %v2149 = vmul.f32 %v2081, %v2113
  %v2150 = vmul.f32 %v2082, %v2113
  %v2151 = vmul.f32 %v2083, %v2113
  %v2152 = vmul.f32 %v2084, %v2113
  %v2153 = vmul.f32 %v2085, %v2113
  %v2154 = vmul.f32 %v2086, %v2113
  %v2155 = vmul.f32 %v2087, %v2113
  %v2156 = vmul.f32 %v2088, %v2113
  %v2157 = vmul.f32 %v2089, %v2113
  %v2158 = vmul.f32 %v2090, %v2113
  %v2159 = vmul.f32 %v2091, %v2113
  %v2160 = vmul.f32 %v2092, %v2113
  %v2161 = vmul.f32 %v2093, %v2113
  %v2162 = vmul.f32 %v2094, %v2113
  %v2163 = vmul.f32 %v2095, %v2113
  %v2164 = vmul.f32 %v2096, %v2113
  %v2165 = vmul.f32 %v2097, %v2113
  %v2166 = vmul.f32 %v2098, %v2113
  %v2167 = vmul.f32 %v2099, %v2113
  %v2168 = vmul.f32 %v2100, %v2113
  %v2169 = vmul.f32 %v2101, %v2113
  %v2170 = vmul.f32 %v2102, %v2113
  %v2171 = vmul.f32 %v2103, %v2113
  %v2172 = vmul.f32 %v2104, %v2113
  %v2173 = vmul.f32 %v2105, %v2113
  %v2174 = vmul.f32 %v2106, %v2113
  %v2175 = vmul.f32 %v2107, %v2113
  %v2176 = vmul.f32 %v2108, %v2113
  %v2177 = vmul.f32 %v2109, %v2113
  %v2178 = vmul.f32 %v2110, %v2113
  %v2179 = vld [vmem:[%s6] sm:$0x1]
  %v2181 = vperm.slane %v2179, 0
  %v2183 = vadd.f32 %v2115, %v2181
  %v2184 = vadd.f32 %v2116, %v2181
  %v2185 = vadd.f32 %v2117, %v2181
  %v2186 = vadd.f32 %v2118, %v2181
  %v2187 = vadd.f32 %v2119, %v2181
  %v2188 = vadd.f32 %v2120, %v2181
  %v2189 = vadd.f32 %v2121, %v2181
  %v2190 = vadd.f32 %v2122, %v2181
  %v2191 = vadd.f32 %v2123, %v2181
  %v2192 = vadd.f32 %v2124, %v2181
  %v2193 = vadd.f32 %v2125, %v2181
  %v2194 = vadd.f32 %v2126, %v2181
  %v2195 = vadd.f32 %v2127, %v2181
  %v2196 = vadd.f32 %v2128, %v2181
  %v2197 = vadd.f32 %v2129, %v2181
  %v2198 = vadd.f32 %v2130, %v2181
  %v2199 = vadd.f32 %v2131, %v2181
  %v2200 = vadd.f32 %v2132, %v2181
  %v2201 = vadd.f32 %v2133, %v2181
  %v2202 = vadd.f32 %v2134, %v2181
  %v2203 = vadd.f32 %v2135, %v2181
  %v2204 = vadd.f32 %v2136, %v2181
  %v2205 = vadd.f32 %v2137, %v2181
  %v2206 = vadd.f32 %v2138, %v2181
  %v2207 = vadd.f32 %v2139, %v2181
  %v2208 = vadd.f32 %v2140, %v2181
  %v2209 = vadd.f32 %v2141, %v2181
  %v2210 = vadd.f32 %v2142, %v2181
  %v2211 = vadd.f32 %v2143, %v2181
  %v2212 = vadd.f32 %v2144, %v2181
  %v2213 = vadd.f32 %v2145, %v2181
  %v2214 = vadd.f32 %v2146, %v2181
  %v2215 = vadd.f32 %v2147, %v2181
  %v2216 = vadd.f32 %v2148, %v2181
  %v2217 = vadd.f32 %v2149, %v2181
  %v2218 = vadd.f32 %v2150, %v2181
  %v2219 = vadd.f32 %v2151, %v2181
  %v2220 = vadd.f32 %v2152, %v2181
  %v2221 = vadd.f32 %v2153, %v2181
  %v2222 = vadd.f32 %v2154, %v2181
  %v2223 = vadd.f32 %v2155, %v2181
  %v2224 = vadd.f32 %v2156, %v2181
  %v2225 = vadd.f32 %v2157, %v2181
  %v2226 = vadd.f32 %v2158, %v2181
  %v2227 = vadd.f32 %v2159, %v2181
  %v2228 = vadd.f32 %v2160, %v2181
  %v2229 = vadd.f32 %v2161, %v2181
  %v2230 = vadd.f32 %v2162, %v2181
  %v2231 = vadd.f32 %v2163, %v2181
  %v2232 = vadd.f32 %v2164, %v2181
  %v2233 = vadd.f32 %v2165, %v2181
  %v2234 = vadd.f32 %v2166, %v2181
  %v2235 = vadd.f32 %v2167, %v2181
  %v2236 = vadd.f32 %v2168, %v2181
  %v2237 = vadd.f32 %v2169, %v2181
  %v2238 = vadd.f32 %v2170, %v2181
  %v2239 = vadd.f32 %v2171, %v2181
  %v2240 = vadd.f32 %v2172, %v2181
  %v2241 = vadd.f32 %v2173, %v2181
  %v2242 = vadd.f32 %v2174, %v2181
  %v2243 = vadd.f32 %v2175, %v2181
  %v2244 = vadd.f32 %v2176, %v2181
  %v2245 = vadd.f32 %v2177, %v2181
  %v2246 = vadd.f32 %v2178, %v2181
  %v2247 = vld [vmem:[%s7] sm:$0xff]
  %v2248 = vld [vmem:[%s7 + $0x8] sm:$0xff]
  %v2249 = vld [vmem:[%s8] sm:$0x1]
  %v2251 = vperm.slane %v2249, 0
  %v2254 = vsel %vm695, %v2183, 0
  %v2257 = vsel %vm695, %v2184, 0
  %v2260 = vsel %vm695, %v2185, 0
  %v2263 = vsel %vm695, %v2186, 0
  %v2266 = vsel %vm695, %v2187, 0
  %v2269 = vsel %vm695, %v2188, 0
  %v2272 = vsel %vm695, %v2189, 0
  %v2275 = vsel %vm695, %v2190, 0
  %v2278 = vsel %vm695, %v2191, 0
  %v2281 = vsel %vm695, %v2192, 0
  %v2284 = vsel %vm695, %v2193, 0
  %v2287 = vsel %vm695, %v2194, 0
  %v2290 = vsel %vm695, %v2195, 0
  %v2293 = vsel %vm695, %v2196, 0
  %v2296 = vsel %vm695, %v2197, 0
  %v2299 = vsel %vm695, %v2198, 0
  %v2302 = vsel %vm695, %v2199, 0
  %v2305 = vsel %vm695, %v2200, 0
  %v2308 = vsel %vm695, %v2201, 0
  %v2311 = vsel %vm695, %v2202, 0
  %v2314 = vsel %vm695, %v2203, 0
  %v2317 = vsel %vm695, %v2204, 0
  %v2320 = vsel %vm695, %v2205, 0
  %v2323 = vsel %vm695, %v2206, 0
  %v2326 = vsel %vm695, %v2207, 0
  %v2329 = vsel %vm695, %v2208, 0
  %v2332 = vsel %vm695, %v2209, 0
  %v2335 = vsel %vm695, %v2210, 0
  %v2338 = vsel %vm695, %v2211, 0
  %v2341 = vsel %vm695, %v2212, 0
  %v2344 = vsel %vm695, %v2213, 0
  %v2347 = vsel %vm695, %v2214, 0
  %v2350 = vsel %vm695, %v2215, 0
  %v2353 = vsel %vm695, %v2216, 0
  %v2356 = vsel %vm695, %v2217, 0
  %v2359 = vsel %vm695, %v2218, 0
  %v2362 = vsel %vm695, %v2219, 0
  %v2365 = vsel %vm695, %v2220, 0
  %v2368 = vsel %vm695, %v2221, 0
  %v2371 = vsel %vm695, %v2222, 0
  %v2374 = vsel %vm695, %v2223, 0
  %v2377 = vsel %vm695, %v2224, 0
  %v2380 = vsel %vm695, %v2225, 0
  %v2383 = vsel %vm695, %v2226, 0
  %v2386 = vsel %vm695, %v2227, 0
  %v2389 = vsel %vm695, %v2228, 0
  %v2392 = vsel %vm695, %v2229, 0
  %v2395 = vsel %vm695, %v2230, 0
  %v2398 = vsel %vm695, %v2231, 0
  %v2401 = vsel %vm695, %v2232, 0
  %v2404 = vsel %vm695, %v2233, 0
  %v2407 = vsel %vm695, %v2234, 0
  %v2410 = vsel %vm695, %v2235, 0
  %v2413 = vsel %vm695, %v2236, 0
  %v2416 = vsel %vm695, %v2237, 0
  %v2419 = vsel %vm695, %v2238, 0
  %v2422 = vsel %vm695, %v2239, 0
  %v2425 = vsel %vm695, %v2240, 0
  %v2428 = vsel %vm695, %v2241, 0
  %v2431 = vsel %vm695, %v2242, 0
  %v2434 = vsel %vm695, %v2243, 0
  %v2437 = vsel %vm695, %v2244, 0
  %v2440 = vsel %vm695, %v2245, 0
  %v2443 = vsel %vm695, %v2246, 0
  %2445 = vmatpush.msra.mxu0 0.0
  %2446 = vmatpush.msra.mxu0 0.0
  %2447 = vmatpush.msra.mxu0 0.0
  %2448 = vmatpush.msra.mxu0 0.0
  %2449 = vmatpush.msra.mxu0 0.0
  %2450 = vmatpush.msra.mxu0 0.0
  %2451 = vmatpush.msra.mxu0 0.0
  %2452 = vmatpush.msra.mxu0 0.0
  %2453 = vmatpush.msra.mxu0 0.0
  %2454 = vmatpush.msra.mxu0 0.0
  %2455 = vmatpush.msra.mxu0 0.0
  %2456 = vmatpush.msra.mxu0 0.0
  %2457 = vmatpush.msra.mxu0 0.0
  %2458 = vmatpush.msra.mxu0 0.0
  %2459 = vmatpush.msra.mxu0 %v2248
  %2460 = vmatpush.msra.mxu0 %v2247
  %2461 = vmatmul.f32.gmra.mxu0 %v2254
  %v2462 = vpop.f32.mrf.mxu0
  %v2463 = vadd.f32 %v2251, %v2462
  %2464 = vmatmul.f32.gmra.mxu0 %v2257
  %v2465 = vpop.f32.mrf.mxu0
  %v2466 = vadd.f32 %v2251, %v2465
  %2467 = vmatmul.f32.gmra.mxu0 %v2260
  %v2468 = vpop.f32.mrf.mxu0
  %v2469 = vadd.f32 %v2251, %v2468
  %2470 = vmatmul.f32.gmra.mxu0 %v2263
  %v2471 = vpop.f32.mrf.mxu0
  %v2472 = vadd.f32 %v2251, %v2471
  %2473 = vmatmul.f32.gmra.mxu0 %v2266
  %v2474 = vpop.f32.mrf.mxu0
  %v2475 = vadd.f32 %v2251, %v2474
  %2476 = vmatmul.f32.gmra.mxu0 %v2269
  %v2477 = vpop.f32.mrf.mxu0
  %v2478 = vadd.f32 %v2251, %v2477
  %2479 = vmatmul.f32.gmra.mxu0 %v2272
  %v2480 = vpop.f32.mrf.mxu0
  %v2481 = vadd.f32 %v2251, %v2480
  %2482 = vmatmul.f32.gmra.mxu0 %v2275
  %v2483 = vpop.f32.mrf.mxu0
  %v2484 = vadd.f32 %v2251, %v2483
  %2485 = vmatmul.f32.gmra.mxu0 %v2278
  %v2486 = vpop.f32.mrf.mxu0
  %v2487 = vadd.f32 %v2251, %v2486
  %2488 = vmatmul.f32.gmra.mxu0 %v2281
  %v2489 = vpop.f32.mrf.mxu0
  %v2490 = vadd.f32 %v2251, %v2489
  %2491 = vmatmul.f32.gmra.mxu0 %v2284
  %v2492 = vpop.f32.mrf.mxu0
  %v2493 = vadd.f32 %v2251, %v2492
  %2494 = vmatmul.f32.gmra.mxu0 %v2287
  %v2495 = vpop.f32.mrf.mxu0
  %v2496 = vadd.f32 %v2251, %v2495
  %2497 = vmatmul.f32.gmra.mxu0 %v2290
  %v2498 = vpop.f32.mrf.mxu0
  %v2499 = vadd.f32 %v2251, %v2498
  %2500 = vmatmul.f32.gmra.mxu0 %v2293
  %v2501 = vpop.f32.mrf.mxu0
  %v2502 = vadd.f32 %v2251, %v2501
  %2503 = vmatmul.f32.gmra.mxu0 %v2296
  %v2504 = vpop.f32.mrf.mxu0
  %v2505 = vadd.f32 %v2251, %v2504
  %2506 = vmatmul.f32.gmra.mxu0 %v2299
  %v2507 = vpop.f32.mrf.mxu0
  %v2508 = vadd.f32 %v2251, %v2507
  %2509 = vmatmul.f32.gmra.mxu0 %v2302
  %v2510 = vpop.f32.mrf.mxu0
  %v2511 = vadd.f32 %v2251, %v2510
  %2512 = vmatmul.f32.gmra.mxu0 %v2305
  %v2513 = vpop.f32.mrf.mxu0
  %v2514 = vadd.f32 %v2251, %v2513
  %2515 = vmatmul.f32.gmra.mxu0 %v2308
  %v2516 = vpop.f32.mrf.mxu0
  %v2517 = vadd.f32 %v2251, %v2516
  %2518 = vmatmul.f32.gmra.mxu0 %v2311
  %v2519 = vpop.f32.mrf.mxu0
  %v2520 = vadd.f32 %v2251, %v2519
  %2521 = vmatmul.f32.gmra.mxu0 %v2314
  %v2522 = vpop.f32.mrf.mxu0
  %v2523 = vadd.f32 %v2251, %v2522
  %2524 = vmatmul.f32.gmra.mxu0 %v2317
  %v2525 = vpop.f32.mrf.mxu0
  %v2526 = vadd.f32 %v2251, %v2525
  %2527 = vmatmul.f32.gmra.mxu0 %v2320
  %v2528 = vpop.f32.mrf.mxu0
  %v2529 = vadd.f32 %v2251, %v2528
  %2530 = vmatmul.f32.gmra.mxu0 %v2323
  %v2531 = vpop.f32.mrf.mxu0
  %v2532 = vadd.f32 %v2251, %v2531
  %2533 = vmatmul.f32.gmra.mxu0 %v2326
  %v2534 = vpop.f32.mrf.mxu0
  %v2535 = vadd.f32 %v2251, %v2534
  %2536 = vmatmul.f32.gmra.mxu0 %v2329
  %v2537 = vpop.f32.mrf.mxu0
  %v2538 = vadd.f32 %v2251, %v2537
  %2539 = vmatmul.f32.gmra.mxu0 %v2332
  %v2540 = vpop.f32.mrf.mxu0
  %v2541 = vadd.f32 %v2251, %v2540
  %2542 = vmatmul.f32.gmra.mxu0 %v2335
  %v2543 = vpop.f32.mrf.mxu0
  %v2544 = vadd.f32 %v2251, %v2543
  %2545 = vmatmul.f32.gmra.mxu0 %v2338
  %v2546 = vpop.f32.mrf.mxu0
  %v2547 = vadd.f32 %v2251, %v2546
  %2548 = vmatmul.f32.gmra.mxu0 %v2341
  %v2549 = vpop.f32.mrf.mxu0
  %v2550 = vadd.f32 %v2251, %v2549
  %2551 = vmatmul.f32.gmra.mxu0 %v2344
  %v2552 = vpop.f32.mrf.mxu0
  %v2553 = vadd.f32 %v2251, %v2552
  %2554 = vmatmul.f32.gmra.mxu0 %v2347
  %v2555 = vpop.f32.mrf.mxu0
  %v2556 = vadd.f32 %v2251, %v2555
  %2557 = vmatmul.f32.gmra.mxu0 %v2350
  %v2558 = vpop.f32.mrf.mxu0
  %v2559 = vadd.f32 %v2251, %v2558
  %2560 = vmatmul.f32.gmra.mxu0 %v2353
  %v2561 = vpop.f32.mrf.mxu0
  %v2562 = vadd.f32 %v2251, %v2561
  %2563 = vmatmul.f32.gmra.mxu0 %v2356
  %v2564 = vpop.f32.mrf.mxu0
  %v2565 = vadd.f32 %v2251, %v2564
  %2566 = vmatmul.f32.gmra.mxu0 %v2359
  %v2567 = vpop.f32.mrf.mxu0
  %v2568 = vadd.f32 %v2251, %v2567
  %2569 = vmatmul.f32.gmra.mxu0 %v2362
  %v2570 = vpop.f32.mrf.mxu0
  %v2571 = vadd.f32 %v2251, %v2570
  %2572 = vmatmul.f32.gmra.mxu0 %v2365
  %v2573 = vpop.f32.mrf.mxu0
  %v2574 = vadd.f32 %v2251, %v2573
  %2575 = vmatmul.f32.gmra.mxu0 %v2368
  %v2576 = vpop.f32.mrf.mxu0
  %v2577 = vadd.f32 %v2251, %v2576
  %2578 = vmatmul.f32.gmra.mxu0 %v2371
  %v2579 = vpop.f32.mrf.mxu0
  %v2580 = vadd.f32 %v2251, %v2579
  %2581 = vmatmul.f32.gmra.mxu0 %v2374
  %v2582 = vpop.f32.mrf.mxu0
  %v2583 = vadd.f32 %v2251, %v2582
  %2584 = vmatmul.f32.gmra.mxu0 %v2377
  %v2585 = vpop.f32.mrf.mxu0
  %v2586 = vadd.f32 %v2251, %v2585
  %2587 = vmatmul.f32.gmra.mxu0 %v2380
  %v2588 = vpop.f32.mrf.mxu0
  %v2589 = vadd.f32 %v2251, %v2588
  %2590 = vmatmul.f32.gmra.mxu0 %v2383
  %v2591 = vpop.f32.mrf.mxu0
  %v2592 = vadd.f32 %v2251, %v2591
  %2593 = vmatmul.f32.gmra.mxu0 %v2386
  %v2594 = vpop.f32.mrf.mxu0
  %v2595 = vadd.f32 %v2251, %v2594
  %2596 = vmatmul.f32.gmra.mxu0 %v2389
  %v2597 = vpop.f32.mrf.mxu0
  %v2598 = vadd.f32 %v2251, %v2597
  %2599 = vmatmul.f32.gmra.mxu0 %v2392
  %v2600 = vpop.f32.mrf.mxu0
  %v2601 = vadd.f32 %v2251, %v2600
  %2602 = vmatmul.f32.gmra.mxu0 %v2395
  %v2603 = vpop.f32.mrf.mxu0
  %v2604 = vadd.f32 %v2251, %v2603
  %2605 = vmatmul.f32.gmra.mxu0 %v2398
  %v2606 = vpop.f32.mrf.mxu0
  %v2607 = vadd.f32 %v2251, %v2606
  %2608 = vmatmul.f32.gmra.mxu0 %v2401
  %v2609 = vpop.f32.mrf.mxu0
  %v2610 = vadd.f32 %v2251, %v2609
  %2611 = vmatmul.f32.gmra.mxu0 %v2404
  %v2612 = vpop.f32.mrf.mxu0
  %v2613 = vadd.f32 %v2251, %v2612
  %2614 = vmatmul.f32.gmra.mxu0 %v2407
  %v2615 = vpop.f32.mrf.mxu0
  %v2616 = vadd.f32 %v2251, %v2615
  %2617 = vmatmul.f32.gmra.mxu0 %v2410
  %v2618 = vpop.f32.mrf.mxu0
  %v2619 = vadd.f32 %v2251, %v2618
  %2620 = vmatmul.f32.gmra.mxu0 %v2413
  %v2621 = vpop.f32.mrf.mxu0
  %v2622 = vadd.f32 %v2251, %v2621
  %2623 = vmatmul.f32.gmra.mxu0 %v2416
  %v2624 = vpop.f32.mrf.mxu0
  %v2625 = vadd.f32 %v2251, %v2624
  %2626 = vmatmul.f32.gmra.mxu0 %v2419
  %v2627 = vpop.f32.mrf.mxu0
  %v2628 = vadd.f32 %v2251, %v2627
  %2629 = vmatmul.f32.gmra.mxu0 %v2422
  %v2630 = vpop.f32.mrf.mxu0
  %v2631 = vadd.f32 %v2251, %v2630
  %2632 = vmatmul.f32.gmra.mxu0 %v2425
  %v2633 = vpop.f32.mrf.mxu0
  %v2634 = vadd.f32 %v2251, %v2633
  %2635 = vmatmul.f32.gmra.mxu0 %v2428
  %v2636 = vpop.f32.mrf.mxu0
  %v2637 = vadd.f32 %v2251, %v2636
  %2638 = vmatmul.f32.gmra.mxu0 %v2431
  %v2639 = vpop.f32.mrf.mxu0
  %v2640 = vadd.f32 %v2251, %v2639
  %2641 = vmatmul.f32.gmra.mxu0 %v2434
  %v2642 = vpop.f32.mrf.mxu0
  %v2643 = vadd.f32 %v2251, %v2642
  %2644 = vmatmul.f32.gmra.mxu0 %v2437
  %v2645 = vpop.f32.mrf.mxu0
  %v2646 = vadd.f32 %v2251, %v2645
  %2647 = vmatmul.f32.gmra.mxu0 %v2440
  %v2648 = vpop.f32.mrf.mxu0
  %v2649 = vadd.f32 %v2251, %v2648
  %2650 = vmatmul.f32.gmra.mxu0 %v2443
  %v2651 = vpop.f32.mrf.mxu0
  %v2652 = vadd.f32 %v2251, %v2651
  %2653 = vdwg.mxu0
  %v2654 = vld [vmem:[%s2] sm:$0xff]
  %v2655 = vld [vmem:[%s2 + $0x8] sm:$0xff]
  %v2656 = vld [vmem:[%s2 + $0x10] sm:$0xff]
  %v2657 = vld [vmem:[%s2 + $0x18] sm:$0xff]
  %v2658 = vld [vmem:[%s2 + $0x20] sm:$0xff]
  %v2659 = vld [vmem:[%s2 + $0x28] sm:$0xff]
  %v2660 = vld [vmem:[%s2 + $0x30] sm:$0xff]
  %v2661 = vld [vmem:[%s2 + $0x38] sm:$0xff]
  %v2662 = vld [vmem:[%s2 + $0x40] sm:$0xff]
  %v2663 = vld [vmem:[%s2 + $0x48] sm:$0xff]
  %v2664 = vld [vmem:[%s2 + $0x50] sm:$0xff]
  %v2665 = vld [vmem:[%s2 + $0x58] sm:$0xff]
  %v2666 = vld [vmem:[%s2 + $0x60] sm:$0xff]
  %v2667 = vld [vmem:[%s2 + $0x68] sm:$0xff]
  %v2668 = vld [vmem:[%s2 + $0x70] sm:$0xff]
  %v2669 = vld [vmem:[%s2 + $0x78] sm:$0xff]
  %v2670 = vld [vmem:[%s2 + $0x80] sm:$0xff]
  %v2671 = vld [vmem:[%s2 + $0x88] sm:$0xff]
  %v2672 = vld [vmem:[%s2 + $0x90] sm:$0xff]
  %v2673 = vld [vmem:[%s2 + $0x98] sm:$0xff]
  %v2674 = vld [vmem:[%s2 + $0xa0] sm:$0xff]
  %v2675 = vld [vmem:[%s2 + $0xa8] sm:$0xff]
  %v2676 = vld [vmem:[%s2 + $0xb0] sm:$0xff]
  %v2677 = vld [vmem:[%s2 + $0xb8] sm:$0xff]
  %v2678 = vld [vmem:[%s2 + $0xc0] sm:$0xff]
  %v2679 = vld [vmem:[%s2 + $0xc8] sm:$0xff]
  %v2680 = vld [vmem:[%s2 + $0xd0] sm:$0xff]
  %v2681 = vld [vmem:[%s2 + $0xd8] sm:$0xff]
  %v2682 = vld [vmem:[%s2 + $0xe0] sm:$0xff]
  %v2683 = vld [vmem:[%s2 + $0xe8] sm:$0xff]
  %v2684 = vld [vmem:[%s2 + $0xf0] sm:$0xff]
  %v2685 = vld [vmem:[%s2 + $0xf8] sm:$0xff]
  %v2686 = vld [vmem:[%s2 + $0x100] sm:$0xff]
  %v2687 = vld [vmem:[%s2 + $0x108] sm:$0xff]
  %v2688 = vld [vmem:[%s2 + $0x110] sm:$0xff]
  %v2689 = vld [vmem:[%s2 + $0x118] sm:$0xff]
  %v2690 = vld [vmem:[%s2 + $0x120] sm:$0xff]
  %v2691 = vld [vmem:[%s2 + $0x128] sm:$0xff]
  %v2692 = vld [vmem:[%s2 + $0x130] sm:$0xff]
  %v2693 = vld [vmem:[%s2 + $0x138] sm:$0xff]
  %v2694 = vld [vmem:[%s2 + $0x140] sm:$0xff]
  %v2695 = vld [vmem:[%s2 + $0x148] sm:$0xff]
  %v2696 = vld [vmem:[%s2 + $0x150] sm:$0xff]
  %v2697 = vld [vmem:[%s2 + $0x158] sm:$0xff]
  %v2698 = vld [vmem:[%s2 + $0x160] sm:$0xff]
  %v2699 = vld [vmem:[%s2 + $0x168] sm:$0xff]
  %v2700 = vld [vmem:[%s2 + $0x170] sm:$0xff]
  %v2701 = vld [vmem:[%s2 + $0x178] sm:$0xff]
  %v2702 = vld [vmem:[%s2 + $0x180] sm:$0xff]
  %v2703 = vld [vmem:[%s2 + $0x188] sm:$0xff]
  %v2704 = vld [vmem:[%s2 + $0x190] sm:$0xff]
  %v2705 = vld [vmem:[%s2 + $0x198] sm:$0xff]
  %v2706 = vld [vmem:[%s2 + $0x1a0] sm:$0xff]
  %v2707 = vld [vmem:[%s2 + $0x1a8] sm:$0xff]
  %v2708 = vld [vmem:[%s2 + $0x1b0] sm:$0xff]
  %v2709 = vld [vmem:[%s2 + $0x1b8] sm:$0xff]
  %v2710 = vld [vmem:[%s2 + $0x1c0] sm:$0xff]
  %v2711 = vld [vmem:[%s2 + $0x1c8] sm:$0xff]
  %v2712 = vld [vmem:[%s2 + $0x1d0] sm:$0xff]
  %v2713 = vld [vmem:[%s2 + $0x1d8] sm:$0xff]
  %v2714 = vld [vmem:[%s2 + $0x1e0] sm:$0xff]
  %v2715 = vld [vmem:[%s2 + $0x1e8] sm:$0xff]
  %v2716 = vld [vmem:[%s2 + $0x1f0] sm:$0xff]
  %v2717 = vld [vmem:[%s2 + $0x1f8] sm:$0xff]
  %v2718 = vadd.f32 %v2463, %v2654
  %v2719 = vadd.f32 %v2466, %v2655
  %v2720 = vadd.f32 %v2469, %v2656
  %v2721 = vadd.f32 %v2472, %v2657
  %v2722 = vadd.f32 %v2475, %v2658
  %v2723 = vadd.f32 %v2478, %v2659
  %v2724 = vadd.f32 %v2481, %v2660
  %v2725 = vadd.f32 %v2484, %v2661
  %v2726 = vadd.f32 %v2487, %v2662
  %v2727 = vadd.f32 %v2490, %v2663
  %v2728 = vadd.f32 %v2493, %v2664
  %v2729 = vadd.f32 %v2496, %v2665
  %v2730 = vadd.f32 %v2499, %v2666
  %v2731 = vadd.f32 %v2502, %v2667
  %v2732 = vadd.f32 %v2505, %v2668
  %v2733 = vadd.f32 %v2508, %v2669
  %v2734 = vadd.f32 %v2511, %v2670
  %v2735 = vadd.f32 %v2514, %v2671
  %v2736 = vadd.f32 %v2517, %v2672
  %v2737 = vadd.f32 %v2520, %v2673
  %v2738 = vadd.f32 %v2523, %v2674
  %v2739 = vadd.f32 %v2526, %v2675
  %v2740 = vadd.f32 %v2529, %v2676
  %v2741 = vadd.f32 %v2532, %v2677
  %v2742 = vadd.f32 %v2535, %v2678
  %v2743 = vadd.f32 %v2538, %v2679
  %v2744 = vadd.f32 %v2541, %v2680
  %v2745 = vadd.f32 %v2544, %v2681
  %v2746 = vadd.f32 %v2547, %v2682
  %v2747 = vadd.f32 %v2550, %v2683
  %v2748 = vadd.f32 %v2553, %v2684
  %v2749 = vadd.f32 %v2556, %v2685
  %v2750 = vadd.f32 %v2559, %v2686
  %v2751 = vadd.f32 %v2562, %v2687
  %v2752 = vadd.f32 %v2565, %v2688
  %v2753 = vadd.f32 %v2568, %v2689
  %v2754 = vadd.f32 %v2571, %v2690
  %v2755 = vadd.f32 %v2574, %v2691
  %v2756 = vadd.f32 %v2577, %v2692
  %v2757 = vadd.f32 %v2580, %v2693
  %v2758 = vadd.f32 %v2583, %v2694
  %v2759 = vadd.f32 %v2586, %v2695
  %v2760 = vadd.f32 %v2589, %v2696
  %v2761 = vadd.f32 %v2592, %v2697
  %v2762 = vadd.f32 %v2595, %v2698
  %v2763 = vadd.f32 %v2598, %v2699
  %v2764 = vadd.f32 %v2601, %v2700
  %v2765 = vadd.f32 %v2604, %v2701
  %v2766 = vadd.f32 %v2607, %v2702
  %v2767 = vadd.f32 %v2610, %v2703
  %v2768 = vadd.f32 %v2613, %v2704
  %v2769 = vadd.f32 %v2616, %v2705
  %v2770 = vadd.f32 %v2619, %v2706
  %v2771 = vadd.f32 %v2622, %v2707
  %v2772 = vadd.f32 %v2625, %v2708
  %v2773 = vadd.f32 %v2628, %v2709
  %v2774 = vadd.f32 %v2631, %v2710
  %v2775 = vadd.f32 %v2634, %v2711
  %v2776 = vadd.f32 %v2637, %v2712
  %v2777 = vadd.f32 %v2640, %v2713
  %v2778 = vadd.f32 %v2643, %v2714
  %v2779 = vadd.f32 %v2646, %v2715
  %v2780 = vadd.f32 %v2649, %v2716
  %v2781 = vadd.f32 %v2652, %v2717
  %2782 = vst.msk [vmem:[%s9] sm:$0xff] %vm229, %v2718
  %2783 = vst.msk [vmem:[%s9 + $0x8] sm:$0xff] %vm229, %v2719
  %2784 = vst.msk [vmem:[%s9 + $0x10] sm:$0xff] %vm229, %v2720
  %2785 = vst.msk [vmem:[%s9 + $0x18] sm:$0xff] %vm229, %v2721
  %2786 = vst.msk [vmem:[%s9 + $0x20] sm:$0xff] %vm229, %v2722
  %2787 = vst.msk [vmem:[%s9 + $0x28] sm:$0xff] %vm229, %v2723
  %2788 = vst.msk [vmem:[%s9 + $0x30] sm:$0xff] %vm229, %v2724
  %2789 = vst.msk [vmem:[%s9 + $0x38] sm:$0xff] %vm229, %v2725
  %2790 = vst.msk [vmem:[%s9 + $0x40] sm:$0xff] %vm229, %v2726
  %2791 = vst.msk [vmem:[%s9 + $0x48] sm:$0xff] %vm229, %v2727
  %2792 = vst.msk [vmem:[%s9 + $0x50] sm:$0xff] %vm229, %v2728
  %2793 = vst.msk [vmem:[%s9 + $0x58] sm:$0xff] %vm229, %v2729
  %2794 = vst.msk [vmem:[%s9 + $0x60] sm:$0xff] %vm229, %v2730
  %2795 = vst.msk [vmem:[%s9 + $0x68] sm:$0xff] %vm229, %v2731
  %2796 = vst.msk [vmem:[%s9 + $0x70] sm:$0xff] %vm229, %v2732
  %2797 = vst.msk [vmem:[%s9 + $0x78] sm:$0xff] %vm229, %v2733
  %2798 = vst.msk [vmem:[%s9 + $0x80] sm:$0xff] %vm229, %v2734
  %2799 = vst.msk [vmem:[%s9 + $0x88] sm:$0xff] %vm229, %v2735
  %2800 = vst.msk [vmem:[%s9 + $0x90] sm:$0xff] %vm229, %v2736
  %2801 = vst.msk [vmem:[%s9 + $0x98] sm:$0xff] %vm229, %v2737
  %2802 = vst.msk [vmem:[%s9 + $0xa0] sm:$0xff] %vm229, %v2738
  %2803 = vst.msk [vmem:[%s9 + $0xa8] sm:$0xff] %vm229, %v2739
  %2804 = vst.msk [vmem:[%s9 + $0xb0] sm:$0xff] %vm229, %v2740
  %2805 = vst.msk [vmem:[%s9 + $0xb8] sm:$0xff] %vm229, %v2741
  %2806 = vst.msk [vmem:[%s9 + $0xc0] sm:$0xff] %vm229, %v2742
  %2807 = vst.msk [vmem:[%s9 + $0xc8] sm:$0xff] %vm229, %v2743
  %2808 = vst.msk [vmem:[%s9 + $0xd0] sm:$0xff] %vm229, %v2744
  %2809 = vst.msk [vmem:[%s9 + $0xd8] sm:$0xff] %vm229, %v2745
  %2810 = vst.msk [vmem:[%s9 + $0xe0] sm:$0xff] %vm229, %v2746
  %2811 = vst.msk [vmem:[%s9 + $0xe8] sm:$0xff] %vm229, %v2747
  %2812 = vst.msk [vmem:[%s9 + $0xf0] sm:$0xff] %vm229, %v2748
  %2813 = vst.msk [vmem:[%s9 + $0xf8] sm:$0xff] %vm229, %v2749
  %2814 = vst.msk [vmem:[%s9 + $0x100] sm:$0xff] %vm229, %v2750
  %2815 = vst.msk [vmem:[%s9 + $0x108] sm:$0xff] %vm229, %v2751
  %2816 = vst.msk [vmem:[%s9 + $0x110] sm:$0xff] %vm229, %v2752
  %2817 = vst.msk [vmem:[%s9 + $0x118] sm:$0xff] %vm229, %v2753
  %2818 = vst.msk [vmem:[%s9 + $0x120] sm:$0xff] %vm229, %v2754
  %2819 = vst.msk [vmem:[%s9 + $0x128] sm:$0xff] %vm229, %v2755
  %2820 = vst.msk [vmem:[%s9 + $0x130] sm:$0xff] %vm229, %v2756
  %2821 = vst.msk [vmem:[%s9 + $0x138] sm:$0xff] %vm229, %v2757
  %2822 = vst.msk [vmem:[%s9 + $0x140] sm:$0xff] %vm229, %v2758
  %2823 = vst.msk [vmem:[%s9 + $0x148] sm:$0xff] %vm229, %v2759
  %2824 = vst.msk [vmem:[%s9 + $0x150] sm:$0xff] %vm229, %v2760
  %2825 = vst.msk [vmem:[%s9 + $0x158] sm:$0xff] %vm229, %v2761
  %2826 = vst.msk [vmem:[%s9 + $0x160] sm:$0xff] %vm229, %v2762
  %2827 = vst.msk [vmem:[%s9 + $0x168] sm:$0xff] %vm229, %v2763
  %2828 = vst.msk [vmem:[%s9 + $0x170] sm:$0xff] %vm229, %v2764
  %2829 = vst.msk [vmem:[%s9 + $0x178] sm:$0xff] %vm229, %v2765
  %2830 = vst.msk [vmem:[%s9 + $0x180] sm:$0xff] %vm229, %v2766
  %2831 = vst.msk [vmem:[%s9 + $0x188] sm:$0xff] %vm229, %v2767
  %2832 = vst.msk [vmem:[%s9 + $0x190] sm:$0xff] %vm229, %v2768
  %2833 = vst.msk [vmem:[%s9 + $0x198] sm:$0xff] %vm229, %v2769
  %2834 = vst.msk [vmem:[%s9 + $0x1a0] sm:$0xff] %vm229, %v2770
  %2835 = vst.msk [vmem:[%s9 + $0x1a8] sm:$0xff] %vm229, %v2771
  %2836 = vst.msk [vmem:[%s9 + $0x1b0] sm:$0xff] %vm229, %v2772
  %2837 = vst.msk [vmem:[%s9 + $0x1b8] sm:$0xff] %vm229, %v2773
  %2838 = vst.msk [vmem:[%s9 + $0x1c0] sm:$0xff] %vm229, %v2774
  %2839 = vst.msk [vmem:[%s9 + $0x1c8] sm:$0xff] %vm229, %v2775
  %2840 = vst.msk [vmem:[%s9 + $0x1d0] sm:$0xff] %vm229, %v2776
  %2841 = vst.msk [vmem:[%s9 + $0x1d8] sm:$0xff] %vm229, %v2777
  %2842 = vst.msk [vmem:[%s9 + $0x1e0] sm:$0xff] %vm229, %v2778
  %2843 = vst.msk [vmem:[%s9 + $0x1e8] sm:$0xff] %vm229, %v2779
  %2844 = vst.msk [vmem:[%s9 + $0x1f0] sm:$0xff] %vm229, %v2780
  %2845 = vst.msk [vmem:[%s9 + $0x1f8] sm:$0xff] %vm229, %v2781
  // Predicated region
  $region38: #{factor_fno2d_forward.16} parent=0 // pred_check
    _
  $region39: #{factor_fno2d_forward.16} parent=0 // pred_check_branch
    %2847 = sbr.rel (0) target = $region41
  $region40: #{factor_fno2d_forward.16} parent=0 // pred_region
    _
  $region41: #{factor_fno2d_forward.16} parent=0 // pred_fallthru
    _
  // Predicated region
  $region42: #{factor_fno2d_forward.16} parent=0 // pred_check
    _
  $region43: #{factor_fno2d_forward.16} parent=0 // pred_check_branch
    %2849 = sbr.rel (0) target = $region45
  $region44: #{factor_fno2d_forward.16} parent=0 // pred_region
    _
  $region45: #{factor_fno2d_forward.16} parent=0 // pred_fallthru
    _

</llo_original>
